<compile_context>
chip_gen: v5e
topology: v5e:2x2
jax: 0.10.0
libtpu: 0.0.40
codegen_flags: <defaults>
</compile_context>

<pallas_src>
import jax
import jax.numpy as jnp
from jax.experimental import pallas as pl
from jax.experimental.pallas import tpu as pltpu


# --------------------------------------------------------------------------
# Kernel
# --------------------------------------------------------------------------
def _sylvester_kernel(zper_ref, r1_ref, r2_ref, b_ref, y_ref, logdiag_ref):
    d = r1_ref.shape[-1]

    zper = zper_ref[...]                         # (TB, D) f32 (already permuted)
    bias = b_ref[...].astype(jnp.float32)        # (1, D) or (TB, D)
    r1 = r1_ref[...]                             # (TB, D, D) native dtype
    r2 = r2_ref[...]                             # (TB, D, D) native dtype

    # diag(r1) * diag(r2), extracted in-kernel from the resident blocks
    # (VPU/XLU work that hides under the r1/r2 DMA; avoids a strided HBM
    # diagonal gather in glue).
    row = jax.lax.broadcasted_iota(jnp.int32, (d, d), 0)
    col = jax.lax.broadcasted_iota(jnp.int32, (d, d), 1)
    eye = (row == col)[None, :, :]
    diag_r1 = jnp.sum(jnp.where(eye, r1, jnp.zeros((), r1.dtype)), axis=-1)
    diag_r2 = jnp.sum(jnp.where(eye, r2, jnp.zeros((), r2.dtype)), axis=-1)
    dprod = diag_r1.astype(jnp.float32) * diag_r2.astype(jnp.float32)   # (TB, D)

    if d >= 128:
        # MXU path: batched mat-vecs (M=1) mirroring torch.bmm.  Contraction is
        # on both operands' last (lane) dims -> no transpose/relayout of r1/r2.
        z3 = zper[:, None, :].astype(r2.dtype)                       # (TB,1,D)
        r2qzb = jnp.einsum('bod,bjd->boj', z3, r2,
                           preferred_element_type=jnp.float32)[:, 0, :] + bias
        h = jnp.tanh(r2qzb)                                          # (TB,D) f32
        y = jnp.einsum('boj,bij->boi', h[:, None, :].astype(r1.dtype), r1,
                       preferred_element_type=jnp.float32)[:, 0, :]
    else:
        # Small-D path: VPU broadcast-multiply + lane reduction (f32 accumulate;
        # matrices dominate HBM traffic so this path is still bandwidth-bound).
        r2f = r2.astype(jnp.float32)
        r2qzb = jnp.sum(zper[:, None, :] * r2f, axis=-1) + bias
        h = jnp.tanh(r2qzb)
        r1f = r1.astype(jnp.float32)
        y = jnp.sum(h[:, None, :] * r1f, axis=-1)

    der_h = 1.0 - h * h
    logdiag_ref[...] = jnp.log(jnp.abs(der_h * dprod + 1.0)).astype(logdiag_ref.dtype)
    y_ref[...] = y.astype(y_ref.dtype)


# --------------------------------------------------------------------------
# Tiling heuristics
# --------------------------------------------------------------------------
_VMEM_BUDGET_BYTES = 20 << 20   # double-buffered r1/r2 blocks
_VMEM_LIMIT_BYTES = 48 << 20    # scoped limit (fits v7x's 64 MiB physical)
_MIN_GRID_STEPS = 4             # target >= 4 steps: pipelining + 2 steps per v7x TC


def _choose_batch_tile(b, d, mat_itemsize):
    """Largest TB s.t. double-buffered r1/r2 fit the budget AND grid >= ~4 steps.

    TB is a multiple of 8 (sublane alignment of the (TB, D) vector blocks) or
    equals B for tiny batches.  TB need not divide B: the ragged tail is
    handled by Pallas' partial final block (no padding of (B,D,D) operands).
    """
    per_step = 4 * d * d * mat_itemsize            # 2 matrices x 2 buffers
    vmem_cap = max(1, _VMEM_BUDGET_BYTES // per_step)
    grid_cap = max(1, -(-b // _MIN_GRID_STEPS))    # ceil(b / MIN_GRID_STEPS)
    cap = min(vmem_cap, grid_cap)
    if cap >= b:
        return b
    tb = max(8, (cap // 8) * 8)
    # TODO(synk): if vmem_cap < 8 (very large D) this exceeds the budget; a
    #             j-chunk grid axis is needed there.
    return min(tb, b)


# --------------------------------------------------------------------------
# pallas_call wrapper (batch-tiled grid, auto-pipelined, ragged tail OK)
# --------------------------------------------------------------------------
def _sylvester_pallas(zper, r1, r2, bias2d, tb=None):
    b, d = zper.shape
    mat_itemsize = jnp.dtype(r1.dtype).itemsize
    if tb is None:
        tb = _choose_batch_tile(b, d, mat_itemsize)
    tb = min(tb, b)
    grid = (pl.cdiv(b, tb),)

    vec_spec = pl.BlockSpec((tb, d), lambda i: (i, 0))
    mat_spec = pl.BlockSpec((tb, d, d), lambda i: (i, 0, 0))
    if bias2d.shape[0] == 1:
        bias_spec = pl.BlockSpec((1, d), lambda i: (0, 0))   # shared bias, constant map
    else:
        bias_spec = vec_spec                                  # per-sample bias, tiled

    y, log_diag_j = pl.pallas_call(
        _sylvester_kernel,
        grid=grid,
        in_specs=[vec_spec, mat_spec, mat_spec, bias_spec],
        out_specs=(vec_spec, vec_spec),
        out_shape=(jax.ShapeDtypeStruct((b, d), jnp.float32),
                   jax.ShapeDtypeStruct((b, d), jnp.float32)),
        compiler_params=pltpu.CompilerParams(
            dimension_semantics=("parallel",),
            vmem_limit_bytes=_VMEM_LIMIT_BYTES),
    )(zper, r1, r2, bias2d)
    return y, log_diag_j


# --------------------------------------------------------------------------
# Module-level wrappers (mirror TriangularSylvester._forward / .forward)
# --------------------------------------------------------------------------
def triangular_sylvester(zk, r1, r2, b, permute_z=None, sum_ldj=True, tb=None):
    """Pallas implementation of TriangularSylvester._forward."""
    B, D = zk.shape
    bias2d = jnp.reshape(b, (-1, D)).astype(jnp.float32)        # (1, D) or (B, D)
    if bias2d.shape[0] not in (1, B):
        bias2d = jnp.broadcast_to(bias2d, (B, D))

    # Data-dependent lane permutation of the input: plain-JAX gather (glue).
    z_per = zk[:, permute_z] if permute_z is not None else zk

    y, log_diag_j = _sylvester_pallas(z_per.astype(jnp.float32), r1, r2,
                                      bias2d, tb=tb)

    if permute_z is not None:
        y = y[:, permute_z]
    z = y + zk.astype(jnp.float32)                              # residual add (glue)

    if sum_ldj:
        return z, jnp.sum(log_diag_j, axis=-1)
    return z, log_diag_j


def triangular_sylvester_forward(zk, r1, r2, q_ortho, b, sum_ldj=True, tb=None):
    """Mirrors TriangularSylvester.forward: q_ortho -> bias, b -> permute_z."""
    return triangular_sylvester(zk, r1, r2, q_ortho, permute_z=b,
                                sum_ldj=sum_ldj, tb=tb)


# --------------------------------------------------------------------------
# Pure-JAX reference (mirrors the torch code)
# --------------------------------------------------------------------------
def _reference(zk, r1, r2, b, permute_z=None, sum_ldj=True):
    D = zk.shape[-1]
    zk_e = zk[:, None, :]
    idx = jnp.arange(D)
    diag_r1 = r1[:, idx, idx]
    diag_r2 = r2[:, idx, idx]
    z_per = zk_e[:, :, permute_z] if permute_z is not None else zk_e
    r2qzb = jnp.matmul(z_per, jnp.swapaxes(r2, 2, 1)) + jnp.reshape(b, (-1, 1, D))
    h = jnp.tanh(r2qzb)
    z = jnp.matmul(h, jnp.swapaxes(r1, 2, 1))
    if permute_z is not None:
        z = z[:, :, permute_z]
    z = (z + zk_e)[:, 0, :]
    diag_j = (1.0 - h[:, 0, :] ** 2) * diag_r1 * diag_r2 + 1.0
    log_diag_j = jnp.log(jnp.abs(diag_j))
    return z, (jnp.sum(log_diag_j, -1) if sum_ldj else log_diag_j)


# --------------------------------------------------------------------------
# Demo / correctness check
# --------------------------------------------------------------------------
if __name__ == "__main__":
    key = jax.random.PRNGKey(0)

    # ---- Case 1/2: small D (VPU path), f32, shared (1,1,D) bias ----------
    B1, D1 = 4, 32
    k1, k2, k3, k4, key = jax.random.split(key, 5)
    zk1 = jax.random.normal(k1, (B1, D1), dtype=jnp.float32)
    r1_1 = jnp.triu(0.1 * jax.random.normal(k2, (B1, D1, D1), dtype=jnp.float32))
    r2_1 = jnp.triu(0.1 * jax.random.normal(k3, (B1, D1, D1), dtype=jnp.float32))
    q1 = 0.1 * jax.random.normal(k4, (1, 1, D1), dtype=jnp.float32)   # bias
    perm1 = jnp.arange(D1 - 1, -1, -1)                                # permute_z

    z1, ldj1 = triangular_sylvester_forward(zk1, r1_1, r2_1, q1, perm1)
    z2, ldj2 = triangular_sylvester_forward(zk1, r1_1, r2_1, q1, None)
    jax.block_until_ready((z1, ldj1, z2, ldj2))

    z1_ref, ldj1_ref = _reference(zk1, r1_1, r2_1, q1, permute_z=perm1)
    z2_ref, ldj2_ref = _reference(zk1, r1_1, r2_1, q1, permute_z=None)

    assert jnp.allclose(z1, z1_ref, atol=1e-4), "z mismatch (permuted, f32)"
    assert jnp.allclose(ldj1, ldj1_ref, atol=1e-4), "ldj mismatch (permuted, f32)"
    assert jnp.allclose(z2, z2_ref, atol=1e-4), "z mismatch (f32)"
    assert jnp.allclose(ldj2, ldj2_ref, atol=1e-4), "ldj mismatch (f32)"

    # ---- Case 3: D=128 (MXU path), bf16 r1/r2, per-sample bias, B=12 ------
    #      B % TB != 0 -> exercises the partial-final-block ragged tail and a
    #      multi-step ("parallel") batch grid with no padding of r1/r2.
    B3, D3 = 12, 128
    k1, k2, k3, k4, key = jax.random.split(key, 5)
    zk3 = jax.random.normal(k1, (B3, D3), dtype=jnp.float32)
    r1_3 = jnp.triu(0.05 * jax.random.normal(k2, (B3, D3, D3))).astype(jnp.bfloat16)
    r2_3 = jnp.triu(0.05 * jax.random.normal(k3, (B3, D3, D3))).astype(jnp.bfloat16)
    q3 = 0.05 * jax.random.normal(k4, (B3, 1, D3), dtype=jnp.float32)
    perm3 = jnp.arange(D3 - 1, -1, -1)

    z3, ldj3 = triangular_sylvester_forward(zk3, r1_3, r2_3, q3, perm3)
    jax.block_until_ready((z3, ldj3))

    z3_ref, ldj3_ref = _reference(zk3, r1_3.astype(jnp.float32),
                                  r2_3.astype(jnp.float32), q3, permute_z=perm3)

    # bf16 operands + bf16 h fed to the second matmul -> loose tolerances.
    assert jnp.allclose(z3, z3_ref, atol=5e-2, rtol=5e-2), "z mismatch (bf16/MXU)"
    assert jnp.allclose(ldj3, ldj3_ref, atol=5e-2, rtol=5e-2), "ldj mismatch (bf16/MXU)"

    print("KERNEL_OK")
</pallas_src>

<mosaic_0001>
module attributes {stable_mosaic.version = 11 : i64} {
  func.func @_sylvester_kernel(%arg0: i32, %arg1: memref<4x32xf32, #tpu.memory_space<vmem>>, %arg2: memref<4x32x32xf32, #tpu.memory_space<vmem>>, %arg3: memref<4x32x32xf32, #tpu.memory_space<vmem>>, %arg4: memref<1x32xf32, #tpu.memory_space<vmem>>, %arg5: memref<4x32xf32, #tpu.memory_space<vmem>>, %arg6: memref<4x32xf32, #tpu.memory_space<vmem>>) attributes {dimension_semantics = [#tpu.dimension_semantics<parallel>], iteration_bounds = array<i64: 1>, scalar_prefetch = 0 : i64, scratch_operands = 0 : i64, tpu.core_type = #tpu.core_type<tc>, window_params = [{transform_indices = @transform_0, window_bounds = array<i64: 4, 32>}, {transform_indices = @transform_1, window_bounds = array<i64: 4, 32, 32>}, {transform_indices = @transform_2, window_bounds = array<i64: 4, 32, 32>}, {pipeline_mode = #tpu.pipeline_mode<synchronous>, transform_indices = @transform_3, window_bounds = array<i64: 1, 32>}, {transform_indices = @transform_4, window_bounds = array<i64: 4, 32>}, {transform_indices = @transform_5, window_bounds = array<i64: 4, 32>}]} {
    %c0 = arith.constant 0 : index
    %c0_0 = arith.constant 0 : index
    %0 = vector.load %arg1[%c0, %c0_0] : memref<4x32xf32, #tpu.memory_space<vmem>>, vector<4x32xf32>
    %c0_1 = arith.constant 0 : index
    %c0_2 = arith.constant 0 : index
    %1 = vector.load %arg4[%c0_1, %c0_2] : memref<1x32xf32, #tpu.memory_space<vmem>>, vector<1x32xf32>
    %c0_3 = arith.constant 0 : index
    %c0_4 = arith.constant 0 : index
    %c0_5 = arith.constant 0 : index
    %2 = vector.load %arg2[%c0_3, %c0_4, %c0_5] : memref<4x32x32xf32, #tpu.memory_space<vmem>>, vector<4x32x32xf32>
    %c0_6 = arith.constant 0 : index
    %c0_7 = arith.constant 0 : index
    %c0_8 = arith.constant 0 : index
    %3 = vector.load %arg3[%c0_6, %c0_7, %c0_8] : memref<4x32x32xf32, #tpu.memory_space<vmem>>, vector<4x32x32xf32>
    %4 = tpu.iota {dimensions = array<i32: 0>} : vector<32x32xi32>
    %5 = tpu.iota {dimensions = array<i32: 1>} : vector<32x32xi32>
    %6 = arith.cmpi eq, %4, %5 : vector<32x32xi32>
    %7 = vector.shape_cast %6 : vector<32x32xi1> to vector<1x32x32xi1>
    %cst = arith.constant 0.000000e+00 : f32
    %8 = vector.shape_cast %7 : vector<1x32x32xi1> to vector<1x32x32xi1>
    %9 = vector.broadcast %8 : vector<1x32x32xi1> to vector<4x32x32xi1>
    %10 = vector.broadcast %cst : f32 to vector<4x32x32xf32>
    %11 = arith.select %9, %2, %10 : vector<4x32x32xi1>, vector<4x32x32xf32>
    %cst_9 = arith.constant dense<0.000000e+00> : vector<4x32xf32>
    %12 = vector.multi_reduction <add>, %11, %cst_9 [2] : vector<4x32x32xf32> to vector<4x32xf32>
    %cst_10 = arith.constant 0.000000e+00 : f32
    %13 = vector.shape_cast %7 : vector<1x32x32xi1> to vector<1x32x32xi1>
    %14 = vector.broadcast %13 : vector<1x32x32xi1> to vector<4x32x32xi1>
    %15 = vector.broadcast %cst_10 : f32 to vector<4x32x32xf32>
    %16 = arith.select %14, %3, %15 : vector<4x32x32xi1>, vector<4x32x32xf32>
    %cst_11 = arith.constant dense<0.000000e+00> : vector<4x32xf32>
    %17 = vector.multi_reduction <add>, %16, %cst_11 [2] : vector<4x32x32xf32> to vector<4x32xf32>
    %18 = arith.mulf %12, %17 : vector<4x32xf32>
    %19 = vector.shape_cast %0 : vector<4x32xf32> to vector<4x1x32xf32>
    %20 = vector.broadcast %19 : vector<4x1x32xf32> to vector<4x32x32xf32>
    %21 = arith.mulf %20, %3 : vector<4x32x32xf32>
    %cst_12 = arith.constant dense<0.000000e+00> : vector<4x32xf32>
    %22 = vector.multi_reduction <add>, %21, %cst_12 [2] : vector<4x32x32xf32> to vector<4x32xf32>
    %23 = vector.broadcast %1 : vector<1x32xf32> to vector<4x32xf32>
    %24 = arith.addf %22, %23 : vector<4x32xf32>
    %25 = math.tanh %24 : vector<4x32xf32>
    %26 = vector.shape_cast %25 : vector<4x32xf32> to vector<4x1x32xf32>
    %27 = vector.broadcast %26 : vector<4x1x32xf32> to vector<4x32x32xf32>
    %28 = arith.mulf %27, %2 : vector<4x32x32xf32>
    %cst_13 = arith.constant dense<0.000000e+00> : vector<4x32xf32>
    %29 = vector.multi_reduction <add>, %28, %cst_13 [2] : vector<4x32x32xf32> to vector<4x32xf32>
    %30 = arith.mulf %25, %25 : vector<4x32xf32>
    %cst_14 = arith.constant 1.000000e+00 : f32
    %31 = vector.broadcast %cst_14 : f32 to vector<4x32xf32>
    %32 = arith.subf %31, %30 : vector<4x32xf32>
    %33 = arith.mulf %32, %18 : vector<4x32xf32>
    %cst_15 = arith.constant 1.000000e+00 : f32
    %34 = vector.broadcast %cst_15 : f32 to vector<4x32xf32>
    %35 = arith.addf %33, %34 : vector<4x32xf32>
    %36 = math.absf %35 : vector<4x32xf32>
    %37 = math.log %36 : vector<4x32xf32>
    %c0_16 = arith.constant 0 : index
    %c0_17 = arith.constant 0 : index
    %38 = vector.load %arg6[%c0_16, %c0_17] : memref<4x32xf32, #tpu.memory_space<vmem>>, vector<4x32xf32>
    tpu.vector_store %arg6[%c0_16, %c0_17], %37 {strides = array<i32>} : memref<4x32xf32, #tpu.memory_space<vmem>>, vector<4x32xf32>,
    %c0_18 = arith.constant 0 : index
    %c0_19 = arith.constant 0 : index
    %39 = vector.load %arg5[%c0_18, %c0_19] : memref<4x32xf32, #tpu.memory_space<vmem>>, vector<4x32xf32>
    tpu.vector_store %arg5[%c0_18, %c0_19], %29 {strides = array<i32>} : memref<4x32xf32, #tpu.memory_space<vmem>>, vector<4x32xf32>,
    return
  }
  func.func @transform_0(%arg0: i32) -> (i32, i32) {
    %c0_i32 = arith.constant 0 : i32
    %c0_i32_0 = arith.constant 0 : i32
    return %arg0, %c0_i32 : i32, i32
  }
  func.func @transform_1(%arg0: i32) -> (i32, i32, i32) {
    %c0_i32 = arith.constant 0 : i32
    %c0_i32_0 = arith.constant 0 : i32
    %c0_i32_1 = arith.constant 0 : i32
    return %arg0, %c0_i32, %c0_i32_0 : i32, i32, i32
  }
  func.func @transform_2(%arg0: i32) -> (i32, i32, i32) {
    %c0_i32 = arith.constant 0 : i32
    %c0_i32_0 = arith.constant 0 : i32
    %c0_i32_1 = arith.constant 0 : i32
    return %arg0, %c0_i32, %c0_i32_0 : i32, i32, i32
  }
  func.func @transform_3(%arg0: i32) -> (i32, i32) {
    %c0_i32 = arith.constant 0 : i32
    %c0_i32_0 = arith.constant 0 : i32
    %c0_i32_1 = arith.constant 0 : i32
    return %c0_i32, %c0_i32_0 : i32, i32
  }
  func.func @transform_4(%arg0: i32) -> (i32, i32) {
    %c0_i32 = arith.constant 0 : i32
    %c0_i32_0 = arith.constant 0 : i32
    return %arg0, %c0_i32 : i32, i32
  }
  func.func @transform_5(%arg0: i32) -> (i32, i32) {
    %c0_i32 = arith.constant 0 : i32
    %c0_i32_0 = arith.constant 0 : i32
    return %arg0, %c0_i32 : i32, i32
  }
}

</mosaic_0001>

<llo_original>
// kernel: tpu_custom_call.1
$region0: #{tpu_custom_call.1}
  #allocation0 [shape = 'u32[]', space=smem, size = 0x4, offset = 0x4, fixed_abs, tag = 'smem constant byte address 0x4 - core index']
  #allocation1 [shape = 'u32[72,128]{1,0:T(1,128)}', space=vmem, size = 0x9000, scoped, tag = 'internal scratch']
  %s0 = inlined_call_operand.hbm [shape: f32[4,32], index: 0, kind: input, shape index: {}]
  %s1 = inlined_call_operand.hbm [shape: f32[4,32,32], index: 1, kind: input, shape index: {}]
  %s2 = inlined_call_operand.hbm [shape: f32[4,32,32], index: 2, kind: input, shape index: {}]
  %s3 = inlined_call_operand.vmem [shape: f32[1,32], index: 3, kind: input, shape index: {}]
  %s4 = inlined_call_operand.hbm [shape: f32[4,32], index: 4, kind: output, shape index: {0}]
  %s5 = inlined_call_operand.hbm [shape: f32[4,32], index: 5, kind: output, shape index: {1}]
  %6 = xla_tuple %s4, %s5
  %s7 = sld [smem:[#allocation0]]
  $region46: #{tpu_custom_call.1} parent=0
    _
  %s9 = ssub.s32 1, %s7
  %s10 = scalar_select 0, %s9, %s7
  $region1: #{tpu_custom_call.1} parent=0
    #allocation2 [shape = 'u8[2048]{0}', space=vmem, size = 0x800, scoped, tag = 'input window, operand 0, single buffered']
    #allocation3 [shape = 's32[1]{0}', space=sflag, size = 0x4, scoped, tag = 'scoped memory for tpu_custom_call.1']
    #allocation4 [shape = 's32[1]{0}', space=sflag, size = 0x4, scoped, tag = 'scoped memory for tpu_custom_call.1']
    #allocation5 [shape = 'u8[65536]{0}', space=vmem, size = 0x10000, scoped, tag = 'input window, operand 1, single buffered']
    #allocation6 [shape = 's32[1]{0}', space=sflag, size = 0x4, scoped, tag = 'scoped memory for tpu_custom_call.1']
    #allocation7 [shape = 'u8[65536]{0}', space=vmem, size = 0x10000, scoped, tag = 'input window, operand 2, single buffered']
    #allocation8 [shape = 'u8[2048]{0}', space=vmem, size = 0x800, scoped, tag = 'output window, operand 0, single buffered']
    #allocation9 [shape = 'u8[2048]{0}', space=vmem, size = 0x800, scoped, tag = 'output window, operand 1, single buffered']
    #allocation10 [shape = 's32[1]{0}', space=sflag, size = 0x4, scoped, tag = 'scoped memory for tpu_custom_call.1']
    %11 = vsyncpa [#allocation3], 0
    %12 = vsyncpa [#allocation6], 0
    %13 = vsyncpa [#allocation4], 0
    %14 = vsyncpa [#allocation10], 0
    // Predicated region
    $region2: #{tpu_custom_call.1} parent=1 // pred_check
      _
    $region3: #{tpu_custom_call.1} parent=1 // pred_check_branch
      %16 = sbr.rel (0) target = $region5
    $region4: #{tpu_custom_call.1} parent=1 // pred_region
      %18 = vsyncadd [#allocation3], 0
      %s20 = sshll.u32 %s0, 4
      %s21 = int_to_ptr.hbm [resolvable:$true] %s20
      %s22 = sshll.u32 [#allocation2], 4
      %s23 = int_to_ptr.vmem [resolvable:$true] %s22
      %25 = dma.hbm_to_vmem [thread:$0]  %s21, 64, %s23, [#allocation3]
    $region5: #{tpu_custom_call.1} parent=1 // pred_fallthru
      _
    // Predicated region
    $region6: #{tpu_custom_call.1} parent=1 // pred_check
      _
    $region7: #{tpu_custom_call.1} parent=1 // pred_check_branch
      %27 = sbr.rel (0) target = $region9
    $region8: #{tpu_custom_call.1} parent=1 // pred_region
      %29 = vsyncadd [#allocation6], 0
      %s30 = sshll.u32 %s1, 4
      %s31 = int_to_ptr.hbm [resolvable:$true] %s30
      %s32 = sshll.u32 [#allocation5], 4
      %s33 = int_to_ptr.vmem [resolvable:$true] %s32
      %38 = dma.hbm_to_vmem [thread:$0]  %s31, 2048, %s33, [#allocation6], 128, 128, 8
    $region9: #{tpu_custom_call.1} parent=1 // pred_fallthru
      _
    // Predicated region
    $region10: #{tpu_custom_call.1} parent=1 // pred_check
      _
    $region11: #{tpu_custom_call.1} parent=1 // pred_check_branch
      %40 = sbr.rel (0) target = $region13
    $region12: #{tpu_custom_call.1} parent=1 // pred_region
      %42 = vsyncadd [#allocation6], 0
      %s43 = sshll.u32 %s2, 4
      %s44 = int_to_ptr.hbm [resolvable:$true] %s43
      %s45 = sshll.u32 [#allocation7], 4
      %s46 = int_to_ptr.vmem [resolvable:$true] %s45
      %51 = dma.hbm_to_vmem [thread:$0]  %s44, 2048, %s46, [#allocation6], 128, 128, 8
    $region13: #{tpu_custom_call.1} parent=1 // pred_fallthru
      _
    // Predicated region
    $region14: #{tpu_custom_call.1} parent=1 // pred_check
      _
    $region15: #{tpu_custom_call.1} parent=1 // pred_check_branch
      %53 = sbr.rel (0) target = $region17
    $region16: #{tpu_custom_call.1} parent=1 // pred_region
      _
    $region17: #{tpu_custom_call.1} parent=1 // pred_fallthru
      _
    // Predicated region
    $region18: #{tpu_custom_call.1} parent=1 // pred_check
      _
    $region19: #{tpu_custom_call.1} parent=1 // pred_check_branch
      %55 = sbr.rel (0) target = $region21
    $region20: #{tpu_custom_call.1} parent=1 // pred_region
      %57 = dma.done [#allocation3], 64
    $region21: #{tpu_custom_call.1} parent=1 // pred_fallthru
      _
    // Predicated region
    $region22: #{tpu_custom_call.1} parent=1 // pred_check
      _
    $region23: #{tpu_custom_call.1} parent=1 // pred_check_branch
      %59 = sbr.rel (0) target = $region25
    $region24: #{tpu_custom_call.1} parent=1 // pred_region
      %61 = dma.done [#allocation6], 2048
    $region25: #{tpu_custom_call.1} parent=1 // pred_fallthru
      _
    // Predicated region
    $region26: #{tpu_custom_call.1} parent=1 // pred_check
      _
    $region27: #{tpu_custom_call.1} parent=1 // pred_check_branch
      %63 = sbr.rel (0) target = $region29
    $region28: #{tpu_custom_call.1} parent=1 // pred_region
      %65 = dma.done [#allocation6], 2048
    $region29: #{tpu_custom_call.1} parent=1 // pred_fallthru
      _
    %v66 = vld [vmem:[#allocation2] sm:$0xf]
    %v67 = vld [vmem:[%s3] sm:$0x1]
    %v68 = vld [vmem:[#allocation5] sm:$0xff]
    %v69 = vld [vmem:[#allocation5 + $0x8] sm:$0xff]
    %v70 = vld [vmem:[#allocation5 + $0x10] sm:$0xff]
    %v71 = vld [vmem:[#allocation5 + $0x18] sm:$0xff]
    %v72 = vld [vmem:[#allocation5 + $0x20] sm:$0xff]
    %v73 = vld [vmem:[#allocation5 + $0x28] sm:$0xff]
    %v74 = vld [vmem:[#allocation5 + $0x30] sm:$0xff]
    %v75 = vld [vmem:[#allocation5 + $0x38] sm:$0xff]
    %v76 = vld [vmem:[#allocation5 + $0x40] sm:$0xff]
    %v77 = vld [vmem:[#allocation5 + $0x48] sm:$0xff]
    %v78 = vld [vmem:[#allocation5 + $0x50] sm:$0xff]
    %v79 = vld [vmem:[#allocation5 + $0x58] sm:$0xff]
    %v80 = vld [vmem:[#allocation5 + $0x60] sm:$0xff]
    %v81 = vld [vmem:[#allocation5 + $0x68] sm:$0xff]
    %v82 = vld [vmem:[#allocation5 + $0x70] sm:$0xff]
    %v83 = vld [vmem:[#allocation5 + $0x78] sm:$0xff]
    %v84 = vld [vmem:[#allocation7] sm:$0xff]
    %v85 = vld [vmem:[#allocation7 + $0x8] sm:$0xff]
    %v86 = vld [vmem:[#allocation7 + $0x10] sm:$0xff]
    %v87 = vld [vmem:[#allocation7 + $0x18] sm:$0xff]
    %v88 = vld [vmem:[#allocation7 + $0x20] sm:$0xff]
    %v89 = vld [vmem:[#allocation7 + $0x28] sm:$0xff]
    %v90 = vld [vmem:[#allocation7 + $0x30] sm:$0xff]
    %v91 = vld [vmem:[#allocation7 + $0x38] sm:$0xff]
    %v92 = vld [vmem:[#allocation7 + $0x40] sm:$0xff]
    %v93 = vld [vmem:[#allocation7 + $0x48] sm:$0xff]
    %v94 = vld [vmem:[#allocation7 + $0x50] sm:$0xff]
    %v95 = vld [vmem:[#allocation7 + $0x58] sm:$0xff]
    %v96 = vld [vmem:[#allocation7 + $0x60] sm:$0xff]
    %v97 = vld [vmem:[#allocation7 + $0x68] sm:$0xff]
    %v98 = vld [vmem:[#allocation7 + $0x70] sm:$0xff]
    %v99 = vld [vmem:[#allocation7 + $0x78] sm:$0xff]
    %v100 = vlaneseq
    %v101 = vshrl.u32 %v100, 7
    %v102 = vadd.s32 %v101, 8
    %v103 = vadd.s32 %v101, 16
    %v104 = vadd.s32 %v101, 24
    %v105 = vlaneseq
    %v106 = vand.u32 %v105, 127
    %vm107 = vcmp.eq.s32.totalorder %v101, %v106
    %vm108 = vcmp.eq.s32.totalorder %v102, %v106
    %vm109 = vcmp.eq.s32.totalorder %v103, %v106
    %vm110 = vcmp.eq.s32.totalorder %v104, %v106
    %v111 = vsel %vm107, 1, 0
    %v112 = vsel %vm108, 1, 0
    %v113 = vsel %vm109, 1, 0
    %v114 = vsel %vm110, 1, 0
    %vm115 = vcmp.eq.s32.totalorder %v111, 1
    %vm116 = vcmp.eq.s32.totalorder %v112, 1
    %vm117 = vcmp.eq.s32.totalorder %v113, 1
    %vm118 = vcmp.eq.s32.totalorder %v114, 1
    %v119 = vsel %vm115, %v68, 0.0
    %v120 = vsel %vm116, %v69, 0.0
    %v121 = vsel %vm117, %v70, 0.0
    %v122 = vsel %vm118, %v71, 0.0
    %v123 = vsel %vm115, %v72, 0.0
    %v124 = vsel %vm116, %v73, 0.0
    %v125 = vsel %vm117, %v74, 0.0
    %v126 = vsel %vm118, %v75, 0.0
    %v127 = vsel %vm115, %v76, 0.0
    %v128 = vsel %vm116, %v77, 0.0
    %v129 = vsel %vm117, %v78, 0.0
    %v130 = vsel %vm118, %v79, 0.0
    %v131 = vsel %vm115, %v80, 0.0
    %v132 = vsel %vm116, %v81, 0.0
    %v133 = vsel %vm117, %v82, 0.0
    %v134 = vsel %vm118, %v83, 0.0
    %vm135 = vcmask 261120
    %v136 = vsel %vm135, %v119, 0.0
    %137 = vadd.xlane.f32.xlu0 %v136
    %v138 = vpop.xlane.xlu0 %137
    %v139 = vsel %vm135, %v120, 0.0
    %140 = vadd.xlane.f32.xlu0 %v139
    %v141 = vpop.xlane.xlu0 %140
    %v142 = vsel %vm135, %v121, 0.0
    %143 = vadd.xlane.f32.xlu0 %v142
    %v144 = vpop.xlane.xlu0 %143
    %v145 = vsel %vm135, %v122, 0.0
    %146 = vadd.xlane.f32.xlu0 %v145
    %v147 = vpop.xlane.xlu0 %146
    %v148 = vsel %vm135, %v123, 0.0
    %149 = vadd.xlane.f32.xlu0 %v148
    %v150 = vpop.xlane.xlu0 %149
    %v151 = vsel %vm135, %v124, 0.0
    %152 = vadd.xlane.f32.xlu0 %v151
    %v153 = vpop.xlane.xlu0 %152
    %v154 = vsel %vm135, %v125, 0.0
    %155 = vadd.xlane.f32.xlu0 %v154
    %v156 = vpop.xlane.xlu0 %155
    %v157 = vsel %vm135, %v126, 0.0
    %158 = vadd.xlane.f32.xlu0 %v157
    %v159 = vpop.xlane.xlu0 %158
    %v160 = vsel %vm135, %v127, 0.0
    %161 = vadd.xlane.f32.xlu0 %v160
    %v162 = vpop.xlane.xlu0 %161
    %v163 = vsel %vm135, %v128, 0.0
    %164 = vadd.xlane.f32.xlu0 %v163
    %v165 = vpop.xlane.xlu0 %164
    %v166 = vsel %vm135, %v129, 0.0
    %167 = vadd.xlane.f32.xlu0 %v166
    %v168 = vpop.xlane.xlu0 %167
    %v169 = vsel %vm135, %v130, 0.0
    %170 = vadd.xlane.f32.xlu0 %v169
    %v171 = vpop.xlane.xlu0 %170
    %v172 = vsel %vm135, %v131, 0.0
    %173 = vadd.xlane.f32.xlu0 %v172
    %v174 = vpop.xlane.xlu0 %173
    %v175 = vsel %vm135, %v132, 0.0
    %176 = vadd.xlane.f32.xlu0 %v175
    %v177 = vpop.xlane.xlu0 %176
    %v178 = vsel %vm135, %v133, 0.0
    %179 = vadd.xlane.f32.xlu0 %v178
    %v180 = vpop.xlane.xlu0 %179
    %v181 = vsel %vm135, %v134, 0.0
    %182 = vadd.xlane.f32.xlu0 %v181
    %v183 = vpop.xlane.xlu0 %182
    %v184 = vsel %vm115, %v84, 0.0
    %v185 = vsel %vm116, %v85, 0.0
    %v186 = vsel %vm117, %v86, 0.0
    %v187 = vsel %vm118, %v87, 0.0
    %v188 = vsel %vm115, %v88, 0.0
    %v189 = vsel %vm116, %v89, 0.0
    %v190 = vsel %vm117, %v90, 0.0
    %v191 = vsel %vm118, %v91, 0.0
    %v192 = vsel %vm115, %v92, 0.0
    %v193 = vsel %vm116, %v93, 0.0
    %v194 = vsel %vm117, %v94, 0.0
    %v195 = vsel %vm118, %v95, 0.0
    %v196 = vsel %vm115, %v96, 0.0
    %v197 = vsel %vm116, %v97, 0.0
    %v198 = vsel %vm117, %v98, 0.0
    %v199 = vsel %vm118, %v99, 0.0
    %v200 = vsel %vm135, %v184, 0.0
    %201 = vadd.xlane.f32.xlu0 %v200
    %v202 = vpop.xlane.xlu0 %201
    %v203 = vsel %vm135, %v185, 0.0
    %204 = vadd.xlane.f32.xlu0 %v203
    %v205 = vpop.xlane.xlu0 %204
    %v206 = vsel %vm135, %v186, 0.0
    %207 = vadd.xlane.f32.xlu0 %v206
    %v208 = vpop.xlane.xlu0 %207
    %v209 = vsel %vm135, %v187, 0.0
    %210 = vadd.xlane.f32.xlu0 %v209
    %v211 = vpop.xlane.xlu0 %210
    %v212 = vsel %vm135, %v188, 0.0
    %213 = vadd.xlane.f32.xlu0 %v212
    %v214 = vpop.xlane.xlu0 %213
    %v215 = vsel %vm135, %v189, 0.0
    %216 = vadd.xlane.f32.xlu0 %v215
    %v217 = vpop.xlane.xlu0 %216
    %v218 = vsel %vm135, %v190, 0.0
    %219 = vadd.xlane.f32.xlu0 %v218
    %v220 = vpop.xlane.xlu0 %219
    %v221 = vsel %vm135, %v191, 0.0
    %222 = vadd.xlane.f32.xlu0 %v221
    %v223 = vpop.xlane.xlu0 %222
    %v224 = vsel %vm135, %v192, 0.0
    %225 = vadd.xlane.f32.xlu0 %v224
    %v226 = vpop.xlane.xlu0 %225
    %v227 = vsel %vm135, %v193, 0.0
    %228 = vadd.xlane.f32.xlu0 %v227
    %v229 = vpop.xlane.xlu0 %228
    %v230 = vsel %vm135, %v194, 0.0
    %231 = vadd.xlane.f32.xlu0 %v230
    %v232 = vpop.xlane.xlu0 %231
    %v233 = vsel %vm135, %v195, 0.0
    %234 = vadd.xlane.f32.xlu0 %v233
    %v235 = vpop.xlane.xlu0 %234
    %v236 = vsel %vm135, %v196, 0.0
    %237 = vadd.xlane.f32.xlu0 %v236
    %v238 = vpop.xlane.xlu0 %237
    %v239 = vsel %vm135, %v197, 0.0
    %240 = vadd.xlane.f32.xlu0 %v239
    %v241 = vpop.xlane.xlu0 %240
    %v242 = vsel %vm135, %v198, 0.0
    %243 = vadd.xlane.f32.xlu0 %v242
    %v244 = vpop.xlane.xlu0 %243
    %v245 = vsel %vm135, %v199, 0.0
    %246 = vadd.xlane.f32.xlu0 %v245
    %v247 = vpop.xlane.xlu0 %246
    %v248 = vmul.f32 %v138, %v202
    %v249 = vmul.f32 %v141, %v205
    %v250 = vmul.f32 %v144, %v208
    %v251 = vmul.f32 %v147, %v211
    %v252 = vmul.f32 %v150, %v214
    %v253 = vmul.f32 %v153, %v217
    %v254 = vmul.f32 %v156, %v220
    %v255 = vmul.f32 %v159, %v223
    %v256 = vmul.f32 %v162, %v226
    %v257 = vmul.f32 %v165, %v229
    %v258 = vmul.f32 %v168, %v232
    %v259 = vmul.f32 %v171, %v235
    %v260 = vmul.f32 %v174, %v238
    %v261 = vmul.f32 %v177, %v241
    %v262 = vmul.f32 %v180, %v244
    %v263 = vmul.f32 %v183, %v247
    %v265 = vrot.slane %v66, 1
    %v266 = vrot.slane %v66, 2
    %v267 = vrot.slane %v66, 3
    %v268 = vperm.slane %v66, 0
    %v269 = vperm.slane %v265, 0
    %v270 = vperm.slane %v266, 0
    %v271 = vperm.slane %v267, 0
    %v276 = vmul.f32 %v268, %v84
    %v277 = vmul.f32 %v268, %v85
    %v278 = vmul.f32 %v268, %v86
    %v279 = vmul.f32 %v268, %v87
    %v280 = vmul.f32 %v269, %v88
    %v281 = vmul.f32 %v269, %v89
    %v282 = vmul.f32 %v269, %v90
    %v283 = vmul.f32 %v269, %v91
    %v284 = vmul.f32 %v270, %v92
    %v285 = vmul.f32 %v270, %v93
    %v286 = vmul.f32 %v270, %v94
    %v287 = vmul.f32 %v270, %v95
    %v288 = vmul.f32 %v271, %v96
    %v289 = vmul.f32 %v271, %v97
    %v290 = vmul.f32 %v271, %v98
    %v291 = vmul.f32 %v271, %v99
    %v292 = vsel %vm135, %v276, 0.0
    %293 = vadd.xlane.f32.xlu0 %v292
    %v294 = vpop.xlane.xlu0 %293
    %v295 = vsel %vm135, %v277, 0.0
    %296 = vadd.xlane.f32.xlu0 %v295
    %v297 = vpop.xlane.xlu0 %296
    %v298 = vsel %vm135, %v278, 0.0
    %299 = vadd.xlane.f32.xlu0 %v298
    %v300 = vpop.xlane.xlu0 %299
    %v301 = vsel %vm135, %v279, 0.0
    %302 = vadd.xlane.f32.xlu0 %v301
    %v303 = vpop.xlane.xlu0 %302
    %v304 = vsel %vm135, %v280, 0.0
    %305 = vadd.xlane.f32.xlu0 %v304
    %v306 = vpop.xlane.xlu0 %305
    %v307 = vsel %vm135, %v281, 0.0
    %308 = vadd.xlane.f32.xlu0 %v307
    %v309 = vpop.xlane.xlu0 %308
    %v310 = vsel %vm135, %v282, 0.0
    %311 = vadd.xlane.f32.xlu0 %v310
    %v312 = vpop.xlane.xlu0 %311
    %v313 = vsel %vm135, %v283, 0.0
    %314 = vadd.xlane.f32.xlu0 %v313
    %v315 = vpop.xlane.xlu0 %314
    %v316 = vsel %vm135, %v284, 0.0
    %317 = vadd.xlane.f32.xlu0 %v316
    %v318 = vpop.xlane.xlu0 %317
    %v319 = vsel %vm135, %v285, 0.0
    %320 = vadd.xlane.f32.xlu0 %v319
    %v321 = vpop.xlane.xlu0 %320
    %v322 = vsel %vm135, %v286, 0.0
    %323 = vadd.xlane.f32.xlu0 %v322
    %v324 = vpop.xlane.xlu0 %323
    %v325 = vsel %vm135, %v287, 0.0
    %326 = vadd.xlane.f32.xlu0 %v325
    %v327 = vpop.xlane.xlu0 %326
    %v328 = vsel %vm135, %v288, 0.0
    %329 = vadd.xlane.f32.xlu0 %v328
    %v330 = vpop.xlane.xlu0 %329
    %v331 = vsel %vm135, %v289, 0.0
    %332 = vadd.xlane.f32.xlu0 %v331
    %v333 = vpop.xlane.xlu0 %332
    %v334 = vsel %vm135, %v290, 0.0
    %335 = vadd.xlane.f32.xlu0 %v334
    %v336 = vpop.xlane.xlu0 %335
    %v337 = vsel %vm135, %v291, 0.0
    %338 = vadd.xlane.f32.xlu0 %v337
    %v339 = vpop.xlane.xlu0 %338
    %v341 = vperm.slane %v67, 0
    %v342 = vlaneseq
    %v343 = vshrl.u32 %v342, 7
    %345 = vset.pattern.permute.xlu0 %v343
    %346 = vperm.xlu0 %345, %v341
    %v347 = vpop.permute.xlu0 %346
    %v348 = vlaneseq
    %v349 = vshrl.u32 %v348, 7
    %v350 = vadd.s32 %v349, 8
    %351 = vset.pattern.permute.xlu0 %v350
    %352 = vperm.xlu0 %351, %v341
    %v353 = vpop.permute.xlu0 %352
    %v354 = vlaneseq
    %v355 = vshrl.u32 %v354, 7
    %v356 = vadd.s32 %v355, 16
    %357 = vset.pattern.permute.xlu0 %v356
    %358 = vperm.xlu0 %357, %v341
    %v359 = vpop.permute.xlu0 %358
    %v360 = vlaneseq
    %v361 = vshrl.u32 %v360, 7
    %v362 = vadd.s32 %v361, 24
    %363 = vset.pattern.permute.xlu0 %v362
    %364 = vperm.xlu0 %363, %v341
    %v365 = vpop.permute.xlu0 %364
    %v370 = vadd.f32 %v294, %v347
    %v371 = vadd.f32 %v297, %v353
    %v372 = vadd.f32 %v300, %v359
    %v373 = vadd.f32 %v303, %v365
    %v374 = vadd.f32 %v306, %v347
    %v375 = vadd.f32 %v309, %v353
    %v376 = vadd.f32 %v312, %v359
    %v377 = vadd.f32 %v315, %v365
    %v378 = vadd.f32 %v318, %v347
    %v379 = vadd.f32 %v321, %v353
    %v380 = vadd.f32 %v324, %v359
    %v381 = vadd.f32 %v327, %v365
    %v382 = vadd.f32 %v330, %v347
    %v383 = vadd.f32 %v333, %v353
    %v384 = vadd.f32 %v336, %v359
    %v385 = vadd.f32 %v339, %v365
    %v386 = vtanh.pop %v370
    %v387 = vtanh.pop %v371
    %v388 = vtanh.pop %v372
    %v389 = vtanh.pop %v373
    %v390 = vtanh.pop %v374
    %v391 = vtanh.pop %v375
    %v392 = vtanh.pop %v376
    %v393 = vtanh.pop %v377
    %v394 = vtanh.pop %v378
    %v395 = vtanh.pop %v379
    %v396 = vtanh.pop %v380
    %v397 = vtanh.pop %v381
    %v398 = vtanh.pop %v382
    %v399 = vtanh.pop %v383
    %v400 = vtanh.pop %v384
    %v401 = vtanh.pop %v385
    %v418 = vperm.slane %v68, 0
    %v419 = vlaneseq
    %v420 = vshrl.u32 %v419, 7
    %422 = vset.pattern.permute.xlu0 %v420
    %423 = vperm.xlu0 %422, %v418
    %v424 = vpop.permute.xlu0 %423
    %v425 = vlaneseq
    %v426 = vshrl.u32 %v425, 7
    %v427 = vadd.s32 %v426, 8
    %428 = vset.pattern.permute.xlu0 %v427
    %429 = vperm.xlu0 %428, %v418
    %v430 = vpop.permute.xlu0 %429
    %v431 = vlaneseq
    %v432 = vshrl.u32 %v431, 7
    %v433 = vadd.s32 %v432, 16
    %434 = vset.pattern.permute.xlu0 %v433
    %435 = vperm.xlu0 %434, %v418
    %v436 = vpop.permute.xlu0 %435
    %v437 = vlaneseq
    %v438 = vshrl.u32 %v437, 7
    %v439 = vadd.s32 %v438, 24
    %440 = vset.pattern.permute.xlu0 %v439
    %441 = vperm.xlu0 %440, %v418
    %v442 = vpop.permute.xlu0 %441
    %v443 = vperm.slane %v68, 1
    %v444 = vlaneseq
    %v445 = vshrl.u32 %v444, 7
    %447 = vset.pattern.permute.xlu0 %v445
    %448 = vperm.xlu0 %447, %v443
    %v449 = vpop.permute.xlu0 %448
    %v450 = vlaneseq
    %v451 = vshrl.u32 %v450, 7
    %v452 = vadd.s32 %v451, 8
    %453 = vset.pattern.permute.xlu0 %v452
    %454 = vperm.xlu0 %453, %v443
    %v455 = vpop.permute.xlu0 %454
    %v456 = vlaneseq
    %v457 = vshrl.u32 %v456, 7
    %v458 = vadd.s32 %v457, 16
    %459 = vset.pattern.permute.xlu0 %v458
    %460 = vperm.xlu0 %459, %v443
    %v461 = vpop.permute.xlu0 %460
    %v462 = vlaneseq
    %v463 = vshrl.u32 %v462, 7
    %v464 = vadd.s32 %v463, 24
    %465 = vset.pattern.permute.xlu0 %v464
    %466 = vperm.xlu0 %465, %v443
    %v467 = vpop.permute.xlu0 %466
    %v468 = vperm.slane %v68, 2
    %v469 = vlaneseq
    %v470 = vshrl.u32 %v469, 7
    %472 = vset.pattern.permute.xlu0 %v470
    %473 = vperm.xlu0 %472, %v468
    %v474 = vpop.permute.xlu0 %473
    %v475 = vlaneseq
    %v476 = vshrl.u32 %v475, 7
    %v477 = vadd.s32 %v476, 8
    %478 = vset.pattern.permute.xlu0 %v477
    %479 = vperm.xlu0 %478, %v468
    %v480 = vpop.permute.xlu0 %479
    %v481 = vlaneseq
    %v482 = vshrl.u32 %v481, 7
    %v483 = vadd.s32 %v482, 16
    %484 = vset.pattern.permute.xlu0 %v483
    %485 = vperm.xlu0 %484, %v468
    %v486 = vpop.permute.xlu0 %485
    %v487 = vlaneseq
    %v488 = vshrl.u32 %v487, 7
    %v489 = vadd.s32 %v488, 24
    %490 = vset.pattern.permute.xlu0 %v489
    %491 = vperm.xlu0 %490, %v468
    %v492 = vpop.permute.xlu0 %491
    %v493 = vperm.slane %v68, 3
    %v494 = vlaneseq
    %v495 = vshrl.u32 %v494, 7
    %497 = vset.pattern.permute.xlu0 %v495
    %498 = vperm.xlu0 %497, %v493
    %v499 = vpop.permute.xlu0 %498
    %v500 = vlaneseq
    %v501 = vshrl.u32 %v500, 7
    %v502 = vadd.s32 %v501, 8
    %503 = vset.pattern.permute.xlu0 %v502
    %504 = vperm.xlu0 %503, %v493
    %v505 = vpop.permute.xlu0 %504
    %v506 = vlaneseq
    %v507 = vshrl.u32 %v506, 7
    %v508 = vadd.s32 %v507, 16
    %509 = vset.pattern.permute.xlu0 %v508
    %510 = vperm.xlu0 %509, %v493
    %v511 = vpop.permute.xlu0 %510
    %v512 = vlaneseq
    %v513 = vshrl.u32 %v512, 7
    %v514 = vadd.s32 %v513, 24
    %515 = vset.pattern.permute.xlu0 %v514
    %516 = vperm.xlu0 %515, %v493
    %v517 = vpop.permute.xlu0 %516
    %v518 = vperm.slane %v68, 4
    %v519 = vlaneseq
    %v520 = vshrl.u32 %v519, 7
    %522 = vset.pattern.permute.xlu0 %v520
    %523 = vperm.xlu0 %522, %v518
    %v524 = vpop.permute.xlu0 %523
    %v525 = vlaneseq
    %v526 = vshrl.u32 %v525, 7
    %v527 = vadd.s32 %v526, 8
    %528 = vset.pattern.permute.xlu0 %v527
    %529 = vperm.xlu0 %528, %v518
    %v530 = vpop.permute.xlu0 %529
    %v531 = vlaneseq
    %v532 = vshrl.u32 %v531, 7
    %v533 = vadd.s32 %v532, 16
    %534 = vset.pattern.permute.xlu0 %v533
    %535 = vperm.xlu0 %534, %v518
    %v536 = vpop.permute.xlu0 %535
    %v537 = vlaneseq
    %v538 = vshrl.u32 %v537, 7
    %v539 = vadd.s32 %v538, 24
    %540 = vset.pattern.permute.xlu0 %v539
    %541 = vperm.xlu0 %540, %v518
    %v542 = vpop.permute.xlu0 %541
    %v543 = vperm.slane %v68, 5
    %v544 = vlaneseq
    %v545 = vshrl.u32 %v544, 7
    %547 = vset.pattern.permute.xlu0 %v545
    %548 = vperm.xlu0 %547, %v543
    %v549 = vpop.permute.xlu0 %548
    %v550 = vlaneseq
    %v551 = vshrl.u32 %v550, 7
    %v552 = vadd.s32 %v551, 8
    %553 = vset.pattern.permute.xlu0 %v552
    %554 = vperm.xlu0 %553, %v543
    %v555 = vpop.permute.xlu0 %554
    %v556 = vlaneseq
    %v557 = vshrl.u32 %v556, 7
    %v558 = vadd.s32 %v557, 16
    %559 = vset.pattern.permute.xlu0 %v558
    %560 = vperm.xlu0 %559, %v543
    %v561 = vpop.permute.xlu0 %560
    %v562 = vlaneseq
    %v563 = vshrl.u32 %v562, 7
    %v564 = vadd.s32 %v563, 24
    %565 = vset.pattern.permute.xlu0 %v564
    %566 = vperm.xlu0 %565, %v543
    %v567 = vpop.permute.xlu0 %566
    %v568 = vperm.slane %v68, 6
    %v569 = vlaneseq
    %v570 = vshrl.u32 %v569, 7
    %572 = vset.pattern.permute.xlu0 %v570
    %573 = vperm.xlu0 %572, %v568
    %v574 = vpop.permute.xlu0 %573
    %v575 = vlaneseq
    %v576 = vshrl.u32 %v575, 7
    %v577 = vadd.s32 %v576, 8
    %578 = vset.pattern.permute.xlu0 %v577
    %579 = vperm.xlu0 %578, %v568
    %v580 = vpop.permute.xlu0 %579
    %v581 = vlaneseq
    %v582 = vshrl.u32 %v581, 7
    %v583 = vadd.s32 %v582, 16
    %584 = vset.pattern.permute.xlu0 %v583
    %585 = vperm.xlu0 %584, %v568
    %v586 = vpop.permute.xlu0 %585
    %v587 = vlaneseq
    %v588 = vshrl.u32 %v587, 7
    %v589 = vadd.s32 %v588, 24
    %590 = vset.pattern.permute.xlu0 %v589
    %591 = vperm.xlu0 %590, %v568
    %v592 = vpop.permute.xlu0 %591
    %v593 = vperm.slane %v68, 7
    %v594 = vlaneseq
    %v595 = vshrl.u32 %v594, 7
    %597 = vset.pattern.permute.xlu0 %v595
    %598 = vperm.xlu0 %597, %v593
    %v599 = vpop.permute.xlu0 %598
    %v600 = vlaneseq
    %v601 = vshrl.u32 %v600, 7
    %v602 = vadd.s32 %v601, 8
    %603 = vset.pattern.permute.xlu0 %v602
    %604 = vperm.xlu0 %603, %v593
    %v605 = vpop.permute.xlu0 %604
    %v606 = vlaneseq
    %v607 = vshrl.u32 %v606, 7
    %v608 = vadd.s32 %v607, 16
    %609 = vset.pattern.permute.xlu0 %v608
    %610 = vperm.xlu0 %609, %v593
    %v611 = vpop.permute.xlu0 %610
    %v612 = vlaneseq
    %v613 = vshrl.u32 %v612, 7
    %v614 = vadd.s32 %v613, 24
    %615 = vset.pattern.permute.xlu0 %v614
    %616 = vperm.xlu0 %615, %v593
    %v617 = vpop.permute.xlu0 %616
    %v618 = vperm.slane %v69, 0
    %v619 = vlaneseq
    %v620 = vshrl.u32 %v619, 7
    %622 = vset.pattern.permute.xlu0 %v620
    %623 = vperm.xlu0 %622, %v618
    %v624 = vpop.permute.xlu0 %623
    %v625 = vlaneseq
    %v626 = vshrl.u32 %v625, 7
    %v627 = vadd.s32 %v626, 8
    %628 = vset.pattern.permute.xlu0 %v627
    %629 = vperm.xlu0 %628, %v618
    %v630 = vpop.permute.xlu0 %629
    %v631 = vlaneseq
    %v632 = vshrl.u32 %v631, 7
    %v633 = vadd.s32 %v632, 16
    %634 = vset.pattern.permute.xlu0 %v633
    %635 = vperm.xlu0 %634, %v618
    %v636 = vpop.permute.xlu0 %635
    %v637 = vlaneseq
    %v638 = vshrl.u32 %v637, 7
    %v639 = vadd.s32 %v638, 24
    %640 = vset.pattern.permute.xlu0 %v639
    %641 = vperm.xlu0 %640, %v618
    %v642 = vpop.permute.xlu0 %641
    %v643 = vperm.slane %v69, 1
    %v644 = vlaneseq
    %v645 = vshrl.u32 %v644, 7
    %647 = vset.pattern.permute.xlu0 %v645
    %648 = vperm.xlu0 %647, %v643
    %v649 = vpop.permute.xlu0 %648
    %v650 = vlaneseq
    %v651 = vshrl.u32 %v650, 7
    %v652 = vadd.s32 %v651, 8
    %653 = vset.pattern.permute.xlu0 %v652
    %654 = vperm.xlu0 %653, %v643
    %v655 = vpop.permute.xlu0 %654
    %v656 = vlaneseq
    %v657 = vshrl.u32 %v656, 7
    %v658 = vadd.s32 %v657, 16
    %659 = vset.pattern.permute.xlu0 %v658
    %660 = vperm.xlu0 %659, %v643
    %v661 = vpop.permute.xlu0 %660
    %v662 = vlaneseq
    %v663 = vshrl.u32 %v662, 7
    %v664 = vadd.s32 %v663, 24
    %665 = vset.pattern.permute.xlu0 %v664
    %666 = vperm.xlu0 %665, %v643
    %v667 = vpop.permute.xlu0 %666
    %v668 = vperm.slane %v69, 2
    %v669 = vlaneseq
    %v670 = vshrl.u32 %v669, 7
    %672 = vset.pattern.permute.xlu0 %v670
    %673 = vperm.xlu0 %672, %v668
    %v674 = vpop.permute.xlu0 %673
    %v675 = vlaneseq
    %v676 = vshrl.u32 %v675, 7
    %v677 = vadd.s32 %v676, 8
    %678 = vset.pattern.permute.xlu0 %v677
    %679 = vperm.xlu0 %678, %v668
    %v680 = vpop.permute.xlu0 %679
    %v681 = vlaneseq
    %v682 = vshrl.u32 %v681, 7
    %v683 = vadd.s32 %v682, 16
    %684 = vset.pattern.permute.xlu0 %v683
    %685 = vperm.xlu0 %684, %v668
    %v686 = vpop.permute.xlu0 %685
    %v687 = vlaneseq
    %v688 = vshrl.u32 %v687, 7
    %v689 = vadd.s32 %v688, 24
    %690 = vset.pattern.permute.xlu0 %v689
    %691 = vperm.xlu0 %690, %v668
    %v692 = vpop.permute.xlu0 %691
    %v693 = vperm.slane %v69, 3
    %v694 = vlaneseq
    %v695 = vshrl.u32 %v694, 7
    %697 = vset.pattern.permute.xlu0 %v695
    %698 = vperm.xlu0 %697, %v693
    %v699 = vpop.permute.xlu0 %698
    %v700 = vlaneseq
    %v701 = vshrl.u32 %v700, 7
    %v702 = vadd.s32 %v701, 8
    %703 = vset.pattern.permute.xlu0 %v702
    %704 = vperm.xlu0 %703, %v693
    %v705 = vpop.permute.xlu0 %704
    %v706 = vlaneseq
    %v707 = vshrl.u32 %v706, 7
    %v708 = vadd.s32 %v707, 16
    %709 = vset.pattern.permute.xlu0 %v708
    %710 = vperm.xlu0 %709, %v693
    %v711 = vpop.permute.xlu0 %710
    %v712 = vlaneseq
    %v713 = vshrl.u32 %v712, 7
    %v714 = vadd.s32 %v713, 24
    %715 = vset.pattern.permute.xlu0 %v714
    %716 = vperm.xlu0 %715, %v693
    %v717 = vpop.permute.xlu0 %716
    %v718 = vperm.slane %v69, 4
    %v719 = vlaneseq
    %v720 = vshrl.u32 %v719, 7
    %722 = vset.pattern.permute.xlu0 %v720
    %723 = vperm.xlu0 %722, %v718
    %v724 = vpop.permute.xlu0 %723
    %v725 = vlaneseq
    %v726 = vshrl.u32 %v725, 7
    %v727 = vadd.s32 %v726, 8
    %728 = vset.pattern.permute.xlu0 %v727
    %729 = vperm.xlu0 %728, %v718
    %v730 = vpop.permute.xlu0 %729
    %v731 = vlaneseq
    %v732 = vshrl.u32 %v731, 7
    %v733 = vadd.s32 %v732, 16
    %734 = vset.pattern.permute.xlu0 %v733
    %735 = vperm.xlu0 %734, %v718
    %v736 = vpop.permute.xlu0 %735
    %v737 = vlaneseq
    %v738 = vshrl.u32 %v737, 7
    %v739 = vadd.s32 %v738, 24
    %740 = vset.pattern.permute.xlu0 %v739
    %741 = vperm.xlu0 %740, %v718
    %v742 = vpop.permute.xlu0 %741
    %v743 = vperm.slane %v69, 5
    %v744 = vlaneseq
    %v745 = vshrl.u32 %v744, 7
    %747 = vset.pattern.permute.xlu0 %v745
    %748 = vperm.xlu0 %747, %v743
    %v749 = vpop.permute.xlu0 %748
    %v750 = vlaneseq
    %v751 = vshrl.u32 %v750, 7
    %v752 = vadd.s32 %v751, 8
    %753 = vset.pattern.permute.xlu0 %v752
    %754 = vperm.xlu0 %753, %v743
    %v755 = vpop.permute.xlu0 %754
    %v756 = vlaneseq
    %v757 = vshrl.u32 %v756, 7
    %v758 = vadd.s32 %v757, 16
    %759 = vset.pattern.permute.xlu0 %v758
    %760 = vperm.xlu0 %759, %v743
    %v761 = vpop.permute.xlu0 %760
    %v762 = vlaneseq
    %v763 = vshrl.u32 %v762, 7
    %v764 = vadd.s32 %v763, 24
    %765 = vset.pattern.permute.xlu0 %v764
    %766 = vperm.xlu0 %765, %v743
    %v767 = vpop.permute.xlu0 %766
    %v768 = vperm.slane %v69, 6
    %v769 = vlaneseq
    %v770 = vshrl.u32 %v769, 7
    %772 = vset.pattern.permute.xlu0 %v770
    %773 = vperm.xlu0 %772, %v768
    %v774 = vpop.permute.xlu0 %773
    %v775 = vlaneseq
    %v776 = vshrl.u32 %v775, 7
    %v777 = vadd.s32 %v776, 8
    %778 = vset.pattern.permute.xlu0 %v777
    %779 = vperm.xlu0 %778, %v768
    %v780 = vpop.permute.xlu0 %779
    %v781 = vlaneseq
    %v782 = vshrl.u32 %v781, 7
    %v783 = vadd.s32 %v782, 16
    %784 = vset.pattern.permute.xlu0 %v783
    %785 = vperm.xlu0 %784, %v768
    %v786 = vpop.permute.xlu0 %785
    %v787 = vlaneseq
    %v788 = vshrl.u32 %v787, 7
    %v789 = vadd.s32 %v788, 24
    %790 = vset.pattern.permute.xlu0 %v789
    %791 = vperm.xlu0 %790, %v768
    %v792 = vpop.permute.xlu0 %791
    %v793 = vperm.slane %v69, 7
    %v794 = vlaneseq
    %v795 = vshrl.u32 %v794, 7
    %797 = vset.pattern.permute.xlu0 %v795
    %798 = vperm.xlu0 %797, %v793
    %v799 = vpop.permute.xlu0 %798
    %v800 = vlaneseq
    %v801 = vshrl.u32 %v800, 7
    %v802 = vadd.s32 %v801, 8
    %803 = vset.pattern.permute.xlu0 %v802
    %804 = vperm.xlu0 %803, %v793
    %v805 = vpop.permute.xlu0 %804
    %v806 = vlaneseq
    %v807 = vshrl.u32 %v806, 7
    %v808 = vadd.s32 %v807, 16
    %809 = vset.pattern.permute.xlu0 %v808
    %810 = vperm.xlu0 %809, %v793
    %v811 = vpop.permute.xlu0 %810
    %v812 = vlaneseq
    %v813 = vshrl.u32 %v812, 7
    %v814 = vadd.s32 %v813, 24
    %815 = vset.pattern.permute.xlu0 %v814
    %816 = vperm.xlu0 %815, %v793
    %v817 = vpop.permute.xlu0 %816
    %v818 = vperm.slane %v70, 0
    %v819 = vlaneseq
    %v820 = vshrl.u32 %v819, 7
    %822 = vset.pattern.permute.xlu0 %v820
    %823 = vperm.xlu0 %822, %v818
    %v824 = vpop.permute.xlu0 %823
    %v825 = vlaneseq
    %v826 = vshrl.u32 %v825, 7
    %v827 = vadd.s32 %v826, 8
    %828 = vset.pattern.permute.xlu0 %v827
    %829 = vperm.xlu0 %828, %v818
    %v830 = vpop.permute.xlu0 %829
    %v831 = vlaneseq
    %v832 = vshrl.u32 %v831, 7
    %v833 = vadd.s32 %v832, 16
    %834 = vset.pattern.permute.xlu0 %v833
    %835 = vperm.xlu0 %834, %v818
    %v836 = vpop.permute.xlu0 %835
    %v837 = vlaneseq
    %v838 = vshrl.u32 %v837, 7
    %v839 = vadd.s32 %v838, 24
    %840 = vset.pattern.permute.xlu0 %v839
    %841 = vperm.xlu0 %840, %v818
    %v842 = vpop.permute.xlu0 %841
    %v843 = vperm.slane %v70, 1
    %v844 = vlaneseq
    %v845 = vshrl.u32 %v844, 7
    %847 = vset.pattern.permute.xlu0 %v845
    %848 = vperm.xlu0 %847, %v843
    %v849 = vpop.permute.xlu0 %848
    %v850 = vlaneseq
    %v851 = vshrl.u32 %v850, 7
    %v852 = vadd.s32 %v851, 8
    %853 = vset.pattern.permute.xlu0 %v852
    %854 = vperm.xlu0 %853, %v843
    %v855 = vpop.permute.xlu0 %854
    %v856 = vlaneseq
    %v857 = vshrl.u32 %v856, 7
    %v858 = vadd.s32 %v857, 16
    %859 = vset.pattern.permute.xlu0 %v858
    %860 = vperm.xlu0 %859, %v843
    %v861 = vpop.permute.xlu0 %860
    %v862 = vlaneseq
    %v863 = vshrl.u32 %v862, 7
    %v864 = vadd.s32 %v863, 24
    %865 = vset.pattern.permute.xlu0 %v864
    %866 = vperm.xlu0 %865, %v843
    %v867 = vpop.permute.xlu0 %866
    %v868 = vperm.slane %v70, 2
    %v869 = vlaneseq
    %v870 = vshrl.u32 %v869, 7
    %872 = vset.pattern.permute.xlu0 %v870
    %873 = vperm.xlu0 %872, %v868
    %v874 = vpop.permute.xlu0 %873
    %v875 = vlaneseq
    %v876 = vshrl.u32 %v875, 7
    %v877 = vadd.s32 %v876, 8
    %878 = vset.pattern.permute.xlu0 %v877
    %879 = vperm.xlu0 %878, %v868
    %v880 = vpop.permute.xlu0 %879
    %v881 = vlaneseq
    %v882 = vshrl.u32 %v881, 7
    %v883 = vadd.s32 %v882, 16
    %884 = vset.pattern.permute.xlu0 %v883
    %885 = vperm.xlu0 %884, %v868
    %v886 = vpop.permute.xlu0 %885
    %v887 = vlaneseq
    %v888 = vshrl.u32 %v887, 7
    %v889 = vadd.s32 %v888, 24
    %890 = vset.pattern.permute.xlu0 %v889
    %891 = vperm.xlu0 %890, %v868
    %v892 = vpop.permute.xlu0 %891
    %v893 = vperm.slane %v70, 3
    %v894 = vlaneseq
    %v895 = vshrl.u32 %v894, 7
    %897 = vset.pattern.permute.xlu0 %v895
    %898 = vperm.xlu0 %897, %v893
    %v899 = vpop.permute.xlu0 %898
    %v900 = vlaneseq
    %v901 = vshrl.u32 %v900, 7
    %v902 = vadd.s32 %v901, 8
    %903 = vset.pattern.permute.xlu0 %v902
    %904 = vperm.xlu0 %903, %v893
    %v905 = vpop.permute.xlu0 %904
    %v906 = vlaneseq
    %v907 = vshrl.u32 %v906, 7
    %v908 = vadd.s32 %v907, 16
    %909 = vset.pattern.permute.xlu0 %v908
    %910 = vperm.xlu0 %909, %v893
    %v911 = vpop.permute.xlu0 %910
    %v912 = vlaneseq
    %v913 = vshrl.u32 %v912, 7
    %v914 = vadd.s32 %v913, 24
    %915 = vset.pattern.permute.xlu0 %v914
    %916 = vperm.xlu0 %915, %v893
    %v917 = vpop.permute.xlu0 %916
    %v918 = vperm.slane %v70, 4
    %v919 = vlaneseq
    %v920 = vshrl.u32 %v919, 7
    %922 = vset.pattern.permute.xlu0 %v920
    %923 = vperm.xlu0 %922, %v918
    %v924 = vpop.permute.xlu0 %923
    %v925 = vlaneseq
    %v926 = vshrl.u32 %v925, 7
    %v927 = vadd.s32 %v926, 8
    %928 = vset.pattern.permute.xlu0 %v927
    %929 = vperm.xlu0 %928, %v918
    %v930 = vpop.permute.xlu0 %929
    %v931 = vlaneseq
    %v932 = vshrl.u32 %v931, 7
    %v933 = vadd.s32 %v932, 16
    %934 = vset.pattern.permute.xlu0 %v933
    %935 = vperm.xlu0 %934, %v918
    %v936 = vpop.permute.xlu0 %935
    %v937 = vlaneseq
    %v938 = vshrl.u32 %v937, 7
    %v939 = vadd.s32 %v938, 24
    %940 = vset.pattern.permute.xlu0 %v939
    %941 = vperm.xlu0 %940, %v918
    %v942 = vpop.permute.xlu0 %941
    %v943 = vperm.slane %v70, 5
    %v944 = vlaneseq
    %v945 = vshrl.u32 %v944, 7
    %947 = vset.pattern.permute.xlu0 %v945
    %948 = vperm.xlu0 %947, %v943
    %v949 = vpop.permute.xlu0 %948
    %v950 = vlaneseq
    %v951 = vshrl.u32 %v950, 7
    %v952 = vadd.s32 %v951, 8
    %953 = vset.pattern.permute.xlu0 %v952
    %954 = vperm.xlu0 %953, %v943
    %v955 = vpop.permute.xlu0 %954
    %v956 = vlaneseq
    %v957 = vshrl.u32 %v956, 7
    %v958 = vadd.s32 %v957, 16
    %959 = vset.pattern.permute.xlu0 %v958
    %960 = vperm.xlu0 %959, %v943
    %v961 = vpop.permute.xlu0 %960
    %v962 = vlaneseq
    %v963 = vshrl.u32 %v962, 7
    %v964 = vadd.s32 %v963, 24
    %965 = vset.pattern.permute.xlu0 %v964
    %966 = vperm.xlu0 %965, %v943
    %v967 = vpop.permute.xlu0 %966
    %v968 = vperm.slane %v70, 6
    %v969 = vlaneseq
    %v970 = vshrl.u32 %v969, 7
    %972 = vset.pattern.permute.xlu0 %v970
    %973 = vperm.xlu0 %972, %v968
    %v974 = vpop.permute.xlu0 %973
    %v975 = vlaneseq
    %v976 = vshrl.u32 %v975, 7
    %v977 = vadd.s32 %v976, 8
    %978 = vset.pattern.permute.xlu0 %v977
    %979 = vperm.xlu0 %978, %v968
    %v980 = vpop.permute.xlu0 %979
    %v981 = vlaneseq
    %v982 = vshrl.u32 %v981, 7
    %v983 = vadd.s32 %v982, 16
    %984 = vset.pattern.permute.xlu0 %v983
    %985 = vperm.xlu0 %984, %v968
    %v986 = vpop.permute.xlu0 %985
    %v987 = vlaneseq
    %v988 = vshrl.u32 %v987, 7
    %v989 = vadd.s32 %v988, 24
    %990 = vset.pattern.permute.xlu0 %v989
    %991 = vperm.xlu0 %990, %v968
    %v992 = vpop.permute.xlu0 %991
    %v993 = vperm.slane %v70, 7
    %v994 = vlaneseq
    %v995 = vshrl.u32 %v994, 7
    %997 = vset.pattern.permute.xlu0 %v995
    %998 = vperm.xlu0 %997, %v993
    %v999 = vpop.permute.xlu0 %998
    %v1000 = vlaneseq
    %v1001 = vshrl.u32 %v1000, 7
    %v1002 = vadd.s32 %v1001, 8
    %1003 = vset.pattern.permute.xlu0 %v1002
    %1004 = vperm.xlu0 %1003, %v993
    %v1005 = vpop.permute.xlu0 %1004
    %v1006 = vlaneseq
    %v1007 = vshrl.u32 %v1006, 7
    %v1008 = vadd.s32 %v1007, 16
    %1009 = vset.pattern.permute.xlu0 %v1008
    %1010 = vperm.xlu0 %1009, %v993
    %v1011 = vpop.permute.xlu0 %1010
    %v1012 = vlaneseq
    %v1013 = vshrl.u32 %v1012, 7
    %v1014 = vadd.s32 %v1013, 24
    %1015 = vset.pattern.permute.xlu0 %v1014
    %1016 = vperm.xlu0 %1015, %v993
    %v1017 = vpop.permute.xlu0 %1016
    %v1018 = vperm.slane %v71, 0
    %v1019 = vlaneseq
    %v1020 = vshrl.u32 %v1019, 7
    %1022 = vset.pattern.permute.xlu0 %v1020
    %1023 = vperm.xlu0 %1022, %v1018
    %v1024 = vpop.permute.xlu0 %1023
    %v1025 = vlaneseq
    %v1026 = vshrl.u32 %v1025, 7
    %v1027 = vadd.s32 %v1026, 8
    %1028 = vset.pattern.permute.xlu0 %v1027
    %1029 = vperm.xlu0 %1028, %v1018
    %v1030 = vpop.permute.xlu0 %1029
    %v1031 = vlaneseq
    %v1032 = vshrl.u32 %v1031, 7
    %v1033 = vadd.s32 %v1032, 16
    %1034 = vset.pattern.permute.xlu0 %v1033
    %1035 = vperm.xlu0 %1034, %v1018
    %v1036 = vpop.permute.xlu0 %1035
    %v1037 = vlaneseq
    %v1038 = vshrl.u32 %v1037, 7
    %v1039 = vadd.s32 %v1038, 24
    %1040 = vset.pattern.permute.xlu0 %v1039
    %1041 = vperm.xlu0 %1040, %v1018
    %v1042 = vpop.permute.xlu0 %1041
    %v1043 = vperm.slane %v71, 1
    %v1044 = vlaneseq
    %v1045 = vshrl.u32 %v1044, 7
    %1047 = vset.pattern.permute.xlu0 %v1045
    %1048 = vperm.xlu0 %1047, %v1043
    %v1049 = vpop.permute.xlu0 %1048
    %v1050 = vlaneseq
    %v1051 = vshrl.u32 %v1050, 7
    %v1052 = vadd.s32 %v1051, 8
    %1053 = vset.pattern.permute.xlu0 %v1052
    %1054 = vperm.xlu0 %1053, %v1043
    %v1055 = vpop.permute.xlu0 %1054
    %v1056 = vlaneseq
    %v1057 = vshrl.u32 %v1056, 7
    %v1058 = vadd.s32 %v1057, 16
    %1059 = vset.pattern.permute.xlu0 %v1058
    %1060 = vperm.xlu0 %1059, %v1043
    %v1061 = vpop.permute.xlu0 %1060
    %v1062 = vlaneseq
    %v1063 = vshrl.u32 %v1062, 7
    %v1064 = vadd.s32 %v1063, 24
    %1065 = vset.pattern.permute.xlu0 %v1064
    %1066 = vperm.xlu0 %1065, %v1043
    %v1067 = vpop.permute.xlu0 %1066
    %v1068 = vperm.slane %v71, 2
    %v1069 = vlaneseq
    %v1070 = vshrl.u32 %v1069, 7
    %1072 = vset.pattern.permute.xlu0 %v1070
    %1073 = vperm.xlu0 %1072, %v1068
    %v1074 = vpop.permute.xlu0 %1073
    %v1075 = vlaneseq
    %v1076 = vshrl.u32 %v1075, 7
    %v1077 = vadd.s32 %v1076, 8
    %1078 = vset.pattern.permute.xlu0 %v1077
    %1079 = vperm.xlu0 %1078, %v1068
    %v1080 = vpop.permute.xlu0 %1079
    %v1081 = vlaneseq
    %v1082 = vshrl.u32 %v1081, 7
    %v1083 = vadd.s32 %v1082, 16
    %1084 = vset.pattern.permute.xlu0 %v1083
    %1085 = vperm.xlu0 %1084, %v1068
    %v1086 = vpop.permute.xlu0 %1085
    %v1087 = vlaneseq
    %v1088 = vshrl.u32 %v1087, 7
    %v1089 = vadd.s32 %v1088, 24
    %1090 = vset.pattern.permute.xlu0 %v1089
    %1091 = vperm.xlu0 %1090, %v1068
    %v1092 = vpop.permute.xlu0 %1091
    %v1093 = vperm.slane %v71, 3
    %v1094 = vlaneseq
    %v1095 = vshrl.u32 %v1094, 7
    %1097 = vset.pattern.permute.xlu0 %v1095
    %1098 = vperm.xlu0 %1097, %v1093
    %v1099 = vpop.permute.xlu0 %1098
    %v1100 = vlaneseq
    %v1101 = vshrl.u32 %v1100, 7
    %v1102 = vadd.s32 %v1101, 8
    %1103 = vset.pattern.permute.xlu0 %v1102
    %1104 = vperm.xlu0 %1103, %v1093
    %v1105 = vpop.permute.xlu0 %1104
    %v1106 = vlaneseq
    %v1107 = vshrl.u32 %v1106, 7
    %v1108 = vadd.s32 %v1107, 16
    %1109 = vset.pattern.permute.xlu0 %v1108
    %1110 = vperm.xlu0 %1109, %v1093
    %v1111 = vpop.permute.xlu0 %1110
    %v1112 = vlaneseq
    %v1113 = vshrl.u32 %v1112, 7
    %v1114 = vadd.s32 %v1113, 24
    %1115 = vset.pattern.permute.xlu0 %v1114
    %1116 = vperm.xlu0 %1115, %v1093
    %v1117 = vpop.permute.xlu0 %1116
    %v1118 = vperm.slane %v71, 4
    %v1119 = vlaneseq
    %v1120 = vshrl.u32 %v1119, 7
    %1122 = vset.pattern.permute.xlu0 %v1120
    %1123 = vperm.xlu0 %1122, %v1118
    %v1124 = vpop.permute.xlu0 %1123
    %v1125 = vlaneseq
    %v1126 = vshrl.u32 %v1125, 7
    %v1127 = vadd.s32 %v1126, 8
    %1128 = vset.pattern.permute.xlu0 %v1127
    %1129 = vperm.xlu0 %1128, %v1118
    %v1130 = vpop.permute.xlu0 %1129
    %v1131 = vlaneseq
    %v1132 = vshrl.u32 %v1131, 7
    %v1133 = vadd.s32 %v1132, 16
    %1134 = vset.pattern.permute.xlu0 %v1133
    %1135 = vperm.xlu0 %1134, %v1118
    %v1136 = vpop.permute.xlu0 %1135
    %v1137 = vlaneseq
    %v1138 = vshrl.u32 %v1137, 7
    %v1139 = vadd.s32 %v1138, 24
    %1140 = vset.pattern.permute.xlu0 %v1139
    %1141 = vperm.xlu0 %1140, %v1118
    %v1142 = vpop.permute.xlu0 %1141
    %v1143 = vperm.slane %v71, 5
    %v1144 = vlaneseq
    %v1145 = vshrl.u32 %v1144, 7
    %1147 = vset.pattern.permute.xlu0 %v1145
    %1148 = vperm.xlu0 %1147, %v1143
    %v1149 = vpop.permute.xlu0 %1148
    %v1150 = vlaneseq
    %v1151 = vshrl.u32 %v1150, 7
    %v1152 = vadd.s32 %v1151, 8
    %1153 = vset.pattern.permute.xlu0 %v1152
    %1154 = vperm.xlu0 %1153, %v1143
    %v1155 = vpop.permute.xlu0 %1154
    %v1156 = vlaneseq
    %v1157 = vshrl.u32 %v1156, 7
    %v1158 = vadd.s32 %v1157, 16
    %1159 = vset.pattern.permute.xlu0 %v1158
    %1160 = vperm.xlu0 %1159, %v1143
    %v1161 = vpop.permute.xlu0 %1160
    %v1162 = vlaneseq
    %v1163 = vshrl.u32 %v1162, 7
    %v1164 = vadd.s32 %v1163, 24
    %1165 = vset.pattern.permute.xlu0 %v1164
    %1166 = vperm.xlu0 %1165, %v1143
    %v1167 = vpop.permute.xlu0 %1166
    %v1168 = vperm.slane %v71, 6
    %v1169 = vlaneseq
    %v1170 = vshrl.u32 %v1169, 7
    %1172 = vset.pattern.permute.xlu0 %v1170
    %1173 = vperm.xlu0 %1172, %v1168
    %v1174 = vpop.permute.xlu0 %1173
    %v1175 = vlaneseq
    %v1176 = vshrl.u32 %v1175, 7
    %v1177 = vadd.s32 %v1176, 8
    %1178 = vset.pattern.permute.xlu0 %v1177
    %1179 = vperm.xlu0 %1178, %v1168
    %v1180 = vpop.permute.xlu0 %1179
    %v1181 = vlaneseq
    %v1182 = vshrl.u32 %v1181, 7
    %v1183 = vadd.s32 %v1182, 16
    %1184 = vset.pattern.permute.xlu0 %v1183
    %1185 = vperm.xlu0 %1184, %v1168
    %v1186 = vpop.permute.xlu0 %1185
    %v1187 = vlaneseq
    %v1188 = vshrl.u32 %v1187, 7
    %v1189 = vadd.s32 %v1188, 24
    %1190 = vset.pattern.permute.xlu0 %v1189
    %1191 = vperm.xlu0 %1190, %v1168
    %v1192 = vpop.permute.xlu0 %1191
    %v1193 = vperm.slane %v71, 7
    %v1194 = vlaneseq
    %v1195 = vshrl.u32 %v1194, 7
    %1197 = vset.pattern.permute.xlu0 %v1195
    %1198 = vperm.xlu0 %1197, %v1193
    %v1199 = vpop.permute.xlu0 %1198
    %v1200 = vlaneseq
    %v1201 = vshrl.u32 %v1200, 7
    %v1202 = vadd.s32 %v1201, 8
    %1203 = vset.pattern.permute.xlu0 %v1202
    %1204 = vperm.xlu0 %1203, %v1193
    %v1205 = vpop.permute.xlu0 %1204
    %v1206 = vlaneseq
    %v1207 = vshrl.u32 %v1206, 7
    %v1208 = vadd.s32 %v1207, 16
    %1209 = vset.pattern.permute.xlu0 %v1208
    %1210 = vperm.xlu0 %1209, %v1193
    %v1211 = vpop.permute.xlu0 %1210
    %v1212 = vlaneseq
    %v1213 = vshrl.u32 %v1212, 7
    %v1214 = vadd.s32 %v1213, 24
    %1215 = vset.pattern.permute.xlu0 %v1214
    %1216 = vperm.xlu0 %1215, %v1193
    %v1217 = vpop.permute.xlu0 %1216
    %v1218 = vperm.slane %v72, 0
    %v1219 = vlaneseq
    %v1220 = vshrl.u32 %v1219, 7
    %1222 = vset.pattern.permute.xlu0 %v1220
    %1223 = vperm.xlu0 %1222, %v1218
    %v1224 = vpop.permute.xlu0 %1223
    %v1225 = vlaneseq
    %v1226 = vshrl.u32 %v1225, 7
    %v1227 = vadd.s32 %v1226, 8
    %1228 = vset.pattern.permute.xlu0 %v1227
    %1229 = vperm.xlu0 %1228, %v1218
    %v1230 = vpop.permute.xlu0 %1229
    %v1231 = vlaneseq
    %v1232 = vshrl.u32 %v1231, 7
    %v1233 = vadd.s32 %v1232, 16
    %1234 = vset.pattern.permute.xlu0 %v1233
    %1235 = vperm.xlu0 %1234, %v1218
    %v1236 = vpop.permute.xlu0 %1235
    %v1237 = vlaneseq
    %v1238 = vshrl.u32 %v1237, 7
    %v1239 = vadd.s32 %v1238, 24
    %1240 = vset.pattern.permute.xlu0 %v1239
    %1241 = vperm.xlu0 %1240, %v1218
    %v1242 = vpop.permute.xlu0 %1241
    %v1243 = vperm.slane %v72, 1
    %v1244 = vlaneseq
    %v1245 = vshrl.u32 %v1244, 7
    %1247 = vset.pattern.permute.xlu0 %v1245
    %1248 = vperm.xlu0 %1247, %v1243
    %v1249 = vpop.permute.xlu0 %1248
    %v1250 = vlaneseq
    %v1251 = vshrl.u32 %v1250, 7
    %v1252 = vadd.s32 %v1251, 8
    %1253 = vset.pattern.permute.xlu0 %v1252
    %1254 = vperm.xlu0 %1253, %v1243
    %v1255 = vpop.permute.xlu0 %1254
    %v1256 = vlaneseq
    %v1257 = vshrl.u32 %v1256, 7
    %v1258 = vadd.s32 %v1257, 16
    %1259 = vset.pattern.permute.xlu0 %v1258
    %1260 = vperm.xlu0 %1259, %v1243
    %v1261 = vpop.permute.xlu0 %1260
    %v1262 = vlaneseq
    %v1263 = vshrl.u32 %v1262, 7
    %v1264 = vadd.s32 %v1263, 24
    %1265 = vset.pattern.permute.xlu0 %v1264
    %1266 = vperm.xlu0 %1265, %v1243
    %v1267 = vpop.permute.xlu0 %1266
    %v1268 = vperm.slane %v72, 2
    %v1269 = vlaneseq
    %v1270 = vshrl.u32 %v1269, 7
    %1272 = vset.pattern.permute.xlu0 %v1270
    %1273 = vperm.xlu0 %1272, %v1268
    %v1274 = vpop.permute.xlu0 %1273
    %v1275 = vlaneseq
    %v1276 = vshrl.u32 %v1275, 7
    %v1277 = vadd.s32 %v1276, 8
    %1278 = vset.pattern.permute.xlu0 %v1277
    %1279 = vperm.xlu0 %1278, %v1268
    %v1280 = vpop.permute.xlu0 %1279
    %v1281 = vlaneseq
    %v1282 = vshrl.u32 %v1281, 7
    %v1283 = vadd.s32 %v1282, 16
    %1284 = vset.pattern.permute.xlu0 %v1283
    %1285 = vperm.xlu0 %1284, %v1268
    %v1286 = vpop.permute.xlu0 %1285
    %v1287 = vlaneseq
    %v1288 = vshrl.u32 %v1287, 7
    %v1289 = vadd.s32 %v1288, 24
    %1290 = vset.pattern.permute.xlu0 %v1289
    %1291 = vperm.xlu0 %1290, %v1268
    %v1292 = vpop.permute.xlu0 %1291
    %v1293 = vperm.slane %v72, 3
    %v1294 = vlaneseq
    %v1295 = vshrl.u32 %v1294, 7
    %1297 = vset.pattern.permute.xlu0 %v1295
    %1298 = vperm.xlu0 %1297, %v1293
    %v1299 = vpop.permute.xlu0 %1298
    %v1300 = vlaneseq
    %v1301 = vshrl.u32 %v1300, 7
    %v1302 = vadd.s32 %v1301, 8
    %1303 = vset.pattern.permute.xlu0 %v1302
    %1304 = vperm.xlu0 %1303, %v1293
    %v1305 = vpop.permute.xlu0 %1304
    %v1306 = vlaneseq
    %v1307 = vshrl.u32 %v1306, 7
    %v1308 = vadd.s32 %v1307, 16
    %1309 = vset.pattern.permute.xlu0 %v1308
    %1310 = vperm.xlu0 %1309, %v1293
    %v1311 = vpop.permute.xlu0 %1310
    %v1312 = vlaneseq
    %v1313 = vshrl.u32 %v1312, 7
    %v1314 = vadd.s32 %v1313, 24
    %1315 = vset.pattern.permute.xlu0 %v1314
    %1316 = vperm.xlu0 %1315, %v1293
    %v1317 = vpop.permute.xlu0 %1316
    %v1318 = vperm.slane %v72, 4
    %v1319 = vlaneseq
    %v1320 = vshrl.u32 %v1319, 7
    %1322 = vset.pattern.permute.xlu0 %v1320
    %1323 = vperm.xlu0 %1322, %v1318
    %v1324 = vpop.permute.xlu0 %1323
    %v1325 = vlaneseq
    %v1326 = vshrl.u32 %v1325, 7
    %v1327 = vadd.s32 %v1326, 8
    %1328 = vset.pattern.permute.xlu0 %v1327
    %1329 = vperm.xlu0 %1328, %v1318
    %v1330 = vpop.permute.xlu0 %1329
    %v1331 = vlaneseq
    %v1332 = vshrl.u32 %v1331, 7
    %v1333 = vadd.s32 %v1332, 16
    %1334 = vset.pattern.permute.xlu0 %v1333
    %1335 = vperm.xlu0 %1334, %v1318
    %v1336 = vpop.permute.xlu0 %1335
    %v1337 = vlaneseq
    %v1338 = vshrl.u32 %v1337, 7
    %v1339 = vadd.s32 %v1338, 24
    %1340 = vset.pattern.permute.xlu0 %v1339
    %1341 = vperm.xlu0 %1340, %v1318
    %v1342 = vpop.permute.xlu0 %1341
    %v1343 = vperm.slane %v72, 5
    %v1344 = vlaneseq
    %v1345 = vshrl.u32 %v1344, 7
    %1347 = vset.pattern.permute.xlu0 %v1345
    %1348 = vperm.xlu0 %1347, %v1343
    %v1349 = vpop.permute.xlu0 %1348
    %v1350 = vlaneseq
    %v1351 = vshrl.u32 %v1350, 7
    %v1352 = vadd.s32 %v1351, 8
    %1353 = vset.pattern.permute.xlu0 %v1352
    %1354 = vperm.xlu0 %1353, %v1343
    %v1355 = vpop.permute.xlu0 %1354
    %v1356 = vlaneseq
    %v1357 = vshrl.u32 %v1356, 7
    %v1358 = vadd.s32 %v1357, 16
    %1359 = vset.pattern.permute.xlu0 %v1358
    %1360 = vperm.xlu0 %1359, %v1343
    %v1361 = vpop.permute.xlu0 %1360
    %v1362 = vlaneseq
    %v1363 = vshrl.u32 %v1362, 7
    %v1364 = vadd.s32 %v1363, 24
    %1365 = vset.pattern.permute.xlu0 %v1364
    %1366 = vperm.xlu0 %1365, %v1343
    %v1367 = vpop.permute.xlu0 %1366
    %v1368 = vperm.slane %v72, 6
    %v1369 = vlaneseq
    %v1370 = vshrl.u32 %v1369, 7
    %1372 = vset.pattern.permute.xlu0 %v1370
    %1373 = vperm.xlu0 %1372, %v1368
    %v1374 = vpop.permute.xlu0 %1373
    %v1375 = vlaneseq
    %v1376 = vshrl.u32 %v1375, 7
    %v1377 = vadd.s32 %v1376, 8
    %1378 = vset.pattern.permute.xlu0 %v1377
    %1379 = vperm.xlu0 %1378, %v1368
    %v1380 = vpop.permute.xlu0 %1379
    %v1381 = vlaneseq
    %v1382 = vshrl.u32 %v1381, 7
    %v1383 = vadd.s32 %v1382, 16
    %1384 = vset.pattern.permute.xlu0 %v1383
    %1385 = vperm.xlu0 %1384, %v1368
    %v1386 = vpop.permute.xlu0 %1385
    %v1387 = vlaneseq
    %v1388 = vshrl.u32 %v1387, 7
    %v1389 = vadd.s32 %v1388, 24
    %1390 = vset.pattern.permute.xlu0 %v1389
    %1391 = vperm.xlu0 %1390, %v1368
    %v1392 = vpop.permute.xlu0 %1391
    %v1393 = vperm.slane %v72, 7
    %v1394 = vlaneseq
    %v1395 = vshrl.u32 %v1394, 7
    %1397 = vset.pattern.permute.xlu0 %v1395
    %1398 = vperm.xlu0 %1397, %v1393
    %v1399 = vpop.permute.xlu0 %1398
    %v1400 = vlaneseq
    %v1401 = vshrl.u32 %v1400, 7
    %v1402 = vadd.s32 %v1401, 8
    %1403 = vset.pattern.permute.xlu0 %v1402
    %1404 = vperm.xlu0 %1403, %v1393
    %v1405 = vpop.permute.xlu0 %1404
    %v1406 = vlaneseq
    %v1407 = vshrl.u32 %v1406, 7
    %v1408 = vadd.s32 %v1407, 16
    %1409 = vset.pattern.permute.xlu0 %v1408
    %1410 = vperm.xlu0 %1409, %v1393
    %v1411 = vpop.permute.xlu0 %1410
    %v1412 = vlaneseq
    %v1413 = vshrl.u32 %v1412, 7
    %v1414 = vadd.s32 %v1413, 24
    %1415 = vset.pattern.permute.xlu0 %v1414
    %1416 = vperm.xlu0 %1415, %v1393
    %v1417 = vpop.permute.xlu0 %1416
    %v1418 = vperm.slane %v73, 0
    %v1419 = vlaneseq
    %v1420 = vshrl.u32 %v1419, 7
    %1422 = vset.pattern.permute.xlu0 %v1420
    %1423 = vperm.xlu0 %1422, %v1418
    %v1424 = vpop.permute.xlu0 %1423
    %v1425 = vlaneseq
    %v1426 = vshrl.u32 %v1425, 7
    %v1427 = vadd.s32 %v1426, 8
    %1428 = vset.pattern.permute.xlu0 %v1427
    %1429 = vperm.xlu0 %1428, %v1418
    %v1430 = vpop.permute.xlu0 %1429
    %v1431 = vlaneseq
    %v1432 = vshrl.u32 %v1431, 7
    %v1433 = vadd.s32 %v1432, 16
    %1434 = vset.pattern.permute.xlu0 %v1433
    %1435 = vperm.xlu0 %1434, %v1418
    %v1436 = vpop.permute.xlu0 %1435
    %v1437 = vlaneseq
    %v1438 = vshrl.u32 %v1437, 7
    %v1439 = vadd.s32 %v1438, 24
    %1440 = vset.pattern.permute.xlu0 %v1439
    %1441 = vperm.xlu0 %1440, %v1418
    %v1442 = vpop.permute.xlu0 %1441
    %v1443 = vperm.slane %v73, 1
    %v1444 = vlaneseq
    %v1445 = vshrl.u32 %v1444, 7
    %1447 = vset.pattern.permute.xlu0 %v1445
    %1448 = vperm.xlu0 %1447, %v1443
    %v1449 = vpop.permute.xlu0 %1448
    %v1450 = vlaneseq
    %v1451 = vshrl.u32 %v1450, 7
    %v1452 = vadd.s32 %v1451, 8
    %1453 = vset.pattern.permute.xlu0 %v1452
    %1454 = vperm.xlu0 %1453, %v1443
    %v1455 = vpop.permute.xlu0 %1454
    %v1456 = vlaneseq
    %v1457 = vshrl.u32 %v1456, 7
    %v1458 = vadd.s32 %v1457, 16
    %1459 = vset.pattern.permute.xlu0 %v1458
    %1460 = vperm.xlu0 %1459, %v1443
    %v1461 = vpop.permute.xlu0 %1460
    %v1462 = vlaneseq
    %v1463 = vshrl.u32 %v1462, 7
    %v1464 = vadd.s32 %v1463, 24
    %1465 = vset.pattern.permute.xlu0 %v1464
    %1466 = vperm.xlu0 %1465, %v1443
    %v1467 = vpop.permute.xlu0 %1466
    %v1468 = vperm.slane %v73, 2
    %v1469 = vlaneseq
    %v1470 = vshrl.u32 %v1469, 7
    %1472 = vset.pattern.permute.xlu0 %v1470
    %1473 = vperm.xlu0 %1472, %v1468
    %v1474 = vpop.permute.xlu0 %1473
    %v1475 = vlaneseq
    %v1476 = vshrl.u32 %v1475, 7
    %v1477 = vadd.s32 %v1476, 8
    %1478 = vset.pattern.permute.xlu0 %v1477
    %1479 = vperm.xlu0 %1478, %v1468
    %v1480 = vpop.permute.xlu0 %1479
    %v1481 = vlaneseq
    %v1482 = vshrl.u32 %v1481, 7
    %v1483 = vadd.s32 %v1482, 16
    %1484 = vset.pattern.permute.xlu0 %v1483
    %1485 = vperm.xlu0 %1484, %v1468
    %v1486 = vpop.permute.xlu0 %1485
    %v1487 = vlaneseq
    %v1488 = vshrl.u32 %v1487, 7
    %v1489 = vadd.s32 %v1488, 24
    %1490 = vset.pattern.permute.xlu0 %v1489
    %1491 = vperm.xlu0 %1490, %v1468
    %v1492 = vpop.permute.xlu0 %1491
    %v1493 = vperm.slane %v73, 3
    %v1494 = vlaneseq
    %v1495 = vshrl.u32 %v1494, 7
    %1497 = vset.pattern.permute.xlu0 %v1495
    %1498 = vperm.xlu0 %1497, %v1493
    %v1499 = vpop.permute.xlu0 %1498
    %v1500 = vlaneseq
    %v1501 = vshrl.u32 %v1500, 7
    %v1502 = vadd.s32 %v1501, 8
    %1503 = vset.pattern.permute.xlu0 %v1502
    %1504 = vperm.xlu0 %1503, %v1493
    %v1505 = vpop.permute.xlu0 %1504
    %v1506 = vlaneseq
    %v1507 = vshrl.u32 %v1506, 7
    %v1508 = vadd.s32 %v1507, 16
    %1509 = vset.pattern.permute.xlu0 %v1508
    %1510 = vperm.xlu0 %1509, %v1493
    %v1511 = vpop.permute.xlu0 %1510
    %v1512 = vlaneseq
    %v1513 = vshrl.u32 %v1512, 7
    %v1514 = vadd.s32 %v1513, 24
    %1515 = vset.pattern.permute.xlu0 %v1514
    %1516 = vperm.xlu0 %1515, %v1493
    %v1517 = vpop.permute.xlu0 %1516
    %v1518 = vperm.slane %v73, 4
    %v1519 = vlaneseq
    %v1520 = vshrl.u32 %v1519, 7
    %1522 = vset.pattern.permute.xlu0 %v1520
    %1523 = vperm.xlu0 %1522, %v1518
    %v1524 = vpop.permute.xlu0 %1523
    %v1525 = vlaneseq
    %v1526 = vshrl.u32 %v1525, 7
    %v1527 = vadd.s32 %v1526, 8
    %1528 = vset.pattern.permute.xlu0 %v1527
    %1529 = vperm.xlu0 %1528, %v1518
    %v1530 = vpop.permute.xlu0 %1529
    %v1531 = vlaneseq
    %v1532 = vshrl.u32 %v1531, 7
    %v1533 = vadd.s32 %v1532, 16
    %1534 = vset.pattern.permute.xlu0 %v1533
    %1535 = vperm.xlu0 %1534, %v1518
    %v1536 = vpop.permute.xlu0 %1535
    %v1537 = vlaneseq
    %v1538 = vshrl.u32 %v1537, 7
    %v1539 = vadd.s32 %v1538, 24
    %1540 = vset.pattern.permute.xlu0 %v1539
    %1541 = vperm.xlu0 %1540, %v1518
    %v1542 = vpop.permute.xlu0 %1541
    %v1543 = vperm.slane %v73, 5
    %v1544 = vlaneseq
    %v1545 = vshrl.u32 %v1544, 7
    %1547 = vset.pattern.permute.xlu0 %v1545
    %1548 = vperm.xlu0 %1547, %v1543
    %v1549 = vpop.permute.xlu0 %1548
    %v1550 = vlaneseq
    %v1551 = vshrl.u32 %v1550, 7
    %v1552 = vadd.s32 %v1551, 8
    %1553 = vset.pattern.permute.xlu0 %v1552
    %1554 = vperm.xlu0 %1553, %v1543
    %v1555 = vpop.permute.xlu0 %1554
    %v1556 = vlaneseq
    %v1557 = vshrl.u32 %v1556, 7
    %v1558 = vadd.s32 %v1557, 16
    %1559 = vset.pattern.permute.xlu0 %v1558
    %1560 = vperm.xlu0 %1559, %v1543
    %v1561 = vpop.permute.xlu0 %1560
    %v1562 = vlaneseq
    %v1563 = vshrl.u32 %v1562, 7
    %v1564 = vadd.s32 %v1563, 24
    %1565 = vset.pattern.permute.xlu0 %v1564
    %1566 = vperm.xlu0 %1565, %v1543
    %v1567 = vpop.permute.xlu0 %1566
    %v1568 = vperm.slane %v73, 6
    %v1569 = vlaneseq
    %v1570 = vshrl.u32 %v1569, 7
    %1572 = vset.pattern.permute.xlu0 %v1570
    %1573 = vperm.xlu0 %1572, %v1568
    %v1574 = vpop.permute.xlu0 %1573
    %v1575 = vlaneseq
    %v1576 = vshrl.u32 %v1575, 7
    %v1577 = vadd.s32 %v1576, 8
    %1578 = vset.pattern.permute.xlu0 %v1577
    %1579 = vperm.xlu0 %1578, %v1568
    %v1580 = vpop.permute.xlu0 %1579
    %v1581 = vlaneseq
    %v1582 = vshrl.u32 %v1581, 7
    %v1583 = vadd.s32 %v1582, 16
    %1584 = vset.pattern.permute.xlu0 %v1583
    %1585 = vperm.xlu0 %1584, %v1568
    %v1586 = vpop.permute.xlu0 %1585
    %v1587 = vlaneseq
    %v1588 = vshrl.u32 %v1587, 7
    %v1589 = vadd.s32 %v1588, 24
    %1590 = vset.pattern.permute.xlu0 %v1589
    %1591 = vperm.xlu0 %1590, %v1568
    %v1592 = vpop.permute.xlu0 %1591
    %v1593 = vperm.slane %v73, 7
    %v1594 = vlaneseq
    %v1595 = vshrl.u32 %v1594, 7
    %1597 = vset.pattern.permute.xlu0 %v1595
    %1598 = vperm.xlu0 %1597, %v1593
    %v1599 = vpop.permute.xlu0 %1598
    %v1600 = vlaneseq
    %v1601 = vshrl.u32 %v1600, 7
    %v1602 = vadd.s32 %v1601, 8
    %1603 = vset.pattern.permute.xlu0 %v1602
    %1604 = vperm.xlu0 %1603, %v1593
    %v1605 = vpop.permute.xlu0 %1604
    %v1606 = vlaneseq
    %v1607 = vshrl.u32 %v1606, 7
    %v1608 = vadd.s32 %v1607, 16
    %1609 = vset.pattern.permute.xlu0 %v1608
    %1610 = vperm.xlu0 %1609, %v1593
    %v1611 = vpop.permute.xlu0 %1610
    %v1612 = vlaneseq
    %v1613 = vshrl.u32 %v1612, 7
    %v1614 = vadd.s32 %v1613, 24
    %1615 = vset.pattern.permute.xlu0 %v1614
    %1616 = vperm.xlu0 %1615, %v1593
    %v1617 = vpop.permute.xlu0 %1616
    %v1618 = vperm.slane %v74, 0
    %v1619 = vlaneseq
    %v1620 = vshrl.u32 %v1619, 7
    %1622 = vset.pattern.permute.xlu0 %v1620
    %1623 = vperm.xlu0 %1622, %v1618
    %v1624 = vpop.permute.xlu0 %1623
    %v1625 = vlaneseq
    %v1626 = vshrl.u32 %v1625, 7
    %v1627 = vadd.s32 %v1626, 8
    %1628 = vset.pattern.permute.xlu0 %v1627
    %1629 = vperm.xlu0 %1628, %v1618
    %v1630 = vpop.permute.xlu0 %1629
    %v1631 = vlaneseq
    %v1632 = vshrl.u32 %v1631, 7
    %v1633 = vadd.s32 %v1632, 16
    %1634 = vset.pattern.permute.xlu0 %v1633
    %1635 = vperm.xlu0 %1634, %v1618
    %v1636 = vpop.permute.xlu0 %1635
    %v1637 = vlaneseq
    %v1638 = vshrl.u32 %v1637, 7
    %v1639 = vadd.s32 %v1638, 24
    %1640 = vset.pattern.permute.xlu0 %v1639
    %1641 = vperm.xlu0 %1640, %v1618
    %v1642 = vpop.permute.xlu0 %1641
    %v1643 = vperm.slane %v74, 1
    %v1644 = vlaneseq
    %v1645 = vshrl.u32 %v1644, 7
    %1647 = vset.pattern.permute.xlu0 %v1645
    %1648 = vperm.xlu0 %1647, %v1643
    %v1649 = vpop.permute.xlu0 %1648
    %v1650 = vlaneseq
    %v1651 = vshrl.u32 %v1650, 7
    %v1652 = vadd.s32 %v1651, 8
    %1653 = vset.pattern.permute.xlu0 %v1652
    %1654 = vperm.xlu0 %1653, %v1643
    %v1655 = vpop.permute.xlu0 %1654
    %v1656 = vlaneseq
    %v1657 = vshrl.u32 %v1656, 7
    %v1658 = vadd.s32 %v1657, 16
    %1659 = vset.pattern.permute.xlu0 %v1658
    %1660 = vperm.xlu0 %1659, %v1643
    %v1661 = vpop.permute.xlu0 %1660
    %v1662 = vlaneseq
    %v1663 = vshrl.u32 %v1662, 7
    %v1664 = vadd.s32 %v1663, 24
    %1665 = vset.pattern.permute.xlu0 %v1664
    %1666 = vperm.xlu0 %1665, %v1643
    %v1667 = vpop.permute.xlu0 %1666
    %v1668 = vperm.slane %v74, 2
    %v1669 = vlaneseq
    %v1670 = vshrl.u32 %v1669, 7
    %1672 = vset.pattern.permute.xlu0 %v1670
    %1673 = vperm.xlu0 %1672, %v1668
    %v1674 = vpop.permute.xlu0 %1673
    %v1675 = vlaneseq
    %v1676 = vshrl.u32 %v1675, 7
    %v1677 = vadd.s32 %v1676, 8
    %1678 = vset.pattern.permute.xlu0 %v1677
    %1679 = vperm.xlu0 %1678, %v1668
    %v1680 = vpop.permute.xlu0 %1679
    %v1681 = vlaneseq
    %v1682 = vshrl.u32 %v1681, 7
    %v1683 = vadd.s32 %v1682, 16
    %1684 = vset.pattern.permute.xlu0 %v1683
    %1685 = vperm.xlu0 %1684, %v1668
    %v1686 = vpop.permute.xlu0 %1685
    %v1687 = vlaneseq
    %v1688 = vshrl.u32 %v1687, 7
    %v1689 = vadd.s32 %v1688, 24
    %1690 = vset.pattern.permute.xlu0 %v1689
    %1691 = vperm.xlu0 %1690, %v1668
    %v1692 = vpop.permute.xlu0 %1691
    %v1693 = vperm.slane %v74, 3
    %v1694 = vlaneseq
    %v1695 = vshrl.u32 %v1694, 7
    %1697 = vset.pattern.permute.xlu0 %v1695
    %1698 = vperm.xlu0 %1697, %v1693
    %v1699 = vpop.permute.xlu0 %1698
    %v1700 = vlaneseq
    %v1701 = vshrl.u32 %v1700, 7
    %v1702 = vadd.s32 %v1701, 8
    %1703 = vset.pattern.permute.xlu0 %v1702
    %1704 = vperm.xlu0 %1703, %v1693
    %v1705 = vpop.permute.xlu0 %1704
    %v1706 = vlaneseq
    %v1707 = vshrl.u32 %v1706, 7
    %v1708 = vadd.s32 %v1707, 16
    %1709 = vset.pattern.permute.xlu0 %v1708
    %1710 = vperm.xlu0 %1709, %v1693
    %v1711 = vpop.permute.xlu0 %1710
    %v1712 = vlaneseq
    %v1713 = vshrl.u32 %v1712, 7
    %v1714 = vadd.s32 %v1713, 24
    %1715 = vset.pattern.permute.xlu0 %v1714
    %1716 = vperm.xlu0 %1715, %v1693
    %v1717 = vpop.permute.xlu0 %1716
    %v1718 = vperm.slane %v74, 4
    %v1719 = vlaneseq
    %v1720 = vshrl.u32 %v1719, 7
    %1722 = vset.pattern.permute.xlu0 %v1720
    %1723 = vperm.xlu0 %1722, %v1718
    %v1724 = vpop.permute.xlu0 %1723
    %v1725 = vlaneseq
    %v1726 = vshrl.u32 %v1725, 7
    %v1727 = vadd.s32 %v1726, 8
    %1728 = vset.pattern.permute.xlu0 %v1727
    %1729 = vperm.xlu0 %1728, %v1718
    %v1730 = vpop.permute.xlu0 %1729
    %v1731 = vlaneseq
    %v1732 = vshrl.u32 %v1731, 7
    %v1733 = vadd.s32 %v1732, 16
    %1734 = vset.pattern.permute.xlu0 %v1733
    %1735 = vperm.xlu0 %1734, %v1718
    %v1736 = vpop.permute.xlu0 %1735
    %v1737 = vlaneseq
    %v1738 = vshrl.u32 %v1737, 7
    %v1739 = vadd.s32 %v1738, 24
    %1740 = vset.pattern.permute.xlu0 %v1739
    %1741 = vperm.xlu0 %1740, %v1718
    %v1742 = vpop.permute.xlu0 %1741
    %v1743 = vperm.slane %v74, 5
    %v1744 = vlaneseq
    %v1745 = vshrl.u32 %v1744, 7
    %1747 = vset.pattern.permute.xlu0 %v1745
    %1748 = vperm.xlu0 %1747, %v1743
    %v1749 = vpop.permute.xlu0 %1748
    %v1750 = vlaneseq
    %v1751 = vshrl.u32 %v1750, 7
    %v1752 = vadd.s32 %v1751, 8
    %1753 = vset.pattern.permute.xlu0 %v1752
    %1754 = vperm.xlu0 %1753, %v1743
    %v1755 = vpop.permute.xlu0 %1754
    %v1756 = vlaneseq
    %v1757 = vshrl.u32 %v1756, 7
    %v1758 = vadd.s32 %v1757, 16
    %1759 = vset.pattern.permute.xlu0 %v1758
    %1760 = vperm.xlu0 %1759, %v1743
    %v1761 = vpop.permute.xlu0 %1760
    %v1762 = vlaneseq
    %v1763 = vshrl.u32 %v1762, 7
    %v1764 = vadd.s32 %v1763, 24
    %1765 = vset.pattern.permute.xlu0 %v1764
    %1766 = vperm.xlu0 %1765, %v1743
    %v1767 = vpop.permute.xlu0 %1766
    %v1768 = vperm.slane %v74, 6
    %v1769 = vlaneseq
    %v1770 = vshrl.u32 %v1769, 7
    %1772 = vset.pattern.permute.xlu0 %v1770
    %1773 = vperm.xlu0 %1772, %v1768
    %v1774 = vpop.permute.xlu0 %1773
    %v1775 = vlaneseq
    %v1776 = vshrl.u32 %v1775, 7
    %v1777 = vadd.s32 %v1776, 8
    %1778 = vset.pattern.permute.xlu0 %v1777
    %1779 = vperm.xlu0 %1778, %v1768
    %v1780 = vpop.permute.xlu0 %1779
    %v1781 = vlaneseq
    %v1782 = vshrl.u32 %v1781, 7
    %v1783 = vadd.s32 %v1782, 16
    %1784 = vset.pattern.permute.xlu0 %v1783
    %1785 = vperm.xlu0 %1784, %v1768
    %v1786 = vpop.permute.xlu0 %1785
    %v1787 = vlaneseq
    %v1788 = vshrl.u32 %v1787, 7
    %v1789 = vadd.s32 %v1788, 24
    %1790 = vset.pattern.permute.xlu0 %v1789
    %1791 = vperm.xlu0 %1790, %v1768
    %v1792 = vpop.permute.xlu0 %1791
    %v1793 = vperm.slane %v74, 7
    %v1794 = vlaneseq
    %v1795 = vshrl.u32 %v1794, 7
    %1797 = vset.pattern.permute.xlu0 %v1795
    %1798 = vperm.xlu0 %1797, %v1793
    %v1799 = vpop.permute.xlu0 %1798
    %v1800 = vlaneseq
    %v1801 = vshrl.u32 %v1800, 7
    %v1802 = vadd.s32 %v1801, 8
    %1803 = vset.pattern.permute.xlu0 %v1802
    %1804 = vperm.xlu0 %1803, %v1793
    %v1805 = vpop.permute.xlu0 %1804
    %v1806 = vlaneseq
    %v1807 = vshrl.u32 %v1806, 7
    %v1808 = vadd.s32 %v1807, 16
    %1809 = vset.pattern.permute.xlu0 %v1808
    %1810 = vperm.xlu0 %1809, %v1793
    %v1811 = vpop.permute.xlu0 %1810
    %v1812 = vlaneseq
    %v1813 = vshrl.u32 %v1812, 7
    %v1814 = vadd.s32 %v1813, 24
    %1815 = vset.pattern.permute.xlu0 %v1814
    %1816 = vperm.xlu0 %1815, %v1793
    %v1817 = vpop.permute.xlu0 %1816
    %v1818 = vperm.slane %v75, 0
    %v1819 = vlaneseq
    %v1820 = vshrl.u32 %v1819, 7
    %1822 = vset.pattern.permute.xlu0 %v1820
    %1823 = vperm.xlu0 %1822, %v1818
    %v1824 = vpop.permute.xlu0 %1823
    %v1825 = vlaneseq
    %v1826 = vshrl.u32 %v1825, 7
    %v1827 = vadd.s32 %v1826, 8
    %1828 = vset.pattern.permute.xlu0 %v1827
    %1829 = vperm.xlu0 %1828, %v1818
    %v1830 = vpop.permute.xlu0 %1829
    %v1831 = vlaneseq
    %v1832 = vshrl.u32 %v1831, 7
    %v1833 = vadd.s32 %v1832, 16
    %1834 = vset.pattern.permute.xlu0 %v1833
    %1835 = vperm.xlu0 %1834, %v1818
    %v1836 = vpop.permute.xlu0 %1835
    %v1837 = vlaneseq
    %v1838 = vshrl.u32 %v1837, 7
    %v1839 = vadd.s32 %v1838, 24
    %1840 = vset.pattern.permute.xlu0 %v1839
    %1841 = vperm.xlu0 %1840, %v1818
    %v1842 = vpop.permute.xlu0 %1841
    %v1843 = vperm.slane %v75, 1
    %v1844 = vlaneseq
    %v1845 = vshrl.u32 %v1844, 7
    %1847 = vset.pattern.permute.xlu0 %v1845
    %1848 = vperm.xlu0 %1847, %v1843
    %v1849 = vpop.permute.xlu0 %1848
    %v1850 = vlaneseq
    %v1851 = vshrl.u32 %v1850, 7
    %v1852 = vadd.s32 %v1851, 8
    %1853 = vset.pattern.permute.xlu0 %v1852
    %1854 = vperm.xlu0 %1853, %v1843
    %v1855 = vpop.permute.xlu0 %1854
    %v1856 = vlaneseq
    %v1857 = vshrl.u32 %v1856, 7
    %v1858 = vadd.s32 %v1857, 16
    %1859 = vset.pattern.permute.xlu0 %v1858
    %1860 = vperm.xlu0 %1859, %v1843
    %v1861 = vpop.permute.xlu0 %1860
    %v1862 = vlaneseq
    %v1863 = vshrl.u32 %v1862, 7
    %v1864 = vadd.s32 %v1863, 24
    %1865 = vset.pattern.permute.xlu0 %v1864
    %1866 = vperm.xlu0 %1865, %v1843
    %v1867 = vpop.permute.xlu0 %1866
    %v1868 = vperm.slane %v75, 2
    %v1869 = vlaneseq
    %v1870 = vshrl.u32 %v1869, 7
    %1872 = vset.pattern.permute.xlu0 %v1870
    %1873 = vperm.xlu0 %1872, %v1868
    %v1874 = vpop.permute.xlu0 %1873
    %v1875 = vlaneseq
    %v1876 = vshrl.u32 %v1875, 7
    %v1877 = vadd.s32 %v1876, 8
    %1878 = vset.pattern.permute.xlu0 %v1877
    %1879 = vperm.xlu0 %1878, %v1868
    %v1880 = vpop.permute.xlu0 %1879
    %v1881 = vlaneseq
    %v1882 = vshrl.u32 %v1881, 7
    %v1883 = vadd.s32 %v1882, 16
    %1884 = vset.pattern.permute.xlu0 %v1883
    %1885 = vperm.xlu0 %1884, %v1868
    %v1886 = vpop.permute.xlu0 %1885
    %v1887 = vlaneseq
    %v1888 = vshrl.u32 %v1887, 7
    %v1889 = vadd.s32 %v1888, 24
    %1890 = vset.pattern.permute.xlu0 %v1889
    %1891 = vperm.xlu0 %1890, %v1868
    %v1892 = vpop.permute.xlu0 %1891
    %v1893 = vperm.slane %v75, 3
    %v1894 = vlaneseq
    %v1895 = vshrl.u32 %v1894, 7
    %1897 = vset.pattern.permute.xlu0 %v1895
    %1898 = vperm.xlu0 %1897, %v1893
    %v1899 = vpop.permute.xlu0 %1898
    %v1900 = vlaneseq
    %v1901 = vshrl.u32 %v1900, 7
    %v1902 = vadd.s32 %v1901, 8
    %1903 = vset.pattern.permute.xlu0 %v1902
    %1904 = vperm.xlu0 %1903, %v1893
    %v1905 = vpop.permute.xlu0 %1904
    %v1906 = vlaneseq
    %v1907 = vshrl.u32 %v1906, 7
    %v1908 = vadd.s32 %v1907, 16
    %1909 = vset.pattern.permute.xlu0 %v1908
    %1910 = vperm.xlu0 %1909, %v1893
    %v1911 = vpop.permute.xlu0 %1910
    %v1912 = vlaneseq
    %v1913 = vshrl.u32 %v1912, 7
    %v1914 = vadd.s32 %v1913, 24
    %1915 = vset.pattern.permute.xlu0 %v1914
    %1916 = vperm.xlu0 %1915, %v1893
    %v1917 = vpop.permute.xlu0 %1916
    %v1918 = vperm.slane %v75, 4
    %v1919 = vlaneseq
    %v1920 = vshrl.u32 %v1919, 7
    %1922 = vset.pattern.permute.xlu0 %v1920
    %1923 = vperm.xlu0 %1922, %v1918
    %v1924 = vpop.permute.xlu0 %1923
    %v1925 = vlaneseq
    %v1926 = vshrl.u32 %v1925, 7
    %v1927 = vadd.s32 %v1926, 8
    %1928 = vset.pattern.permute.xlu0 %v1927
    %1929 = vperm.xlu0 %1928, %v1918
    %v1930 = vpop.permute.xlu0 %1929
    %v1931 = vlaneseq
    %v1932 = vshrl.u32 %v1931, 7
    %v1933 = vadd.s32 %v1932, 16
    %1934 = vset.pattern.permute.xlu0 %v1933
    %1935 = vperm.xlu0 %1934, %v1918
    %v1936 = vpop.permute.xlu0 %1935
    %v1937 = vlaneseq
    %v1938 = vshrl.u32 %v1937, 7
    %v1939 = vadd.s32 %v1938, 24
    %1940 = vset.pattern.permute.xlu0 %v1939
    %1941 = vperm.xlu0 %1940, %v1918
    %v1942 = vpop.permute.xlu0 %1941
    %v1943 = vperm.slane %v75, 5
    %v1944 = vlaneseq
    %v1945 = vshrl.u32 %v1944, 7
    %1947 = vset.pattern.permute.xlu0 %v1945
    %1948 = vperm.xlu0 %1947, %v1943
    %v1949 = vpop.permute.xlu0 %1948
    %v1950 = vlaneseq
    %v1951 = vshrl.u32 %v1950, 7
    %v1952 = vadd.s32 %v1951, 8
    %1953 = vset.pattern.permute.xlu0 %v1952
    %1954 = vperm.xlu0 %1953, %v1943
    %v1955 = vpop.permute.xlu0 %1954
    %v1956 = vlaneseq
    %v1957 = vshrl.u32 %v1956, 7
    %v1958 = vadd.s32 %v1957, 16
    %1959 = vset.pattern.permute.xlu0 %v1958
    %1960 = vperm.xlu0 %1959, %v1943
    %v1961 = vpop.permute.xlu0 %1960
    %v1962 = vlaneseq
    %v1963 = vshrl.u32 %v1962, 7
    %v1964 = vadd.s32 %v1963, 24
    %1965 = vset.pattern.permute.xlu0 %v1964
    %1966 = vperm.xlu0 %1965, %v1943
    %v1967 = vpop.permute.xlu0 %1966
    %v1968 = vperm.slane %v75, 6
    %v1969 = vlaneseq
    %v1970 = vshrl.u32 %v1969, 7
    %1972 = vset.pattern.permute.xlu0 %v1970
    %1973 = vperm.xlu0 %1972, %v1968
    %v1974 = vpop.permute.xlu0 %1973
    %v1975 = vlaneseq
    %v1976 = vshrl.u32 %v1975, 7
    %v1977 = vadd.s32 %v1976, 8
    %1978 = vset.pattern.permute.xlu0 %v1977
    %1979 = vperm.xlu0 %1978, %v1968
    %v1980 = vpop.permute.xlu0 %1979
    %v1981 = vlaneseq
    %v1982 = vshrl.u32 %v1981, 7
    %v1983 = vadd.s32 %v1982, 16
    %1984 = vset.pattern.permute.xlu0 %v1983
    %1985 = vperm.xlu0 %1984, %v1968
    %v1986 = vpop.permute.xlu0 %1985
    %v1987 = vlaneseq
    %v1988 = vshrl.u32 %v1987, 7
    %v1989 = vadd.s32 %v1988, 24
    %1990 = vset.pattern.permute.xlu0 %v1989
    %1991 = vperm.xlu0 %1990, %v1968
    %v1992 = vpop.permute.xlu0 %1991
    %v1993 = vperm.slane %v75, 7
    %v1994 = vlaneseq
    %v1995 = vshrl.u32 %v1994, 7
    %1997 = vset.pattern.permute.xlu0 %v1995
    %1998 = vperm.xlu0 %1997, %v1993
    %v1999 = vpop.permute.xlu0 %1998
    %v2000 = vlaneseq
    %v2001 = vshrl.u32 %v2000, 7
    %v2002 = vadd.s32 %v2001, 8
    %2003 = vset.pattern.permute.xlu0 %v2002
    %2004 = vperm.xlu0 %2003, %v1993
    %v2005 = vpop.permute.xlu0 %2004
    %v2006 = vlaneseq
    %v2007 = vshrl.u32 %v2006, 7
    %v2008 = vadd.s32 %v2007, 16
    %2009 = vset.pattern.permute.xlu0 %v2008
    %2010 = vperm.xlu0 %2009, %v1993
    %v2011 = vpop.permute.xlu0 %2010
    %v2012 = vlaneseq
    %v2013 = vshrl.u32 %v2012, 7
    %v2014 = vadd.s32 %v2013, 24
    %2015 = vset.pattern.permute.xlu0 %v2014
    %2016 = vperm.xlu0 %2015, %v1993
    %v2017 = vpop.permute.xlu0 %2016
    %v2018 = vperm.slane %v76, 0
    %v2019 = vlaneseq
    %v2020 = vshrl.u32 %v2019, 7
    %2022 = vset.pattern.permute.xlu0 %v2020
    %2023 = vperm.xlu0 %2022, %v2018
    %v2024 = vpop.permute.xlu0 %2023
    %v2025 = vlaneseq
    %v2026 = vshrl.u32 %v2025, 7
    %v2027 = vadd.s32 %v2026, 8
    %2028 = vset.pattern.permute.xlu0 %v2027
    %2029 = vperm.xlu0 %2028, %v2018
    %v2030 = vpop.permute.xlu0 %2029
    %v2031 = vlaneseq
    %v2032 = vshrl.u32 %v2031, 7
    %v2033 = vadd.s32 %v2032, 16
    %2034 = vset.pattern.permute.xlu0 %v2033
    %2035 = vperm.xlu0 %2034, %v2018
    %v2036 = vpop.permute.xlu0 %2035
    %v2037 = vlaneseq
    %v2038 = vshrl.u32 %v2037, 7
    %v2039 = vadd.s32 %v2038, 24
    %2040 = vset.pattern.permute.xlu0 %v2039
    %2041 = vperm.xlu0 %2040, %v2018
    %v2042 = vpop.permute.xlu0 %2041
    %v2043 = vperm.slane %v76, 1
    %v2044 = vlaneseq
    %v2045 = vshrl.u32 %v2044, 7
    %2047 = vset.pattern.permute.xlu0 %v2045
    %2048 = vperm.xlu0 %2047, %v2043
    %v2049 = vpop.permute.xlu0 %2048
    %v2050 = vlaneseq
    %v2051 = vshrl.u32 %v2050, 7
    %v2052 = vadd.s32 %v2051, 8
    %2053 = vset.pattern.permute.xlu0 %v2052
    %2054 = vperm.xlu0 %2053, %v2043
    %v2055 = vpop.permute.xlu0 %2054
    %v2056 = vlaneseq
    %v2057 = vshrl.u32 %v2056, 7
    %v2058 = vadd.s32 %v2057, 16
    %2059 = vset.pattern.permute.xlu0 %v2058
    %2060 = vperm.xlu0 %2059, %v2043
    %v2061 = vpop.permute.xlu0 %2060
    %v2062 = vlaneseq
    %v2063 = vshrl.u32 %v2062, 7
    %v2064 = vadd.s32 %v2063, 24
    %2065 = vset.pattern.permute.xlu0 %v2064
    %2066 = vperm.xlu0 %2065, %v2043
    %v2067 = vpop.permute.xlu0 %2066
    %v2068 = vperm.slane %v76, 2
    %v2069 = vlaneseq
    %v2070 = vshrl.u32 %v2069, 7
    %2072 = vset.pattern.permute.xlu0 %v2070
    %2073 = vperm.xlu0 %2072, %v2068
    %v2074 = vpop.permute.xlu0 %2073
    %v2075 = vlaneseq
    %v2076 = vshrl.u32 %v2075, 7
    %v2077 = vadd.s32 %v2076, 8
    %2078 = vset.pattern.permute.xlu0 %v2077
    %2079 = vperm.xlu0 %2078, %v2068
    %v2080 = vpop.permute.xlu0 %2079
    %v2081 = vlaneseq
    %v2082 = vshrl.u32 %v2081, 7
    %v2083 = vadd.s32 %v2082, 16
    %2084 = vset.pattern.permute.xlu0 %v2083
    %2085 = vperm.xlu0 %2084, %v2068
    %v2086 = vpop.permute.xlu0 %2085
    %v2087 = vlaneseq
    %v2088 = vshrl.u32 %v2087, 7
    %v2089 = vadd.s32 %v2088, 24
    %2090 = vset.pattern.permute.xlu0 %v2089
    %2091 = vperm.xlu0 %2090, %v2068
    %v2092 = vpop.permute.xlu0 %2091
    %v2093 = vperm.slane %v76, 3
    %v2094 = vlaneseq
    %v2095 = vshrl.u32 %v2094, 7
    %2097 = vset.pattern.permute.xlu0 %v2095
    %2098 = vperm.xlu0 %2097, %v2093
    %v2099 = vpop.permute.xlu0 %2098
    %v2100 = vlaneseq
    %v2101 = vshrl.u32 %v2100, 7
    %v2102 = vadd.s32 %v2101, 8
    %2103 = vset.pattern.permute.xlu0 %v2102
    %2104 = vperm.xlu0 %2103, %v2093
    %v2105 = vpop.permute.xlu0 %2104
    %v2106 = vlaneseq
    %v2107 = vshrl.u32 %v2106, 7
    %v2108 = vadd.s32 %v2107, 16
    %2109 = vset.pattern.permute.xlu0 %v2108
    %2110 = vperm.xlu0 %2109, %v2093
    %v2111 = vpop.permute.xlu0 %2110
    %v2112 = vlaneseq
    %v2113 = vshrl.u32 %v2112, 7
    %v2114 = vadd.s32 %v2113, 24
    %2115 = vset.pattern.permute.xlu0 %v2114
    %2116 = vperm.xlu0 %2115, %v2093
    %v2117 = vpop.permute.xlu0 %2116
    %v2118 = vperm.slane %v76, 4
    %v2119 = vlaneseq
    %v2120 = vshrl.u32 %v2119, 7
    %2122 = vset.pattern.permute.xlu0 %v2120
    %2123 = vperm.xlu0 %2122, %v2118
    %v2124 = vpop.permute.xlu0 %2123
    %v2125 = vlaneseq
    %v2126 = vshrl.u32 %v2125, 7
    %v2127 = vadd.s32 %v2126, 8
    %2128 = vset.pattern.permute.xlu0 %v2127
    %2129 = vperm.xlu0 %2128, %v2118
    %v2130 = vpop.permute.xlu0 %2129
    %v2131 = vlaneseq
    %v2132 = vshrl.u32 %v2131, 7
    %v2133 = vadd.s32 %v2132, 16
    %2134 = vset.pattern.permute.xlu0 %v2133
    %2135 = vperm.xlu0 %2134, %v2118
    %v2136 = vpop.permute.xlu0 %2135
    %v2137 = vlaneseq
    %v2138 = vshrl.u32 %v2137, 7
    %v2139 = vadd.s32 %v2138, 24
    %2140 = vset.pattern.permute.xlu0 %v2139
    %2141 = vperm.xlu0 %2140, %v2118
    %v2142 = vpop.permute.xlu0 %2141
    %v2143 = vperm.slane %v76, 5
    %v2144 = vlaneseq
    %v2145 = vshrl.u32 %v2144, 7
    %2147 = vset.pattern.permute.xlu0 %v2145
    %2148 = vperm.xlu0 %2147, %v2143
    %v2149 = vpop.permute.xlu0 %2148
    %v2150 = vlaneseq
    %v2151 = vshrl.u32 %v2150, 7
    %v2152 = vadd.s32 %v2151, 8
    %2153 = vset.pattern.permute.xlu0 %v2152
    %2154 = vperm.xlu0 %2153, %v2143
    %v2155 = vpop.permute.xlu0 %2154
    %v2156 = vlaneseq
    %v2157 = vshrl.u32 %v2156, 7
    %v2158 = vadd.s32 %v2157, 16
    %2159 = vset.pattern.permute.xlu0 %v2158
    %2160 = vperm.xlu0 %2159, %v2143
    %v2161 = vpop.permute.xlu0 %2160
    %v2162 = vlaneseq
    %v2163 = vshrl.u32 %v2162, 7
    %v2164 = vadd.s32 %v2163, 24
    %2165 = vset.pattern.permute.xlu0 %v2164
    %2166 = vperm.xlu0 %2165, %v2143
    %v2167 = vpop.permute.xlu0 %2166
    %v2168 = vperm.slane %v76, 6
    %v2169 = vlaneseq
    %v2170 = vshrl.u32 %v2169, 7
    %2172 = vset.pattern.permute.xlu0 %v2170
    %2173 = vperm.xlu0 %2172, %v2168
    %v2174 = vpop.permute.xlu0 %2173
    %v2175 = vlaneseq
    %v2176 = vshrl.u32 %v2175, 7
    %v2177 = vadd.s32 %v2176, 8
    %2178 = vset.pattern.permute.xlu0 %v2177
    %2179 = vperm.xlu0 %2178, %v2168
    %v2180 = vpop.permute.xlu0 %2179
    %v2181 = vlaneseq
    %v2182 = vshrl.u32 %v2181, 7
    %v2183 = vadd.s32 %v2182, 16
    %2184 = vset.pattern.permute.xlu0 %v2183
    %2185 = vperm.xlu0 %2184, %v2168
    %v2186 = vpop.permute.xlu0 %2185
    %v2187 = vlaneseq
    %v2188 = vshrl.u32 %v2187, 7
    %v2189 = vadd.s32 %v2188, 24
    %2190 = vset.pattern.permute.xlu0 %v2189
    %2191 = vperm.xlu0 %2190, %v2168
    %v2192 = vpop.permute.xlu0 %2191
    %v2193 = vperm.slane %v76, 7
    %v2194 = vlaneseq
    %v2195 = vshrl.u32 %v2194, 7
    %2197 = vset.pattern.permute.xlu0 %v2195
    %2198 = vperm.xlu0 %2197, %v2193
    %v2199 = vpop.permute.xlu0 %2198
    %v2200 = vlaneseq
    %v2201 = vshrl.u32 %v2200, 7
    %v2202 = vadd.s32 %v2201, 8
    %2203 = vset.pattern.permute.xlu0 %v2202
    %2204 = vperm.xlu0 %2203, %v2193
    %v2205 = vpop.permute.xlu0 %2204
    %v2206 = vlaneseq
    %v2207 = vshrl.u32 %v2206, 7
    %v2208 = vadd.s32 %v2207, 16
    %2209 = vset.pattern.permute.xlu0 %v2208
    %2210 = vperm.xlu0 %2209, %v2193
    %v2211 = vpop.permute.xlu0 %2210
    %v2212 = vlaneseq
    %v2213 = vshrl.u32 %v2212, 7
    %v2214 = vadd.s32 %v2213, 24
    %2215 = vset.pattern.permute.xlu0 %v2214
    %2216 = vperm.xlu0 %2215, %v2193
    %v2217 = vpop.permute.xlu0 %2216
    %v2218 = vperm.slane %v77, 0
    %v2219 = vlaneseq
    %v2220 = vshrl.u32 %v2219, 7
    %2222 = vset.pattern.permute.xlu0 %v2220
    %2223 = vperm.xlu0 %2222, %v2218
    %v2224 = vpop.permute.xlu0 %2223
    %v2225 = vlaneseq
    %v2226 = vshrl.u32 %v2225, 7
    %v2227 = vadd.s32 %v2226, 8
    %2228 = vset.pattern.permute.xlu0 %v2227
    %2229 = vperm.xlu0 %2228, %v2218
    %v2230 = vpop.permute.xlu0 %2229
    %v2231 = vlaneseq
    %v2232 = vshrl.u32 %v2231, 7
    %v2233 = vadd.s32 %v2232, 16
    %2234 = vset.pattern.permute.xlu0 %v2233
    %2235 = vperm.xlu0 %2234, %v2218
    %v2236 = vpop.permute.xlu0 %2235
    %v2237 = vlaneseq
    %v2238 = vshrl.u32 %v2237, 7
    %v2239 = vadd.s32 %v2238, 24
    %2240 = vset.pattern.permute.xlu0 %v2239
    %2241 = vperm.xlu0 %2240, %v2218
    %v2242 = vpop.permute.xlu0 %2241
    %v2243 = vperm.slane %v77, 1
    %v2244 = vlaneseq
    %v2245 = vshrl.u32 %v2244, 7
    %2247 = vset.pattern.permute.xlu0 %v2245
    %2248 = vperm.xlu0 %2247, %v2243
    %v2249 = vpop.permute.xlu0 %2248
    %v2250 = vlaneseq
    %v2251 = vshrl.u32 %v2250, 7
    %v2252 = vadd.s32 %v2251, 8
    %2253 = vset.pattern.permute.xlu0 %v2252
    %2254 = vperm.xlu0 %2253, %v2243
    %v2255 = vpop.permute.xlu0 %2254
    %v2256 = vlaneseq
    %v2257 = vshrl.u32 %v2256, 7
    %v2258 = vadd.s32 %v2257, 16
    %2259 = vset.pattern.permute.xlu0 %v2258
    %2260 = vperm.xlu0 %2259, %v2243
    %v2261 = vpop.permute.xlu0 %2260
    %v2262 = vlaneseq
    %v2263 = vshrl.u32 %v2262, 7
    %v2264 = vadd.s32 %v2263, 24
    %2265 = vset.pattern.permute.xlu0 %v2264
    %2266 = vperm.xlu0 %2265, %v2243
    %v2267 = vpop.permute.xlu0 %2266
    %v2268 = vperm.slane %v77, 2
    %v2269 = vlaneseq
    %v2270 = vshrl.u32 %v2269, 7
    %2272 = vset.pattern.permute.xlu0 %v2270
    %2273 = vperm.xlu0 %2272, %v2268
    %v2274 = vpop.permute.xlu0 %2273
    %v2275 = vlaneseq
    %v2276 = vshrl.u32 %v2275, 7
    %v2277 = vadd.s32 %v2276, 8
    %2278 = vset.pattern.permute.xlu0 %v2277
    %2279 = vperm.xlu0 %2278, %v2268
    %v2280 = vpop.permute.xlu0 %2279
    %v2281 = vlaneseq
    %v2282 = vshrl.u32 %v2281, 7
    %v2283 = vadd.s32 %v2282, 16
    %2284 = vset.pattern.permute.xlu0 %v2283
    %2285 = vperm.xlu0 %2284, %v2268
    %v2286 = vpop.permute.xlu0 %2285
    %v2287 = vlaneseq
    %v2288 = vshrl.u32 %v2287, 7
    %v2289 = vadd.s32 %v2288, 24
    %2290 = vset.pattern.permute.xlu0 %v2289
    %2291 = vperm.xlu0 %2290, %v2268
    %v2292 = vpop.permute.xlu0 %2291
    %v2293 = vperm.slane %v77, 3
    %v2294 = vlaneseq
    %v2295 = vshrl.u32 %v2294, 7
    %2297 = vset.pattern.permute.xlu0 %v2295
    %2298 = vperm.xlu0 %2297, %v2293
    %v2299 = vpop.permute.xlu0 %2298
    %v2300 = vlaneseq
    %v2301 = vshrl.u32 %v2300, 7
    %v2302 = vadd.s32 %v2301, 8
    %2303 = vset.pattern.permute.xlu0 %v2302
    %2304 = vperm.xlu0 %2303, %v2293
    %v2305 = vpop.permute.xlu0 %2304
    %v2306 = vlaneseq
    %v2307 = vshrl.u32 %v2306, 7
    %v2308 = vadd.s32 %v2307, 16
    %2309 = vset.pattern.permute.xlu0 %v2308
    %2310 = vperm.xlu0 %2309, %v2293
    %v2311 = vpop.permute.xlu0 %2310
    %v2312 = vlaneseq
    %v2313 = vshrl.u32 %v2312, 7
    %v2314 = vadd.s32 %v2313, 24
    %2315 = vset.pattern.permute.xlu0 %v2314
    %2316 = vperm.xlu0 %2315, %v2293
    %v2317 = vpop.permute.xlu0 %2316
    %v2318 = vperm.slane %v77, 4
    %v2319 = vlaneseq
    %v2320 = vshrl.u32 %v2319, 7
    %2322 = vset.pattern.permute.xlu0 %v2320
    %2323 = vperm.xlu0 %2322, %v2318
    %v2324 = vpop.permute.xlu0 %2323
    %v2325 = vlaneseq
    %v2326 = vshrl.u32 %v2325, 7
    %v2327 = vadd.s32 %v2326, 8
    %2328 = vset.pattern.permute.xlu0 %v2327
    %2329 = vperm.xlu0 %2328, %v2318
    %v2330 = vpop.permute.xlu0 %2329
    %v2331 = vlaneseq
    %v2332 = vshrl.u32 %v2331, 7
    %v2333 = vadd.s32 %v2332, 16
    %2334 = vset.pattern.permute.xlu0 %v2333
    %2335 = vperm.xlu0 %2334, %v2318
    %v2336 = vpop.permute.xlu0 %2335
    %v2337 = vlaneseq
    %v2338 = vshrl.u32 %v2337, 7
    %v2339 = vadd.s32 %v2338, 24
    %2340 = vset.pattern.permute.xlu0 %v2339
    %2341 = vperm.xlu0 %2340, %v2318
    %v2342 = vpop.permute.xlu0 %2341
    %v2343 = vperm.slane %v77, 5
    %v2344 = vlaneseq
    %v2345 = vshrl.u32 %v2344, 7
    %2347 = vset.pattern.permute.xlu0 %v2345
    %2348 = vperm.xlu0 %2347, %v2343
    %v2349 = vpop.permute.xlu0 %2348
    %v2350 = vlaneseq
    %v2351 = vshrl.u32 %v2350, 7
    %v2352 = vadd.s32 %v2351, 8
    %2353 = vset.pattern.permute.xlu0 %v2352
    %2354 = vperm.xlu0 %2353, %v2343
    %v2355 = vpop.permute.xlu0 %2354
    %v2356 = vlaneseq
    %v2357 = vshrl.u32 %v2356, 7
    %v2358 = vadd.s32 %v2357, 16
    %2359 = vset.pattern.permute.xlu0 %v2358
    %2360 = vperm.xlu0 %2359, %v2343
    %v2361 = vpop.permute.xlu0 %2360
    %v2362 = vlaneseq
    %v2363 = vshrl.u32 %v2362, 7
    %v2364 = vadd.s32 %v2363, 24
    %2365 = vset.pattern.permute.xlu0 %v2364
    %2366 = vperm.xlu0 %2365, %v2343
    %v2367 = vpop.permute.xlu0 %2366
    %v2368 = vperm.slane %v77, 6
    %v2369 = vlaneseq
    %v2370 = vshrl.u32 %v2369, 7
    %2372 = vset.pattern.permute.xlu0 %v2370
    %2373 = vperm.xlu0 %2372, %v2368
    %v2374 = vpop.permute.xlu0 %2373
    %v2375 = vlaneseq
    %v2376 = vshrl.u32 %v2375, 7
    %v2377 = vadd.s32 %v2376, 8
    %2378 = vset.pattern.permute.xlu0 %v2377
    %2379 = vperm.xlu0 %2378, %v2368
    %v2380 = vpop.permute.xlu0 %2379
    %v2381 = vlaneseq
    %v2382 = vshrl.u32 %v2381, 7
    %v2383 = vadd.s32 %v2382, 16
    %2384 = vset.pattern.permute.xlu0 %v2383
    %2385 = vperm.xlu0 %2384, %v2368
    %v2386 = vpop.permute.xlu0 %2385
    %v2387 = vlaneseq
    %v2388 = vshrl.u32 %v2387, 7
    %v2389 = vadd.s32 %v2388, 24
    %2390 = vset.pattern.permute.xlu0 %v2389
    %2391 = vperm.xlu0 %2390, %v2368
    %v2392 = vpop.permute.xlu0 %2391
    %v2393 = vperm.slane %v77, 7
    %v2394 = vlaneseq
    %v2395 = vshrl.u32 %v2394, 7
    %2397 = vset.pattern.permute.xlu0 %v2395
    %2398 = vperm.xlu0 %2397, %v2393
    %v2399 = vpop.permute.xlu0 %2398
    %v2400 = vlaneseq
    %v2401 = vshrl.u32 %v2400, 7
    %v2402 = vadd.s32 %v2401, 8
    %2403 = vset.pattern.permute.xlu0 %v2402
    %2404 = vperm.xlu0 %2403, %v2393
    %v2405 = vpop.permute.xlu0 %2404
    %v2406 = vlaneseq
    %v2407 = vshrl.u32 %v2406, 7
    %v2408 = vadd.s32 %v2407, 16
    %2409 = vset.pattern.permute.xlu0 %v2408
    %2410 = vperm.xlu0 %2409, %v2393
    %v2411 = vpop.permute.xlu0 %2410
    %v2412 = vlaneseq
    %v2413 = vshrl.u32 %v2412, 7
    %v2414 = vadd.s32 %v2413, 24
    %2415 = vset.pattern.permute.xlu0 %v2414
    %2416 = vperm.xlu0 %2415, %v2393
    %v2417 = vpop.permute.xlu0 %2416
    %v2418 = vperm.slane %v78, 0
    %v2419 = vlaneseq
    %v2420 = vshrl.u32 %v2419, 7
    %2422 = vset.pattern.permute.xlu0 %v2420
    %2423 = vperm.xlu0 %2422, %v2418
    %v2424 = vpop.permute.xlu0 %2423
    %v2425 = vlaneseq
    %v2426 = vshrl.u32 %v2425, 7
    %v2427 = vadd.s32 %v2426, 8
    %2428 = vset.pattern.permute.xlu0 %v2427
    %2429 = vperm.xlu0 %2428, %v2418
    %v2430 = vpop.permute.xlu0 %2429
    %v2431 = vlaneseq
    %v2432 = vshrl.u32 %v2431, 7
    %v2433 = vadd.s32 %v2432, 16
    %2434 = vset.pattern.permute.xlu0 %v2433
    %2435 = vperm.xlu0 %2434, %v2418
    %v2436 = vpop.permute.xlu0 %2435
    %v2437 = vlaneseq
    %v2438 = vshrl.u32 %v2437, 7
    %v2439 = vadd.s32 %v2438, 24
    %2440 = vset.pattern.permute.xlu0 %v2439
    %2441 = vperm.xlu0 %2440, %v2418
    %v2442 = vpop.permute.xlu0 %2441
    %v2443 = vperm.slane %v78, 1
    %v2444 = vlaneseq
    %v2445 = vshrl.u32 %v2444, 7
    %2447 = vset.pattern.permute.xlu0 %v2445
    %2448 = vperm.xlu0 %2447, %v2443
    %v2449 = vpop.permute.xlu0 %2448
    %v2450 = vlaneseq
    %v2451 = vshrl.u32 %v2450, 7
    %v2452 = vadd.s32 %v2451, 8
    %2453 = vset.pattern.permute.xlu0 %v2452
    %2454 = vperm.xlu0 %2453, %v2443
    %v2455 = vpop.permute.xlu0 %2454
    %v2456 = vlaneseq
    %v2457 = vshrl.u32 %v2456, 7
    %v2458 = vadd.s32 %v2457, 16
    %2459 = vset.pattern.permute.xlu0 %v2458
    %2460 = vperm.xlu0 %2459, %v2443
    %v2461 = vpop.permute.xlu0 %2460
    %v2462 = vlaneseq
    %v2463 = vshrl.u32 %v2462, 7
    %v2464 = vadd.s32 %v2463, 24
    %2465 = vset.pattern.permute.xlu0 %v2464
    %2466 = vperm.xlu0 %2465, %v2443
    %v2467 = vpop.permute.xlu0 %2466
    %v2468 = vperm.slane %v78, 2
    %v2469 = vlaneseq
    %v2470 = vshrl.u32 %v2469, 7
    %2472 = vset.pattern.permute.xlu0 %v2470
    %2473 = vperm.xlu0 %2472, %v2468
    %v2474 = vpop.permute.xlu0 %2473
    %v2475 = vlaneseq
    %v2476 = vshrl.u32 %v2475, 7
    %v2477 = vadd.s32 %v2476, 8
    %2478 = vset.pattern.permute.xlu0 %v2477
    %2479 = vperm.xlu0 %2478, %v2468
    %v2480 = vpop.permute.xlu0 %2479
    %v2481 = vlaneseq
    %v2482 = vshrl.u32 %v2481, 7
    %v2483 = vadd.s32 %v2482, 16
    %2484 = vset.pattern.permute.xlu0 %v2483
    %2485 = vperm.xlu0 %2484, %v2468
    %v2486 = vpop.permute.xlu0 %2485
    %v2487 = vlaneseq
    %v2488 = vshrl.u32 %v2487, 7
    %v2489 = vadd.s32 %v2488, 24
    %2490 = vset.pattern.permute.xlu0 %v2489
    %2491 = vperm.xlu0 %2490, %v2468
    %v2492 = vpop.permute.xlu0 %2491
    %v2493 = vperm.slane %v78, 3
    %v2494 = vlaneseq
    %v2495 = vshrl.u32 %v2494, 7
    %2497 = vset.pattern.permute.xlu0 %v2495
    %2498 = vperm.xlu0 %2497, %v2493
    %v2499 = vpop.permute.xlu0 %2498
    %v2500 = vlaneseq
    %v2501 = vshrl.u32 %v2500, 7
    %v2502 = vadd.s32 %v2501, 8
    %2503 = vset.pattern.permute.xlu0 %v2502
    %2504 = vperm.xlu0 %2503, %v2493
    %v2505 = vpop.permute.xlu0 %2504
    %v2506 = vlaneseq
    %v2507 = vshrl.u32 %v2506, 7
    %v2508 = vadd.s32 %v2507, 16
    %2509 = vset.pattern.permute.xlu0 %v2508
    %2510 = vperm.xlu0 %2509, %v2493
    %v2511 = vpop.permute.xlu0 %2510
    %v2512 = vlaneseq
    %v2513 = vshrl.u32 %v2512, 7
    %v2514 = vadd.s32 %v2513, 24
    %2515 = vset.pattern.permute.xlu0 %v2514
    %2516 = vperm.xlu0 %2515, %v2493
    %v2517 = vpop.permute.xlu0 %2516
    %v2518 = vperm.slane %v78, 4
    %v2519 = vlaneseq
    %v2520 = vshrl.u32 %v2519, 7
    %2522 = vset.pattern.permute.xlu0 %v2520
    %2523 = vperm.xlu0 %2522, %v2518
    %v2524 = vpop.permute.xlu0 %2523
    %v2525 = vlaneseq
    %v2526 = vshrl.u32 %v2525, 7
    %v2527 = vadd.s32 %v2526, 8
    %2528 = vset.pattern.permute.xlu0 %v2527
    %2529 = vperm.xlu0 %2528, %v2518
    %v2530 = vpop.permute.xlu0 %2529
    %v2531 = vlaneseq
    %v2532 = vshrl.u32 %v2531, 7
    %v2533 = vadd.s32 %v2532, 16
    %2534 = vset.pattern.permute.xlu0 %v2533
    %2535 = vperm.xlu0 %2534, %v2518
    %v2536 = vpop.permute.xlu0 %2535
    %v2537 = vlaneseq
    %v2538 = vshrl.u32 %v2537, 7
    %v2539 = vadd.s32 %v2538, 24
    %2540 = vset.pattern.permute.xlu0 %v2539
    %2541 = vperm.xlu0 %2540, %v2518
    %v2542 = vpop.permute.xlu0 %2541
    %v2543 = vperm.slane %v78, 5
    %v2544 = vlaneseq
    %v2545 = vshrl.u32 %v2544, 7
    %2547 = vset.pattern.permute.xlu0 %v2545
    %2548 = vperm.xlu0 %2547, %v2543
    %v2549 = vpop.permute.xlu0 %2548
    %v2550 = vlaneseq
    %v2551 = vshrl.u32 %v2550, 7
    %v2552 = vadd.s32 %v2551, 8
    %2553 = vset.pattern.permute.xlu0 %v2552
    %2554 = vperm.xlu0 %2553, %v2543
    %v2555 = vpop.permute.xlu0 %2554
    %v2556 = vlaneseq
    %v2557 = vshrl.u32 %v2556, 7
    %v2558 = vadd.s32 %v2557, 16
    %2559 = vset.pattern.permute.xlu0 %v2558
    %2560 = vperm.xlu0 %2559, %v2543
    %v2561 = vpop.permute.xlu0 %2560
    %v2562 = vlaneseq
    %v2563 = vshrl.u32 %v2562, 7
    %v2564 = vadd.s32 %v2563, 24
    %2565 = vset.pattern.permute.xlu0 %v2564
    %2566 = vperm.xlu0 %2565, %v2543
    %v2567 = vpop.permute.xlu0 %2566
    %v2568 = vperm.slane %v78, 6
    %v2569 = vlaneseq
    %v2570 = vshrl.u32 %v2569, 7
    %2572 = vset.pattern.permute.xlu0 %v2570
    %2573 = vperm.xlu0 %2572, %v2568
    %v2574 = vpop.permute.xlu0 %2573
    %v2575 = vlaneseq
    %v2576 = vshrl.u32 %v2575, 7
    %v2577 = vadd.s32 %v2576, 8
    %2578 = vset.pattern.permute.xlu0 %v2577
    %2579 = vperm.xlu0 %2578, %v2568
    %v2580 = vpop.permute.xlu0 %2579
    %v2581 = vlaneseq
    %v2582 = vshrl.u32 %v2581, 7
    %v2583 = vadd.s32 %v2582, 16
    %2584 = vset.pattern.permute.xlu0 %v2583
    %2585 = vperm.xlu0 %2584, %v2568
    %v2586 = vpop.permute.xlu0 %2585
    %v2587 = vlaneseq
    %v2588 = vshrl.u32 %v2587, 7
    %v2589 = vadd.s32 %v2588, 24
    %2590 = vset.pattern.permute.xlu0 %v2589
    %2591 = vperm.xlu0 %2590, %v2568
    %v2592 = vpop.permute.xlu0 %2591
    %v2593 = vperm.slane %v78, 7
    %v2594 = vlaneseq
    %v2595 = vshrl.u32 %v2594, 7
    %2597 = vset.pattern.permute.xlu0 %v2595
    %2598 = vperm.xlu0 %2597, %v2593
    %v2599 = vpop.permute.xlu0 %2598
    %v2600 = vlaneseq
    %v2601 = vshrl.u32 %v2600, 7
    %v2602 = vadd.s32 %v2601, 8
    %2603 = vset.pattern.permute.xlu0 %v2602
    %2604 = vperm.xlu0 %2603, %v2593
    %v2605 = vpop.permute.xlu0 %2604
    %v2606 = vlaneseq
    %v2607 = vshrl.u32 %v2606, 7
    %v2608 = vadd.s32 %v2607, 16
    %2609 = vset.pattern.permute.xlu0 %v2608
    %2610 = vperm.xlu0 %2609, %v2593
    %v2611 = vpop.permute.xlu0 %2610
    %v2612 = vlaneseq
    %v2613 = vshrl.u32 %v2612, 7
    %v2614 = vadd.s32 %v2613, 24
    %2615 = vset.pattern.permute.xlu0 %v2614
    %2616 = vperm.xlu0 %2615, %v2593
    %v2617 = vpop.permute.xlu0 %2616
    %v2618 = vperm.slane %v79, 0
    %v2619 = vlaneseq
    %v2620 = vshrl.u32 %v2619, 7
    %2622 = vset.pattern.permute.xlu0 %v2620
    %2623 = vperm.xlu0 %2622, %v2618
    %v2624 = vpop.permute.xlu0 %2623
    %v2625 = vlaneseq
    %v2626 = vshrl.u32 %v2625, 7
    %v2627 = vadd.s32 %v2626, 8
    %2628 = vset.pattern.permute.xlu0 %v2627
    %2629 = vperm.xlu0 %2628, %v2618
    %v2630 = vpop.permute.xlu0 %2629
    %v2631 = vlaneseq
    %v2632 = vshrl.u32 %v2631, 7
    %v2633 = vadd.s32 %v2632, 16
    %2634 = vset.pattern.permute.xlu0 %v2633
    %2635 = vperm.xlu0 %2634, %v2618
    %v2636 = vpop.permute.xlu0 %2635
    %v2637 = vlaneseq
    %v2638 = vshrl.u32 %v2637, 7
    %v2639 = vadd.s32 %v2638, 24
    %2640 = vset.pattern.permute.xlu0 %v2639
    %2641 = vperm.xlu0 %2640, %v2618
    %v2642 = vpop.permute.xlu0 %2641
    %v2643 = vperm.slane %v79, 1
    %v2644 = vlaneseq
    %v2645 = vshrl.u32 %v2644, 7
    %2647 = vset.pattern.permute.xlu0 %v2645
    %2648 = vperm.xlu0 %2647, %v2643
    %v2649 = vpop.permute.xlu0 %2648
    %v2650 = vlaneseq
    %v2651 = vshrl.u32 %v2650, 7
    %v2652 = vadd.s32 %v2651, 8
    %2653 = vset.pattern.permute.xlu0 %v2652
    %2654 = vperm.xlu0 %2653, %v2643
    %v2655 = vpop.permute.xlu0 %2654
    %v2656 = vlaneseq
    %v2657 = vshrl.u32 %v2656, 7
    %v2658 = vadd.s32 %v2657, 16
    %2659 = vset.pattern.permute.xlu0 %v2658
    %2660 = vperm.xlu0 %2659, %v2643
    %v2661 = vpop.permute.xlu0 %2660
    %v2662 = vlaneseq
    %v2663 = vshrl.u32 %v2662, 7
    %v2664 = vadd.s32 %v2663, 24
    %2665 = vset.pattern.permute.xlu0 %v2664
    %2666 = vperm.xlu0 %2665, %v2643
    %v2667 = vpop.permute.xlu0 %2666
    %v2668 = vperm.slane %v79, 2
    %v2669 = vlaneseq
    %v2670 = vshrl.u32 %v2669, 7
    %2672 = vset.pattern.permute.xlu0 %v2670
    %2673 = vperm.xlu0 %2672, %v2668
    %v2674 = vpop.permute.xlu0 %2673
    %v2675 = vlaneseq
    %v2676 = vshrl.u32 %v2675, 7
    %v2677 = vadd.s32 %v2676, 8
    %2678 = vset.pattern.permute.xlu0 %v2677
    %2679 = vperm.xlu0 %2678, %v2668
    %v2680 = vpop.permute.xlu0 %2679
    %v2681 = vlaneseq
    %v2682 = vshrl.u32 %v2681, 7
    %v2683 = vadd.s32 %v2682, 16
    %2684 = vset.pattern.permute.xlu0 %v2683
    %2685 = vperm.xlu0 %2684, %v2668
    %v2686 = vpop.permute.xlu0 %2685
    %v2687 = vlaneseq
    %v2688 = vshrl.u32 %v2687, 7
    %v2689 = vadd.s32 %v2688, 24
    %2690 = vset.pattern.permute.xlu0 %v2689
    %2691 = vperm.xlu0 %2690, %v2668
    %v2692 = vpop.permute.xlu0 %2691
    %v2693 = vperm.slane %v79, 3
    %v2694 = vlaneseq
    %v2695 = vshrl.u32 %v2694, 7
    %2697 = vset.pattern.permute.xlu0 %v2695
    %2698 = vperm.xlu0 %2697, %v2693
    %v2699 = vpop.permute.xlu0 %2698
    %v2700 = vlaneseq
    %v2701 = vshrl.u32 %v2700, 7
    %v2702 = vadd.s32 %v2701, 8
    %2703 = vset.pattern.permute.xlu0 %v2702
    %2704 = vperm.xlu0 %2703, %v2693
    %v2705 = vpop.permute.xlu0 %2704
    %v2706 = vlaneseq
    %v2707 = vshrl.u32 %v2706, 7
    %v2708 = vadd.s32 %v2707, 16
    %2709 = vset.pattern.permute.xlu0 %v2708
    %2710 = vperm.xlu0 %2709, %v2693
    %v2711 = vpop.permute.xlu0 %2710
    %v2712 = vlaneseq
    %v2713 = vshrl.u32 %v2712, 7
    %v2714 = vadd.s32 %v2713, 24
    %2715 = vset.pattern.permute.xlu0 %v2714
    %2716 = vperm.xlu0 %2715, %v2693
    %v2717 = vpop.permute.xlu0 %2716
    %v2718 = vperm.slane %v79, 4
    %v2719 = vlaneseq
    %v2720 = vshrl.u32 %v2719, 7
    %2722 = vset.pattern.permute.xlu0 %v2720
    %2723 = vperm.xlu0 %2722, %v2718
    %v2724 = vpop.permute.xlu0 %2723
    %v2725 = vlaneseq
    %v2726 = vshrl.u32 %v2725, 7
    %v2727 = vadd.s32 %v2726, 8
    %2728 = vset.pattern.permute.xlu0 %v2727
    %2729 = vperm.xlu0 %2728, %v2718
    %v2730 = vpop.permute.xlu0 %2729
    %v2731 = vlaneseq
    %v2732 = vshrl.u32 %v2731, 7
    %v2733 = vadd.s32 %v2732, 16
    %2734 = vset.pattern.permute.xlu0 %v2733
    %2735 = vperm.xlu0 %2734, %v2718
    %v2736 = vpop.permute.xlu0 %2735
    %v2737 = vlaneseq
    %v2738 = vshrl.u32 %v2737, 7
    %v2739 = vadd.s32 %v2738, 24
    %2740 = vset.pattern.permute.xlu0 %v2739
    %2741 = vperm.xlu0 %2740, %v2718
    %v2742 = vpop.permute.xlu0 %2741
    %v2743 = vperm.slane %v79, 5
    %v2744 = vlaneseq
    %v2745 = vshrl.u32 %v2744, 7
    %2747 = vset.pattern.permute.xlu0 %v2745
    %2748 = vperm.xlu0 %2747, %v2743
    %v2749 = vpop.permute.xlu0 %2748
    %v2750 = vlaneseq
    %v2751 = vshrl.u32 %v2750, 7
    %v2752 = vadd.s32 %v2751, 8
    %2753 = vset.pattern.permute.xlu0 %v2752
    %2754 = vperm.xlu0 %2753, %v2743
    %v2755 = vpop.permute.xlu0 %2754
    %v2756 = vlaneseq
    %v2757 = vshrl.u32 %v2756, 7
    %v2758 = vadd.s32 %v2757, 16
    %2759 = vset.pattern.permute.xlu0 %v2758
    %2760 = vperm.xlu0 %2759, %v2743
    %v2761 = vpop.permute.xlu0 %2760
    %v2762 = vlaneseq
    %v2763 = vshrl.u32 %v2762, 7
    %v2764 = vadd.s32 %v2763, 24
    %2765 = vset.pattern.permute.xlu0 %v2764
    %2766 = vperm.xlu0 %2765, %v2743
    %v2767 = vpop.permute.xlu0 %2766
    %v2768 = vperm.slane %v79, 6
    %v2769 = vlaneseq
    %v2770 = vshrl.u32 %v2769, 7
    %2772 = vset.pattern.permute.xlu0 %v2770
    %2773 = vperm.xlu0 %2772, %v2768
    %v2774 = vpop.permute.xlu0 %2773
    %v2775 = vlaneseq
    %v2776 = vshrl.u32 %v2775, 7
    %v2777 = vadd.s32 %v2776, 8
    %2778 = vset.pattern.permute.xlu0 %v2777
    %2779 = vperm.xlu0 %2778, %v2768
    %v2780 = vpop.permute.xlu0 %2779
    %v2781 = vlaneseq
    %v2782 = vshrl.u32 %v2781, 7
    %v2783 = vadd.s32 %v2782, 16
    %2784 = vset.pattern.permute.xlu0 %v2783
    %2785 = vperm.xlu0 %2784, %v2768
    %v2786 = vpop.permute.xlu0 %2785
    %v2787 = vlaneseq
    %v2788 = vshrl.u32 %v2787, 7
    %v2789 = vadd.s32 %v2788, 24
    %2790 = vset.pattern.permute.xlu0 %v2789
    %2791 = vperm.xlu0 %2790, %v2768
    %v2792 = vpop.permute.xlu0 %2791
    %v2793 = vperm.slane %v79, 7
    %v2794 = vlaneseq
    %v2795 = vshrl.u32 %v2794, 7
    %2797 = vset.pattern.permute.xlu0 %v2795
    %2798 = vperm.xlu0 %2797, %v2793
    %v2799 = vpop.permute.xlu0 %2798
    %v2800 = vlaneseq
    %v2801 = vshrl.u32 %v2800, 7
    %v2802 = vadd.s32 %v2801, 8
    %2803 = vset.pattern.permute.xlu0 %v2802
    %2804 = vperm.xlu0 %2803, %v2793
    %v2805 = vpop.permute.xlu0 %2804
    %v2806 = vlaneseq
    %v2807 = vshrl.u32 %v2806, 7
    %v2808 = vadd.s32 %v2807, 16
    %2809 = vset.pattern.permute.xlu0 %v2808
    %2810 = vperm.xlu0 %2809, %v2793
    %v2811 = vpop.permute.xlu0 %2810
    %v2812 = vlaneseq
    %v2813 = vshrl.u32 %v2812, 7
    %v2814 = vadd.s32 %v2813, 24
    %2815 = vset.pattern.permute.xlu0 %v2814
    %2816 = vperm.xlu0 %2815, %v2793
    %v2817 = vpop.permute.xlu0 %2816
    %v2818 = vperm.slane %v80, 0
    %v2819 = vlaneseq
    %v2820 = vshrl.u32 %v2819, 7
    %2822 = vset.pattern.permute.xlu0 %v2820
    %2823 = vperm.xlu0 %2822, %v2818
    %v2824 = vpop.permute.xlu0 %2823
    %v2825 = vlaneseq
    %v2826 = vshrl.u32 %v2825, 7
    %v2827 = vadd.s32 %v2826, 8
    %2828 = vset.pattern.permute.xlu0 %v2827
    %2829 = vperm.xlu0 %2828, %v2818
    %v2830 = vpop.permute.xlu0 %2829
    %v2831 = vlaneseq
    %v2832 = vshrl.u32 %v2831, 7
    %v2833 = vadd.s32 %v2832, 16
    %2834 = vset.pattern.permute.xlu0 %v2833
    %2835 = vperm.xlu0 %2834, %v2818
    %v2836 = vpop.permute.xlu0 %2835
    %v2837 = vlaneseq
    %v2838 = vshrl.u32 %v2837, 7
    %v2839 = vadd.s32 %v2838, 24
    %2840 = vset.pattern.permute.xlu0 %v2839
    %2841 = vperm.xlu0 %2840, %v2818
    %v2842 = vpop.permute.xlu0 %2841
    %v2843 = vperm.slane %v80, 1
    %v2844 = vlaneseq
    %v2845 = vshrl.u32 %v2844, 7
    %2847 = vset.pattern.permute.xlu0 %v2845
    %2848 = vperm.xlu0 %2847, %v2843
    %v2849 = vpop.permute.xlu0 %2848
    %v2850 = vlaneseq
    %v2851 = vshrl.u32 %v2850, 7
    %v2852 = vadd.s32 %v2851, 8
    %2853 = vset.pattern.permute.xlu0 %v2852
    %2854 = vperm.xlu0 %2853, %v2843
    %v2855 = vpop.permute.xlu0 %2854
    %v2856 = vlaneseq
    %v2857 = vshrl.u32 %v2856, 7
    %v2858 = vadd.s32 %v2857, 16
    %2859 = vset.pattern.permute.xlu0 %v2858
    %2860 = vperm.xlu0 %2859, %v2843
    %v2861 = vpop.permute.xlu0 %2860
    %v2862 = vlaneseq
    %v2863 = vshrl.u32 %v2862, 7
    %v2864 = vadd.s32 %v2863, 24
    %2865 = vset.pattern.permute.xlu0 %v2864
    %2866 = vperm.xlu0 %2865, %v2843
    %v2867 = vpop.permute.xlu0 %2866
    %v2868 = vperm.slane %v80, 2
    %v2869 = vlaneseq
    %v2870 = vshrl.u32 %v2869, 7
    %2872 = vset.pattern.permute.xlu0 %v2870
    %2873 = vperm.xlu0 %2872, %v2868
    %v2874 = vpop.permute.xlu0 %2873
    %v2875 = vlaneseq
    %v2876 = vshrl.u32 %v2875, 7
    %v2877 = vadd.s32 %v2876, 8
    %2878 = vset.pattern.permute.xlu0 %v2877
    %2879 = vperm.xlu0 %2878, %v2868
    %v2880 = vpop.permute.xlu0 %2879
    %v2881 = vlaneseq
    %v2882 = vshrl.u32 %v2881, 7
    %v2883 = vadd.s32 %v2882, 16
    %2884 = vset.pattern.permute.xlu0 %v2883
    %2885 = vperm.xlu0 %2884, %v2868
    %v2886 = vpop.permute.xlu0 %2885
    %v2887 = vlaneseq
    %v2888 = vshrl.u32 %v2887, 7
    %v2889 = vadd.s32 %v2888, 24
    %2890 = vset.pattern.permute.xlu0 %v2889
    %2891 = vperm.xlu0 %2890, %v2868
    %v2892 = vpop.permute.xlu0 %2891
    %v2893 = vperm.slane %v80, 3
    %v2894 = vlaneseq
    %v2895 = vshrl.u32 %v2894, 7
    %2897 = vset.pattern.permute.xlu0 %v2895
    %2898 = vperm.xlu0 %2897, %v2893
    %v2899 = vpop.permute.xlu0 %2898
    %v2900 = vlaneseq
    %v2901 = vshrl.u32 %v2900, 7
    %v2902 = vadd.s32 %v2901, 8
    %2903 = vset.pattern.permute.xlu0 %v2902
    %2904 = vperm.xlu0 %2903, %v2893
    %v2905 = vpop.permute.xlu0 %2904
    %v2906 = vlaneseq
    %v2907 = vshrl.u32 %v2906, 7
    %v2908 = vadd.s32 %v2907, 16
    %2909 = vset.pattern.permute.xlu0 %v2908
    %2910 = vperm.xlu0 %2909, %v2893
    %v2911 = vpop.permute.xlu0 %2910
    %v2912 = vlaneseq
    %v2913 = vshrl.u32 %v2912, 7
    %v2914 = vadd.s32 %v2913, 24
    %2915 = vset.pattern.permute.xlu0 %v2914
    %2916 = vperm.xlu0 %2915, %v2893
    %v2917 = vpop.permute.xlu0 %2916
    %v2918 = vperm.slane %v80, 4
    %v2919 = vlaneseq
    %v2920 = vshrl.u32 %v2919, 7
    %2922 = vset.pattern.permute.xlu0 %v2920
    %2923 = vperm.xlu0 %2922, %v2918
    %v2924 = vpop.permute.xlu0 %2923
    %v2925 = vlaneseq
    %v2926 = vshrl.u32 %v2925, 7
    %v2927 = vadd.s32 %v2926, 8
    %2928 = vset.pattern.permute.xlu0 %v2927
    %2929 = vperm.xlu0 %2928, %v2918
    %v2930 = vpop.permute.xlu0 %2929
    %v2931 = vlaneseq
    %v2932 = vshrl.u32 %v2931, 7
    %v2933 = vadd.s32 %v2932, 16
    %2934 = vset.pattern.permute.xlu0 %v2933
    %2935 = vperm.xlu0 %2934, %v2918
    %v2936 = vpop.permute.xlu0 %2935
    %v2937 = vlaneseq
    %v2938 = vshrl.u32 %v2937, 7
    %v2939 = vadd.s32 %v2938, 24
    %2940 = vset.pattern.permute.xlu0 %v2939
    %2941 = vperm.xlu0 %2940, %v2918
    %v2942 = vpop.permute.xlu0 %2941
    %v2943 = vperm.slane %v80, 5
    %v2944 = vlaneseq
    %v2945 = vshrl.u32 %v2944, 7
    %2947 = vset.pattern.permute.xlu0 %v2945
    %2948 = vperm.xlu0 %2947, %v2943
    %v2949 = vpop.permute.xlu0 %2948
    %v2950 = vlaneseq
    %v2951 = vshrl.u32 %v2950, 7
    %v2952 = vadd.s32 %v2951, 8
    %2953 = vset.pattern.permute.xlu0 %v2952
    %2954 = vperm.xlu0 %2953, %v2943
    %v2955 = vpop.permute.xlu0 %2954
    %v2956 = vlaneseq
    %v2957 = vshrl.u32 %v2956, 7
    %v2958 = vadd.s32 %v2957, 16
    %2959 = vset.pattern.permute.xlu0 %v2958
    %2960 = vperm.xlu0 %2959, %v2943
    %v2961 = vpop.permute.xlu0 %2960
    %v2962 = vlaneseq
    %v2963 = vshrl.u32 %v2962, 7
    %v2964 = vadd.s32 %v2963, 24
    %2965 = vset.pattern.permute.xlu0 %v2964
    %2966 = vperm.xlu0 %2965, %v2943
    %v2967 = vpop.permute.xlu0 %2966
    %v2968 = vperm.slane %v80, 6
    %v2969 = vlaneseq
    %v2970 = vshrl.u32 %v2969, 7
    %2972 = vset.pattern.permute.xlu0 %v2970
    %2973 = vperm.xlu0 %2972, %v2968
    %v2974 = vpop.permute.xlu0 %2973
    %v2975 = vlaneseq
    %v2976 = vshrl.u32 %v2975, 7
    %v2977 = vadd.s32 %v2976, 8
    %2978 = vset.pattern.permute.xlu0 %v2977
    %2979 = vperm.xlu0 %2978, %v2968
    %v2980 = vpop.permute.xlu0 %2979
    %v2981 = vlaneseq
    %v2982 = vshrl.u32 %v2981, 7
    %v2983 = vadd.s32 %v2982, 16
    %2984 = vset.pattern.permute.xlu0 %v2983
    %2985 = vperm.xlu0 %2984, %v2968
    %v2986 = vpop.permute.xlu0 %2985
    %v2987 = vlaneseq
    %v2988 = vshrl.u32 %v2987, 7
    %v2989 = vadd.s32 %v2988, 24
    %2990 = vset.pattern.permute.xlu0 %v2989
    %2991 = vperm.xlu0 %2990, %v2968
    %v2992 = vpop.permute.xlu0 %2991
    %v2993 = vperm.slane %v80, 7
    %v2994 = vlaneseq
    %v2995 = vshrl.u32 %v2994, 7
    %2997 = vset.pattern.permute.xlu0 %v2995
    %2998 = vperm.xlu0 %2997, %v2993
    %v2999 = vpop.permute.xlu0 %2998
    %v3000 = vlaneseq
    %v3001 = vshrl.u32 %v3000, 7
    %v3002 = vadd.s32 %v3001, 8
    %3003 = vset.pattern.permute.xlu0 %v3002
    %3004 = vperm.xlu0 %3003, %v2993
    %v3005 = vpop.permute.xlu0 %3004
    %v3006 = vlaneseq
    %v3007 = vshrl.u32 %v3006, 7
    %v3008 = vadd.s32 %v3007, 16
    %3009 = vset.pattern.permute.xlu0 %v3008
    %3010 = vperm.xlu0 %3009, %v2993
    %v3011 = vpop.permute.xlu0 %3010
    %v3012 = vlaneseq
    %v3013 = vshrl.u32 %v3012, 7
    %v3014 = vadd.s32 %v3013, 24
    %3015 = vset.pattern.permute.xlu0 %v3014
    %3016 = vperm.xlu0 %3015, %v2993
    %v3017 = vpop.permute.xlu0 %3016
    %v3018 = vperm.slane %v81, 0
    %v3019 = vlaneseq
    %v3020 = vshrl.u32 %v3019, 7
    %3022 = vset.pattern.permute.xlu0 %v3020
    %3023 = vperm.xlu0 %3022, %v3018
    %v3024 = vpop.permute.xlu0 %3023
    %v3025 = vlaneseq
    %v3026 = vshrl.u32 %v3025, 7
    %v3027 = vadd.s32 %v3026, 8
    %3028 = vset.pattern.permute.xlu0 %v3027
    %3029 = vperm.xlu0 %3028, %v3018
    %v3030 = vpop.permute.xlu0 %3029
    %v3031 = vlaneseq
    %v3032 = vshrl.u32 %v3031, 7
    %v3033 = vadd.s32 %v3032, 16
    %3034 = vset.pattern.permute.xlu0 %v3033
    %3035 = vperm.xlu0 %3034, %v3018
    %v3036 = vpop.permute.xlu0 %3035
    %v3037 = vlaneseq
    %v3038 = vshrl.u32 %v3037, 7
    %v3039 = vadd.s32 %v3038, 24
    %3040 = vset.pattern.permute.xlu0 %v3039
    %3041 = vperm.xlu0 %3040, %v3018
    %v3042 = vpop.permute.xlu0 %3041
    %v3043 = vperm.slane %v81, 1
    %v3044 = vlaneseq
    %v3045 = vshrl.u32 %v3044, 7
    %3047 = vset.pattern.permute.xlu0 %v3045
    %3048 = vperm.xlu0 %3047, %v3043
    %v3049 = vpop.permute.xlu0 %3048
    %v3050 = vlaneseq
    %v3051 = vshrl.u32 %v3050, 7
    %v3052 = vadd.s32 %v3051, 8
    %3053 = vset.pattern.permute.xlu0 %v3052
    %3054 = vperm.xlu0 %3053, %v3043
    %v3055 = vpop.permute.xlu0 %3054
    %v3056 = vlaneseq
    %v3057 = vshrl.u32 %v3056, 7
    %v3058 = vadd.s32 %v3057, 16
    %3059 = vset.pattern.permute.xlu0 %v3058
    %3060 = vperm.xlu0 %3059, %v3043
    %v3061 = vpop.permute.xlu0 %3060
    %v3062 = vlaneseq
    %v3063 = vshrl.u32 %v3062, 7
    %v3064 = vadd.s32 %v3063, 24
    %3065 = vset.pattern.permute.xlu0 %v3064
    %3066 = vperm.xlu0 %3065, %v3043
    %v3067 = vpop.permute.xlu0 %3066
    %v3068 = vperm.slane %v81, 2
    %v3069 = vlaneseq
    %v3070 = vshrl.u32 %v3069, 7
    %3072 = vset.pattern.permute.xlu0 %v3070
    %3073 = vperm.xlu0 %3072, %v3068
    %v3074 = vpop.permute.xlu0 %3073
    %v3075 = vlaneseq
    %v3076 = vshrl.u32 %v3075, 7
    %v3077 = vadd.s32 %v3076, 8
    %3078 = vset.pattern.permute.xlu0 %v3077
    %3079 = vperm.xlu0 %3078, %v3068
    %v3080 = vpop.permute.xlu0 %3079
    %v3081 = vlaneseq
    %v3082 = vshrl.u32 %v3081, 7
    %v3083 = vadd.s32 %v3082, 16
    %3084 = vset.pattern.permute.xlu0 %v3083
    %3085 = vperm.xlu0 %3084, %v3068
    %v3086 = vpop.permute.xlu0 %3085
    %v3087 = vlaneseq
    %v3088 = vshrl.u32 %v3087, 7
    %v3089 = vadd.s32 %v3088, 24
    %3090 = vset.pattern.permute.xlu0 %v3089
    %3091 = vperm.xlu0 %3090, %v3068
    %v3092 = vpop.permute.xlu0 %3091
    %v3093 = vperm.slane %v81, 3
    %v3094 = vlaneseq
    %v3095 = vshrl.u32 %v3094, 7
    %3097 = vset.pattern.permute.xlu0 %v3095
    %3098 = vperm.xlu0 %3097, %v3093
    %v3099 = vpop.permute.xlu0 %3098
    %v3100 = vlaneseq
    %v3101 = vshrl.u32 %v3100, 7
    %v3102 = vadd.s32 %v3101, 8
    %3103 = vset.pattern.permute.xlu0 %v3102
    %3104 = vperm.xlu0 %3103, %v3093
    %v3105 = vpop.permute.xlu0 %3104
    %v3106 = vlaneseq
    %v3107 = vshrl.u32 %v3106, 7
    %v3108 = vadd.s32 %v3107, 16
    %3109 = vset.pattern.permute.xlu0 %v3108
    %3110 = vperm.xlu0 %3109, %v3093
    %v3111 = vpop.permute.xlu0 %3110
    %v3112 = vlaneseq
    %v3113 = vshrl.u32 %v3112, 7
    %v3114 = vadd.s32 %v3113, 24
    %3115 = vset.pattern.permute.xlu0 %v3114
    %3116 = vperm.xlu0 %3115, %v3093
    %v3117 = vpop.permute.xlu0 %3116
    %v3118 = vperm.slane %v81, 4
    %v3119 = vlaneseq
    %v3120 = vshrl.u32 %v3119, 7
    %3122 = vset.pattern.permute.xlu0 %v3120
    %3123 = vperm.xlu0 %3122, %v3118
    %v3124 = vpop.permute.xlu0 %3123
    %v3125 = vlaneseq
    %v3126 = vshrl.u32 %v3125, 7
    %v3127 = vadd.s32 %v3126, 8
    %3128 = vset.pattern.permute.xlu0 %v3127
    %3129 = vperm.xlu0 %3128, %v3118
    %v3130 = vpop.permute.xlu0 %3129
    %v3131 = vlaneseq
    %v3132 = vshrl.u32 %v3131, 7
    %v3133 = vadd.s32 %v3132, 16
    %3134 = vset.pattern.permute.xlu0 %v3133
    %3135 = vperm.xlu0 %3134, %v3118
    %v3136 = vpop.permute.xlu0 %3135
    %v3137 = vlaneseq
    %v3138 = vshrl.u32 %v3137, 7
    %v3139 = vadd.s32 %v3138, 24
    %3140 = vset.pattern.permute.xlu0 %v3139
    %3141 = vperm.xlu0 %3140, %v3118
    %v3142 = vpop.permute.xlu0 %3141
    %v3143 = vperm.slane %v81, 5
    %v3144 = vlaneseq
    %v3145 = vshrl.u32 %v3144, 7
    %3147 = vset.pattern.permute.xlu0 %v3145
    %3148 = vperm.xlu0 %3147, %v3143
    %v3149 = vpop.permute.xlu0 %3148
    %v3150 = vlaneseq
    %v3151 = vshrl.u32 %v3150, 7
    %v3152 = vadd.s32 %v3151, 8
    %3153 = vset.pattern.permute.xlu0 %v3152
    %3154 = vperm.xlu0 %3153, %v3143
    %v3155 = vpop.permute.xlu0 %3154
    %v3156 = vlaneseq
    %v3157 = vshrl.u32 %v3156, 7
    %v3158 = vadd.s32 %v3157, 16
    %3159 = vset.pattern.permute.xlu0 %v3158
    %3160 = vperm.xlu0 %3159, %v3143
    %v3161 = vpop.permute.xlu0 %3160
    %v3162 = vlaneseq
    %v3163 = vshrl.u32 %v3162, 7
    %v3164 = vadd.s32 %v3163, 24
    %3165 = vset.pattern.permute.xlu0 %v3164
    %3166 = vperm.xlu0 %3165, %v3143
    %v3167 = vpop.permute.xlu0 %3166
    %v3168 = vperm.slane %v81, 6
    %v3169 = vlaneseq
    %v3170 = vshrl.u32 %v3169, 7
    %3172 = vset.pattern.permute.xlu0 %v3170
    %3173 = vperm.xlu0 %3172, %v3168
    %v3174 = vpop.permute.xlu0 %3173
    %v3175 = vlaneseq
    %v3176 = vshrl.u32 %v3175, 7
    %v3177 = vadd.s32 %v3176, 8
    %3178 = vset.pattern.permute.xlu0 %v3177
    %3179 = vperm.xlu0 %3178, %v3168
    %v3180 = vpop.permute.xlu0 %3179
    %v3181 = vlaneseq
    %v3182 = vshrl.u32 %v3181, 7
    %v3183 = vadd.s32 %v3182, 16
    %3184 = vset.pattern.permute.xlu0 %v3183
    %3185 = vperm.xlu0 %3184, %v3168
    %v3186 = vpop.permute.xlu0 %3185
    %v3187 = vlaneseq
    %v3188 = vshrl.u32 %v3187, 7
    %v3189 = vadd.s32 %v3188, 24
    %3190 = vset.pattern.permute.xlu0 %v3189
    %3191 = vperm.xlu0 %3190, %v3168
    %v3192 = vpop.permute.xlu0 %3191
    %v3193 = vperm.slane %v81, 7
    %v3194 = vlaneseq
    %v3195 = vshrl.u32 %v3194, 7
    %3197 = vset.pattern.permute.xlu0 %v3195
    %3198 = vperm.xlu0 %3197, %v3193
    %v3199 = vpop.permute.xlu0 %3198
    %v3200 = vlaneseq
    %v3201 = vshrl.u32 %v3200, 7
    %v3202 = vadd.s32 %v3201, 8
    %3203 = vset.pattern.permute.xlu0 %v3202
    %3204 = vperm.xlu0 %3203, %v3193
    %v3205 = vpop.permute.xlu0 %3204
    %v3206 = vlaneseq
    %v3207 = vshrl.u32 %v3206, 7
    %v3208 = vadd.s32 %v3207, 16
    %3209 = vset.pattern.permute.xlu0 %v3208
    %3210 = vperm.xlu0 %3209, %v3193
    %v3211 = vpop.permute.xlu0 %3210
    %v3212 = vlaneseq
    %v3213 = vshrl.u32 %v3212, 7
    %v3214 = vadd.s32 %v3213, 24
    %3215 = vset.pattern.permute.xlu0 %v3214
    %3216 = vperm.xlu0 %3215, %v3193
    %v3217 = vpop.permute.xlu0 %3216
    %v3218 = vperm.slane %v82, 0
    %v3219 = vlaneseq
    %v3220 = vshrl.u32 %v3219, 7
    %3222 = vset.pattern.permute.xlu0 %v3220
    %3223 = vperm.xlu0 %3222, %v3218
    %v3224 = vpop.permute.xlu0 %3223
    %v3225 = vlaneseq
    %v3226 = vshrl.u32 %v3225, 7
    %v3227 = vadd.s32 %v3226, 8
    %3228 = vset.pattern.permute.xlu0 %v3227
    %3229 = vperm.xlu0 %3228, %v3218
    %v3230 = vpop.permute.xlu0 %3229
    %v3231 = vlaneseq
    %v3232 = vshrl.u32 %v3231, 7
    %v3233 = vadd.s32 %v3232, 16
    %3234 = vset.pattern.permute.xlu0 %v3233
    %3235 = vperm.xlu0 %3234, %v3218
    %v3236 = vpop.permute.xlu0 %3235
    %v3237 = vlaneseq
    %v3238 = vshrl.u32 %v3237, 7
    %v3239 = vadd.s32 %v3238, 24
    %3240 = vset.pattern.permute.xlu0 %v3239
    %3241 = vperm.xlu0 %3240, %v3218
    %v3242 = vpop.permute.xlu0 %3241
    %v3243 = vperm.slane %v82, 1
    %v3244 = vlaneseq
    %v3245 = vshrl.u32 %v3244, 7
    %3247 = vset.pattern.permute.xlu0 %v3245
    %3248 = vperm.xlu0 %3247, %v3243
    %v3249 = vpop.permute.xlu0 %3248
    %v3250 = vlaneseq
    %v3251 = vshrl.u32 %v3250, 7
    %v3252 = vadd.s32 %v3251, 8
    %3253 = vset.pattern.permute.xlu0 %v3252
    %3254 = vperm.xlu0 %3253, %v3243
    %v3255 = vpop.permute.xlu0 %3254
    %v3256 = vlaneseq
    %v3257 = vshrl.u32 %v3256, 7
    %v3258 = vadd.s32 %v3257, 16
    %3259 = vset.pattern.permute.xlu0 %v3258
    %3260 = vperm.xlu0 %3259, %v3243
    %v3261 = vpop.permute.xlu0 %3260
    %v3262 = vlaneseq
    %v3263 = vshrl.u32 %v3262, 7
    %v3264 = vadd.s32 %v3263, 24
    %3265 = vset.pattern.permute.xlu0 %v3264
    %3266 = vperm.xlu0 %3265, %v3243
    %v3267 = vpop.permute.xlu0 %3266
    %v3268 = vperm.slane %v82, 2
    %v3269 = vlaneseq
    %v3270 = vshrl.u32 %v3269, 7
    %3272 = vset.pattern.permute.xlu0 %v3270
    %3273 = vperm.xlu0 %3272, %v3268
    %v3274 = vpop.permute.xlu0 %3273
    %v3275 = vlaneseq
    %v3276 = vshrl.u32 %v3275, 7
    %v3277 = vadd.s32 %v3276, 8
    %3278 = vset.pattern.permute.xlu0 %v3277
    %3279 = vperm.xlu0 %3278, %v3268
    %v3280 = vpop.permute.xlu0 %3279
    %v3281 = vlaneseq
    %v3282 = vshrl.u32 %v3281, 7
    %v3283 = vadd.s32 %v3282, 16
    %3284 = vset.pattern.permute.xlu0 %v3283
    %3285 = vperm.xlu0 %3284, %v3268
    %v3286 = vpop.permute.xlu0 %3285
    %v3287 = vlaneseq
    %v3288 = vshrl.u32 %v3287, 7
    %v3289 = vadd.s32 %v3288, 24
    %3290 = vset.pattern.permute.xlu0 %v3289
    %3291 = vperm.xlu0 %3290, %v3268
    %v3292 = vpop.permute.xlu0 %3291
    %v3293 = vperm.slane %v82, 3
    %v3294 = vlaneseq
    %v3295 = vshrl.u32 %v3294, 7
    %3297 = vset.pattern.permute.xlu0 %v3295
    %3298 = vperm.xlu0 %3297, %v3293
    %v3299 = vpop.permute.xlu0 %3298
    %v3300 = vlaneseq
    %v3301 = vshrl.u32 %v3300, 7
    %v3302 = vadd.s32 %v3301, 8
    %3303 = vset.pattern.permute.xlu0 %v3302
    %3304 = vperm.xlu0 %3303, %v3293
    %v3305 = vpop.permute.xlu0 %3304
    %v3306 = vlaneseq
    %v3307 = vshrl.u32 %v3306, 7
    %v3308 = vadd.s32 %v3307, 16
    %3309 = vset.pattern.permute.xlu0 %v3308
    %3310 = vperm.xlu0 %3309, %v3293
    %v3311 = vpop.permute.xlu0 %3310
    %v3312 = vlaneseq
    %v3313 = vshrl.u32 %v3312, 7
    %v3314 = vadd.s32 %v3313, 24
    %3315 = vset.pattern.permute.xlu0 %v3314
    %3316 = vperm.xlu0 %3315, %v3293
    %v3317 = vpop.permute.xlu0 %3316
    %v3318 = vperm.slane %v82, 4
    %v3319 = vlaneseq
    %v3320 = vshrl.u32 %v3319, 7
    %3322 = vset.pattern.permute.xlu0 %v3320
    %3323 = vperm.xlu0 %3322, %v3318
    %v3324 = vpop.permute.xlu0 %3323
    %v3325 = vlaneseq
    %v3326 = vshrl.u32 %v3325, 7
    %v3327 = vadd.s32 %v3326, 8
    %3328 = vset.pattern.permute.xlu0 %v3327
    %3329 = vperm.xlu0 %3328, %v3318
    %v3330 = vpop.permute.xlu0 %3329
    %v3331 = vlaneseq
    %v3332 = vshrl.u32 %v3331, 7
    %v3333 = vadd.s32 %v3332, 16
    %3334 = vset.pattern.permute.xlu0 %v3333
    %3335 = vperm.xlu0 %3334, %v3318
    %v3336 = vpop.permute.xlu0 %3335
    %v3337 = vlaneseq
    %v3338 = vshrl.u32 %v3337, 7
    %v3339 = vadd.s32 %v3338, 24
    %3340 = vset.pattern.permute.xlu0 %v3339
    %3341 = vperm.xlu0 %3340, %v3318
    %v3342 = vpop.permute.xlu0 %3341
    %v3343 = vperm.slane %v82, 5
    %v3344 = vlaneseq
    %v3345 = vshrl.u32 %v3344, 7
    %3347 = vset.pattern.permute.xlu0 %v3345
    %3348 = vperm.xlu0 %3347, %v3343
    %v3349 = vpop.permute.xlu0 %3348
    %v3350 = vlaneseq
    %v3351 = vshrl.u32 %v3350, 7
    %v3352 = vadd.s32 %v3351, 8
    %3353 = vset.pattern.permute.xlu0 %v3352
    %3354 = vperm.xlu0 %3353, %v3343
    %v3355 = vpop.permute.xlu0 %3354
    %v3356 = vlaneseq
    %v3357 = vshrl.u32 %v3356, 7
    %v3358 = vadd.s32 %v3357, 16
    %3359 = vset.pattern.permute.xlu0 %v3358
    %3360 = vperm.xlu0 %3359, %v3343
    %v3361 = vpop.permute.xlu0 %3360
    %v3362 = vlaneseq
    %v3363 = vshrl.u32 %v3362, 7
    %v3364 = vadd.s32 %v3363, 24
    %3365 = vset.pattern.permute.xlu0 %v3364
    %3366 = vperm.xlu0 %3365, %v3343
    %v3367 = vpop.permute.xlu0 %3366
    %v3368 = vperm.slane %v82, 6
    %v3369 = vlaneseq
    %v3370 = vshrl.u32 %v3369, 7
    %3372 = vset.pattern.permute.xlu0 %v3370
    %3373 = vperm.xlu0 %3372, %v3368
    %v3374 = vpop.permute.xlu0 %3373
    %v3375 = vlaneseq
    %v3376 = vshrl.u32 %v3375, 7
    %v3377 = vadd.s32 %v3376, 8
    %3378 = vset.pattern.permute.xlu0 %v3377
    %3379 = vperm.xlu0 %3378, %v3368
    %v3380 = vpop.permute.xlu0 %3379
    %v3381 = vlaneseq
    %v3382 = vshrl.u32 %v3381, 7
    %v3383 = vadd.s32 %v3382, 16
    %3384 = vset.pattern.permute.xlu0 %v3383
    %3385 = vperm.xlu0 %3384, %v3368
    %v3386 = vpop.permute.xlu0 %3385
    %v3387 = vlaneseq
    %v3388 = vshrl.u32 %v3387, 7
    %v3389 = vadd.s32 %v3388, 24
    %3390 = vset.pattern.permute.xlu0 %v3389
    %3391 = vperm.xlu0 %3390, %v3368
    %v3392 = vpop.permute.xlu0 %3391
    %v3393 = vperm.slane %v82, 7
    %v3394 = vlaneseq
    %v3395 = vshrl.u32 %v3394, 7
    %3397 = vset.pattern.permute.xlu0 %v3395
    %3398 = vperm.xlu0 %3397, %v3393
    %v3399 = vpop.permute.xlu0 %3398
    %v3400 = vlaneseq
    %v3401 = vshrl.u32 %v3400, 7
    %v3402 = vadd.s32 %v3401, 8
    %3403 = vset.pattern.permute.xlu0 %v3402
    %3404 = vperm.xlu0 %3403, %v3393
    %v3405 = vpop.permute.xlu0 %3404
    %v3406 = vlaneseq
    %v3407 = vshrl.u32 %v3406, 7
    %v3408 = vadd.s32 %v3407, 16
    %3409 = vset.pattern.permute.xlu0 %v3408
    %3410 = vperm.xlu0 %3409, %v3393
    %v3411 = vpop.permute.xlu0 %3410
    %v3412 = vlaneseq
    %v3413 = vshrl.u32 %v3412, 7
    %v3414 = vadd.s32 %v3413, 24
    %3415 = vset.pattern.permute.xlu0 %v3414
    %3416 = vperm.xlu0 %3415, %v3393
    %v3417 = vpop.permute.xlu0 %3416
    %v3418 = vperm.slane %v83, 0
    %v3419 = vlaneseq
    %v3420 = vshrl.u32 %v3419, 7
    %3422 = vset.pattern.permute.xlu0 %v3420
    %3423 = vperm.xlu0 %3422, %v3418
    %v3424 = vpop.permute.xlu0 %3423
    %v3425 = vlaneseq
    %v3426 = vshrl.u32 %v3425, 7
    %v3427 = vadd.s32 %v3426, 8
    %3428 = vset.pattern.permute.xlu0 %v3427
    %3429 = vperm.xlu0 %3428, %v3418
    %v3430 = vpop.permute.xlu0 %3429
    %v3431 = vlaneseq
    %v3432 = vshrl.u32 %v3431, 7
    %v3433 = vadd.s32 %v3432, 16
    %3434 = vset.pattern.permute.xlu0 %v3433
    %3435 = vperm.xlu0 %3434, %v3418
    %v3436 = vpop.permute.xlu0 %3435
    %v3437 = vlaneseq
    %v3438 = vshrl.u32 %v3437, 7
    %v3439 = vadd.s32 %v3438, 24
    %3440 = vset.pattern.permute.xlu0 %v3439
    %3441 = vperm.xlu0 %3440, %v3418
    %v3442 = vpop.permute.xlu0 %3441
    %v3443 = vperm.slane %v83, 1
    %v3444 = vlaneseq
    %v3445 = vshrl.u32 %v3444, 7
    %3447 = vset.pattern.permute.xlu0 %v3445
    %3448 = vperm.xlu0 %3447, %v3443
    %v3449 = vpop.permute.xlu0 %3448
    %v3450 = vlaneseq
    %v3451 = vshrl.u32 %v3450, 7
    %v3452 = vadd.s32 %v3451, 8
    %3453 = vset.pattern.permute.xlu0 %v3452
    %3454 = vperm.xlu0 %3453, %v3443
    %v3455 = vpop.permute.xlu0 %3454
    %v3456 = vlaneseq
    %v3457 = vshrl.u32 %v3456, 7
    %v3458 = vadd.s32 %v3457, 16
    %3459 = vset.pattern.permute.xlu0 %v3458
    %3460 = vperm.xlu0 %3459, %v3443
    %v3461 = vpop.permute.xlu0 %3460
    %v3462 = vlaneseq
    %v3463 = vshrl.u32 %v3462, 7
    %v3464 = vadd.s32 %v3463, 24
    %3465 = vset.pattern.permute.xlu0 %v3464
    %3466 = vperm.xlu0 %3465, %v3443
    %v3467 = vpop.permute.xlu0 %3466
    %v3468 = vperm.slane %v83, 2
    %v3469 = vlaneseq
    %v3470 = vshrl.u32 %v3469, 7
    %3472 = vset.pattern.permute.xlu0 %v3470
    %3473 = vperm.xlu0 %3472, %v3468
    %v3474 = vpop.permute.xlu0 %3473
    %v3475 = vlaneseq
    %v3476 = vshrl.u32 %v3475, 7
    %v3477 = vadd.s32 %v3476, 8
    %3478 = vset.pattern.permute.xlu0 %v3477
    %3479 = vperm.xlu0 %3478, %v3468
    %v3480 = vpop.permute.xlu0 %3479
    %v3481 = vlaneseq
    %v3482 = vshrl.u32 %v3481, 7
    %v3483 = vadd.s32 %v3482, 16
    %3484 = vset.pattern.permute.xlu0 %v3483
    %3485 = vperm.xlu0 %3484, %v3468
    %v3486 = vpop.permute.xlu0 %3485
    %v3487 = vlaneseq
    %v3488 = vshrl.u32 %v3487, 7
    %v3489 = vadd.s32 %v3488, 24
    %3490 = vset.pattern.permute.xlu0 %v3489
    %3491 = vperm.xlu0 %3490, %v3468
    %v3492 = vpop.permute.xlu0 %3491
    %v3493 = vperm.slane %v83, 3
    %v3494 = vlaneseq
    %v3495 = vshrl.u32 %v3494, 7
    %3497 = vset.pattern.permute.xlu0 %v3495
    %3498 = vperm.xlu0 %3497, %v3493
    %v3499 = vpop.permute.xlu0 %3498
    %v3500 = vlaneseq
    %v3501 = vshrl.u32 %v3500, 7
    %v3502 = vadd.s32 %v3501, 8
    %3503 = vset.pattern.permute.xlu0 %v3502
    %3504 = vperm.xlu0 %3503, %v3493
    %v3505 = vpop.permute.xlu0 %3504
    %v3506 = vlaneseq
    %v3507 = vshrl.u32 %v3506, 7
    %v3508 = vadd.s32 %v3507, 16
    %3509 = vset.pattern.permute.xlu0 %v3508
    %3510 = vperm.xlu0 %3509, %v3493
    %v3511 = vpop.permute.xlu0 %3510
    %v3512 = vlaneseq
    %v3513 = vshrl.u32 %v3512, 7
    %v3514 = vadd.s32 %v3513, 24
    %3515 = vset.pattern.permute.xlu0 %v3514
    %3516 = vperm.xlu0 %3515, %v3493
    %v3517 = vpop.permute.xlu0 %3516
    %v3518 = vperm.slane %v83, 4
    %v3519 = vlaneseq
    %v3520 = vshrl.u32 %v3519, 7
    %3522 = vset.pattern.permute.xlu0 %v3520
    %3523 = vperm.xlu0 %3522, %v3518
    %v3524 = vpop.permute.xlu0 %3523
    %v3525 = vlaneseq
    %v3526 = vshrl.u32 %v3525, 7
    %v3527 = vadd.s32 %v3526, 8
    %3528 = vset.pattern.permute.xlu0 %v3527
    %3529 = vperm.xlu0 %3528, %v3518
    %v3530 = vpop.permute.xlu0 %3529
    %v3531 = vlaneseq
    %v3532 = vshrl.u32 %v3531, 7
    %v3533 = vadd.s32 %v3532, 16
    %3534 = vset.pattern.permute.xlu0 %v3533
    %3535 = vperm.xlu0 %3534, %v3518
    %v3536 = vpop.permute.xlu0 %3535
    %v3537 = vlaneseq
    %v3538 = vshrl.u32 %v3537, 7
    %v3539 = vadd.s32 %v3538, 24
    %3540 = vset.pattern.permute.xlu0 %v3539
    %3541 = vperm.xlu0 %3540, %v3518
    %v3542 = vpop.permute.xlu0 %3541
    %v3543 = vperm.slane %v83, 5
    %v3544 = vlaneseq
    %v3545 = vshrl.u32 %v3544, 7
    %3547 = vset.pattern.permute.xlu0 %v3545
    %3548 = vperm.xlu0 %3547, %v3543
    %v3549 = vpop.permute.xlu0 %3548
    %v3550 = vlaneseq
    %v3551 = vshrl.u32 %v3550, 7
    %v3552 = vadd.s32 %v3551, 8
    %3553 = vset.pattern.permute.xlu0 %v3552
    %3554 = vperm.xlu0 %3553, %v3543
    %v3555 = vpop.permute.xlu0 %3554
    %v3556 = vlaneseq
    %v3557 = vshrl.u32 %v3556, 7
    %v3558 = vadd.s32 %v3557, 16
    %3559 = vset.pattern.permute.xlu0 %v3558
    %3560 = vperm.xlu0 %3559, %v3543
    %v3561 = vpop.permute.xlu0 %3560
    %v3562 = vlaneseq
    %v3563 = vshrl.u32 %v3562, 7
    %v3564 = vadd.s32 %v3563, 24
    %3565 = vset.pattern.permute.xlu0 %v3564
    %3566 = vperm.xlu0 %3565, %v3543
    %v3567 = vpop.permute.xlu0 %3566
    %v3568 = vperm.slane %v83, 6
    %v3569 = vlaneseq
    %v3570 = vshrl.u32 %v3569, 7
    %3572 = vset.pattern.permute.xlu0 %v3570
    %3573 = vperm.xlu0 %3572, %v3568
    %v3574 = vpop.permute.xlu0 %3573
    %v3575 = vlaneseq
    %v3576 = vshrl.u32 %v3575, 7
    %v3577 = vadd.s32 %v3576, 8
    %3578 = vset.pattern.permute.xlu0 %v3577
    %3579 = vperm.xlu0 %3578, %v3568
    %v3580 = vpop.permute.xlu0 %3579
    %v3581 = vlaneseq
    %v3582 = vshrl.u32 %v3581, 7
    %v3583 = vadd.s32 %v3582, 16
    %3584 = vset.pattern.permute.xlu0 %v3583
    %3585 = vperm.xlu0 %3584, %v3568
    %v3586 = vpop.permute.xlu0 %3585
    %v3587 = vlaneseq
    %v3588 = vshrl.u32 %v3587, 7
    %v3589 = vadd.s32 %v3588, 24
    %3590 = vset.pattern.permute.xlu0 %v3589
    %3591 = vperm.xlu0 %3590, %v3568
    %v3592 = vpop.permute.xlu0 %3591
    %v3593 = vperm.slane %v83, 7
    %v3594 = vlaneseq
    %v3595 = vshrl.u32 %v3594, 7
    %3597 = vset.pattern.permute.xlu0 %v3595
    %3598 = vperm.xlu0 %3597, %v3593
    %v3599 = vpop.permute.xlu0 %3598
    %v3600 = vlaneseq
    %v3601 = vshrl.u32 %v3600, 7
    %v3602 = vadd.s32 %v3601, 8
    %3603 = vset.pattern.permute.xlu0 %v3602
    %3604 = vperm.xlu0 %3603, %v3593
    %v3605 = vpop.permute.xlu0 %3604
    %v3606 = vlaneseq
    %v3607 = vshrl.u32 %v3606, 7
    %v3608 = vadd.s32 %v3607, 16
    %3609 = vset.pattern.permute.xlu0 %v3608
    %3610 = vperm.xlu0 %3609, %v3593
    %v3611 = vpop.permute.xlu0 %3610
    %v3612 = vlaneseq
    %v3613 = vshrl.u32 %v3612, 7
    %v3614 = vadd.s32 %v3613, 24
    %3615 = vset.pattern.permute.xlu0 %v3614
    %3616 = vperm.xlu0 %3615, %v3593
    %v3617 = vpop.permute.xlu0 %3616
    %v4130 = vmul.f32 %v386, %v424
    %v4131 = vmul.f32 %v387, %v430
    %v4132 = vmul.f32 %v388, %v436
    %v4133 = vmul.f32 %v389, %v442
    %v4134 = vmul.f32 %v386, %v449
    %v4135 = vmul.f32 %v387, %v455
    %v4136 = vmul.f32 %v388, %v461
    %v4137 = vmul.f32 %v389, %v467
    %v4138 = vmul.f32 %v386, %v474
    %v4139 = vmul.f32 %v387, %v480
    %v4140 = vmul.f32 %v388, %v486
    %v4141 = vmul.f32 %v389, %v492
    %v4142 = vmul.f32 %v386, %v499
    %v4143 = vmul.f32 %v387, %v505
    %v4144 = vmul.f32 %v388, %v511
    %v4145 = vmul.f32 %v389, %v517
    %v4146 = vmul.f32 %v386, %v524
    %v4147 = vmul.f32 %v387, %v530
    %v4148 = vmul.f32 %v388, %v536
    %v4149 = vmul.f32 %v389, %v542
    %v4150 = vmul.f32 %v386, %v549
    %v4151 = vmul.f32 %v387, %v555
    %v4152 = vmul.f32 %v388, %v561
    %v4153 = vmul.f32 %v389, %v567
    %v4154 = vmul.f32 %v386, %v574
    %v4155 = vmul.f32 %v387, %v580
    %v4156 = vmul.f32 %v388, %v586
    %v4157 = vmul.f32 %v389, %v592
    %v4158 = vmul.f32 %v386, %v599
    %v4159 = vmul.f32 %v387, %v605
    %v4160 = vmul.f32 %v388, %v611
    %v4161 = vmul.f32 %v389, %v617
    %v4162 = vmul.f32 %v386, %v624
    %v4163 = vmul.f32 %v387, %v630
    %v4164 = vmul.f32 %v388, %v636
    %v4165 = vmul.f32 %v389, %v642
    %v4166 = vmul.f32 %v386, %v649
    %v4167 = vmul.f32 %v387, %v655
    %v4168 = vmul.f32 %v388, %v661
    %v4169 = vmul.f32 %v389, %v667
    %v4170 = vmul.f32 %v386, %v674
    %v4171 = vmul.f32 %v387, %v680
    %v4172 = vmul.f32 %v388, %v686
    %v4173 = vmul.f32 %v389, %v692
    %v4174 = vmul.f32 %v386, %v699
    %v4175 = vmul.f32 %v387, %v705
    %v4176 = vmul.f32 %v388, %v711
    %v4177 = vmul.f32 %v389, %v717
    %v4178 = vmul.f32 %v386, %v724
    %v4179 = vmul.f32 %v387, %v730
    %v4180 = vmul.f32 %v388, %v736
    %v4181 = vmul.f32 %v389, %v742
    %v4182 = vmul.f32 %v386, %v749
    %v4183 = vmul.f32 %v387, %v755
    %v4184 = vmul.f32 %v388, %v761
    %v4185 = vmul.f32 %v389, %v767
    %v4186 = vmul.f32 %v386, %v774
    %v4187 = vmul.f32 %v387, %v780
    %v4188 = vmul.f32 %v388, %v786
    %v4189 = vmul.f32 %v389, %v792
    %v4190 = vmul.f32 %v386, %v799
    %v4191 = vmul.f32 %v387, %v805
    %v4192 = vmul.f32 %v388, %v811
    %v4193 = vmul.f32 %v389, %v817
    %v4194 = vmul.f32 %v386, %v824
    %v4195 = vmul.f32 %v387, %v830
    %v4196 = vmul.f32 %v388, %v836
    %v4197 = vmul.f32 %v389, %v842
    %v4198 = vmul.f32 %v386, %v849
    %v4199 = vmul.f32 %v387, %v855
    %v4200 = vmul.f32 %v388, %v861
    %v4201 = vmul.f32 %v389, %v867
    %v4202 = vmul.f32 %v386, %v874
    %v4203 = vmul.f32 %v387, %v880
    %v4204 = vmul.f32 %v388, %v886
    %v4205 = vmul.f32 %v389, %v892
    %v4206 = vmul.f32 %v386, %v899
    %v4207 = vmul.f32 %v387, %v905
    %v4208 = vmul.f32 %v388, %v911
    %v4209 = vmul.f32 %v389, %v917
    %v4210 = vmul.f32 %v386, %v924
    %v4211 = vmul.f32 %v387, %v930
    %v4212 = vmul.f32 %v388, %v936
    %v4213 = vmul.f32 %v389, %v942
    %v4214 = vmul.f32 %v386, %v949
    %v4215 = vmul.f32 %v387, %v955
    %v4216 = vmul.f32 %v388, %v961
    %v4217 = vmul.f32 %v389, %v967
    %v4218 = vmul.f32 %v386, %v974
    %v4219 = vmul.f32 %v387, %v980
    %v4220 = vmul.f32 %v388, %v986
    %v4221 = vmul.f32 %v389, %v992
    %v4222 = vmul.f32 %v386, %v999
    %v4223 = vmul.f32 %v387, %v1005
    %v4224 = vmul.f32 %v388, %v1011
    %v4225 = vmul.f32 %v389, %v1017
    %v4226 = vmul.f32 %v386, %v1024
    %v4227 = vmul.f32 %v387, %v1030
    %v4228 = vmul.f32 %v388, %v1036
    %v4229 = vmul.f32 %v389, %v1042
    %v4230 = vmul.f32 %v386, %v1049
    %v4231 = vmul.f32 %v387, %v1055
    %v4232 = vmul.f32 %v388, %v1061
    %v4233 = vmul.f32 %v389, %v1067
    %v4234 = vmul.f32 %v386, %v1074
    %v4235 = vmul.f32 %v387, %v1080
    %v4236 = vmul.f32 %v388, %v1086
    %v4237 = vmul.f32 %v389, %v1092
    %v4238 = vmul.f32 %v386, %v1099
    %v4239 = vmul.f32 %v387, %v1105
    %v4240 = vmul.f32 %v388, %v1111
    %v4241 = vmul.f32 %v389, %v1117
    %v4242 = vmul.f32 %v386, %v1124
    %v4243 = vmul.f32 %v387, %v1130
    %v4244 = vmul.f32 %v388, %v1136
    %v4245 = vmul.f32 %v389, %v1142
    %v4246 = vmul.f32 %v386, %v1149
    %v4247 = vmul.f32 %v387, %v1155
    %v4248 = vmul.f32 %v388, %v1161
    %v4249 = vmul.f32 %v389, %v1167
    %v4250 = vmul.f32 %v386, %v1174
    %v4251 = vmul.f32 %v387, %v1180
    %v4252 = vmul.f32 %v388, %v1186
    %v4253 = vmul.f32 %v389, %v1192
    %v4254 = vmul.f32 %v386, %v1199
    %v4255 = vmul.f32 %v387, %v1205
    %v4256 = vmul.f32 %v388, %v1211
    %v4257 = vmul.f32 %v389, %v1217
    %v4258 = vmul.f32 %v390, %v1224
    %v4259 = vmul.f32 %v391, %v1230
    %v4260 = vmul.f32 %v392, %v1236
    %v4261 = vmul.f32 %v393, %v1242
    %v4262 = vmul.f32 %v390, %v1249
    %v4263 = vmul.f32 %v391, %v1255
    %v4264 = vmul.f32 %v392, %v1261
    %v4265 = vmul.f32 %v393, %v1267
    %v4266 = vmul.f32 %v390, %v1274
    %v4267 = vmul.f32 %v391, %v1280
    %v4268 = vmul.f32 %v392, %v1286
    %v4269 = vmul.f32 %v393, %v1292
    %v4270 = vmul.f32 %v390, %v1299
    %v4271 = vmul.f32 %v391, %v1305
    %v4272 = vmul.f32 %v392, %v1311
    %v4273 = vmul.f32 %v393, %v1317
    %v4274 = vmul.f32 %v390, %v1324
    %v4275 = vmul.f32 %v391, %v1330
    %v4276 = vmul.f32 %v392, %v1336
    %v4277 = vmul.f32 %v393, %v1342
    %v4278 = vmul.f32 %v390, %v1349
    %v4279 = vmul.f32 %v391, %v1355
    %v4280 = vmul.f32 %v392, %v1361
    %v4281 = vmul.f32 %v393, %v1367
    %v4282 = vmul.f32 %v390, %v1374
    %v4283 = vmul.f32 %v391, %v1380
    %v4284 = vmul.f32 %v392, %v1386
    %v4285 = vmul.f32 %v393, %v1392
    %v4286 = vmul.f32 %v390, %v1399
    %v4287 = vmul.f32 %v391, %v1405
    %v4288 = vmul.f32 %v392, %v1411
    %v4289 = vmul.f32 %v393, %v1417
    %v4290 = vmul.f32 %v390, %v1424
    %v4291 = vmul.f32 %v391, %v1430
    %v4292 = vmul.f32 %v392, %v1436
    %v4293 = vmul.f32 %v393, %v1442
    %v4294 = vmul.f32 %v390, %v1449
    %v4295 = vmul.f32 %v391, %v1455
    %v4296 = vmul.f32 %v392, %v1461
    %v4297 = vmul.f32 %v393, %v1467
    %v4298 = vmul.f32 %v390, %v1474
    %v4299 = vmul.f32 %v391, %v1480
    %v4300 = vmul.f32 %v392, %v1486
    %v4301 = vmul.f32 %v393, %v1492
    %v4302 = vmul.f32 %v390, %v1499
    %v4303 = vmul.f32 %v391, %v1505
    %v4304 = vmul.f32 %v392, %v1511
    %v4305 = vmul.f32 %v393, %v1517
    %v4306 = vmul.f32 %v390, %v1524
    %v4307 = vmul.f32 %v391, %v1530
    %v4308 = vmul.f32 %v392, %v1536
    %v4309 = vmul.f32 %v393, %v1542
    %v4310 = vmul.f32 %v390, %v1549
    %v4311 = vmul.f32 %v391, %v1555
    %v4312 = vmul.f32 %v392, %v1561
    %v4313 = vmul.f32 %v393, %v1567
    %v4314 = vmul.f32 %v390, %v1574
    %v4315 = vmul.f32 %v391, %v1580
    %v4316 = vmul.f32 %v392, %v1586
    %v4317 = vmul.f32 %v393, %v1592
    %v4318 = vmul.f32 %v390, %v1599
    %v4319 = vmul.f32 %v391, %v1605
    %v4320 = vmul.f32 %v392, %v1611
    %v4321 = vmul.f32 %v393, %v1617
    %v4322 = vmul.f32 %v390, %v1624
    %v4323 = vmul.f32 %v391, %v1630
    %v4324 = vmul.f32 %v392, %v1636
    %v4325 = vmul.f32 %v393, %v1642
    %v4326 = vmul.f32 %v390, %v1649
    %v4327 = vmul.f32 %v391, %v1655
    %v4328 = vmul.f32 %v392, %v1661
    %v4329 = vmul.f32 %v393, %v1667
    %v4330 = vmul.f32 %v390, %v1674
    %v4331 = vmul.f32 %v391, %v1680
    %v4332 = vmul.f32 %v392, %v1686
    %v4333 = vmul.f32 %v393, %v1692
    %v4334 = vmul.f32 %v390, %v1699
    %v4335 = vmul.f32 %v391, %v1705
    %v4336 = vmul.f32 %v392, %v1711
    %v4337 = vmul.f32 %v393, %v1717
    %v4338 = vmul.f32 %v390, %v1724
    %v4339 = vmul.f32 %v391, %v1730
    %v4340 = vmul.f32 %v392, %v1736
    %v4341 = vmul.f32 %v393, %v1742
    %v4342 = vmul.f32 %v390, %v1749
    %v4343 = vmul.f32 %v391, %v1755
    %v4344 = vmul.f32 %v392, %v1761
    %v4345 = vmul.f32 %v393, %v1767
    %v4346 = vmul.f32 %v390, %v1774
    %v4347 = vmul.f32 %v391, %v1780
    %v4348 = vmul.f32 %v392, %v1786
    %v4349 = vmul.f32 %v393, %v1792
    %v4350 = vmul.f32 %v390, %v1799
    %v4351 = vmul.f32 %v391, %v1805
    %v4352 = vmul.f32 %v392, %v1811
    %v4353 = vmul.f32 %v393, %v1817
    %v4354 = vmul.f32 %v390, %v1824
    %v4355 = vmul.f32 %v391, %v1830
    %v4356 = vmul.f32 %v392, %v1836
    %v4357 = vmul.f32 %v393, %v1842
    %v4358 = vmul.f32 %v390, %v1849
    %v4359 = vmul.f32 %v391, %v1855
    %v4360 = vmul.f32 %v392, %v1861
    %v4361 = vmul.f32 %v393, %v1867
    %v4362 = vmul.f32 %v390, %v1874
    %v4363 = vmul.f32 %v391, %v1880
    %v4364 = vmul.f32 %v392, %v1886
    %v4365 = vmul.f32 %v393, %v1892
    %v4366 = vmul.f32 %v390, %v1899
    %v4367 = vmul.f32 %v391, %v1905
    %v4368 = vmul.f32 %v392, %v1911
    %v4369 = vmul.f32 %v393, %v1917
    %v4370 = vmul.f32 %v390, %v1924
    %v4371 = vmul.f32 %v391, %v1930
    %v4372 = vmul.f32 %v392, %v1936
    %v4373 = vmul.f32 %v393, %v1942
    %v4374 = vmul.f32 %v390, %v1949
    %v4375 = vmul.f32 %v391, %v1955
    %v4376 = vmul.f32 %v392, %v1961
    %v4377 = vmul.f32 %v393, %v1967
    %v4378 = vmul.f32 %v390, %v1974
    %v4379 = vmul.f32 %v391, %v1980
    %v4380 = vmul.f32 %v392, %v1986
    %v4381 = vmul.f32 %v393, %v1992
    %v4382 = vmul.f32 %v390, %v1999
    %v4383 = vmul.f32 %v391, %v2005
    %v4384 = vmul.f32 %v392, %v2011
    %v4385 = vmul.f32 %v393, %v2017
    %v4386 = vmul.f32 %v394, %v2024
    %v4387 = vmul.f32 %v395, %v2030
    %v4388 = vmul.f32 %v396, %v2036
    %v4389 = vmul.f32 %v397, %v2042
    %v4390 = vmul.f32 %v394, %v2049
    %v4391 = vmul.f32 %v395, %v2055
    %v4392 = vmul.f32 %v396, %v2061
    %v4393 = vmul.f32 %v397, %v2067
    %v4394 = vmul.f32 %v394, %v2074
    %v4395 = vmul.f32 %v395, %v2080
    %v4396 = vmul.f32 %v396, %v2086
    %v4397 = vmul.f32 %v397, %v2092
    %v4398 = vmul.f32 %v394, %v2099
    %v4399 = vmul.f32 %v395, %v2105
    %v4400 = vmul.f32 %v396, %v2111
    %v4401 = vmul.f32 %v397, %v2117
    %v4402 = vmul.f32 %v394, %v2124
    %v4403 = vmul.f32 %v395, %v2130
    %v4404 = vmul.f32 %v396, %v2136
    %v4405 = vmul.f32 %v397, %v2142
    %v4406 = vmul.f32 %v394, %v2149
    %v4407 = vmul.f32 %v395, %v2155
    %v4408 = vmul.f32 %v396, %v2161
    %v4409 = vmul.f32 %v397, %v2167
    %v4410 = vmul.f32 %v394, %v2174
    %v4411 = vmul.f32 %v395, %v2180
    %v4412 = vmul.f32 %v396, %v2186
    %v4413 = vmul.f32 %v397, %v2192
    %v4414 = vmul.f32 %v394, %v2199
    %v4415 = vmul.f32 %v395, %v2205
    %v4416 = vmul.f32 %v396, %v2211
    %v4417 = vmul.f32 %v397, %v2217
    %v4418 = vmul.f32 %v394, %v2224
    %v4419 = vmul.f32 %v395, %v2230
    %v4420 = vmul.f32 %v396, %v2236
    %v4421 = vmul.f32 %v397, %v2242
    %v4422 = vmul.f32 %v394, %v2249
    %v4423 = vmul.f32 %v395, %v2255
    %v4424 = vmul.f32 %v396, %v2261
    %v4425 = vmul.f32 %v397, %v2267
    %v4426 = vmul.f32 %v394, %v2274
    %v4427 = vmul.f32 %v395, %v2280
    %v4428 = vmul.f32 %v396, %v2286
    %v4429 = vmul.f32 %v397, %v2292
    %v4430 = vmul.f32 %v394, %v2299
    %v4431 = vmul.f32 %v395, %v2305
    %v4432 = vmul.f32 %v396, %v2311
    %v4433 = vmul.f32 %v397, %v2317
    %v4434 = vmul.f32 %v394, %v2324
    %v4435 = vmul.f32 %v395, %v2330
    %v4436 = vmul.f32 %v396, %v2336
    %v4437 = vmul.f32 %v397, %v2342
    %v4438 = vmul.f32 %v394, %v2349
    %v4439 = vmul.f32 %v395, %v2355
    %v4440 = vmul.f32 %v396, %v2361
    %v4441 = vmul.f32 %v397, %v2367
    %v4442 = vmul.f32 %v394, %v2374
    %v4443 = vmul.f32 %v395, %v2380
    %v4444 = vmul.f32 %v396, %v2386
    %v4445 = vmul.f32 %v397, %v2392
    %v4446 = vmul.f32 %v394, %v2399
    %v4447 = vmul.f32 %v395, %v2405
    %v4448 = vmul.f32 %v396, %v2411
    %v4449 = vmul.f32 %v397, %v2417
    %v4450 = vmul.f32 %v394, %v2424
    %v4451 = vmul.f32 %v395, %v2430
    %v4452 = vmul.f32 %v396, %v2436
    %v4453 = vmul.f32 %v397, %v2442
    %v4454 = vmul.f32 %v394, %v2449
    %v4455 = vmul.f32 %v395, %v2455
    %v4456 = vmul.f32 %v396, %v2461
    %v4457 = vmul.f32 %v397, %v2467
    %v4458 = vmul.f32 %v394, %v2474
    %v4459 = vmul.f32 %v395, %v2480
    %v4460 = vmul.f32 %v396, %v2486
    %v4461 = vmul.f32 %v397, %v2492
    %v4462 = vmul.f32 %v394, %v2499
    %v4463 = vmul.f32 %v395, %v2505
    %v4464 = vmul.f32 %v396, %v2511
    %v4465 = vmul.f32 %v397, %v2517
    %v4466 = vmul.f32 %v394, %v2524
    %v4467 = vmul.f32 %v395, %v2530
    %v4468 = vmul.f32 %v396, %v2536
    %v4469 = vmul.f32 %v397, %v2542
    %v4470 = vmul.f32 %v394, %v2549
    %v4471 = vmul.f32 %v395, %v2555
    %v4472 = vmul.f32 %v396, %v2561
    %v4473 = vmul.f32 %v397, %v2567
    %v4474 = vmul.f32 %v394, %v2574
    %v4475 = vmul.f32 %v395, %v2580
    %v4476 = vmul.f32 %v396, %v2586
    %v4477 = vmul.f32 %v397, %v2592
    %v4478 = vmul.f32 %v394, %v2599
    %v4479 = vmul.f32 %v395, %v2605
    %v4480 = vmul.f32 %v396, %v2611
    %v4481 = vmul.f32 %v397, %v2617
    %v4482 = vmul.f32 %v394, %v2624
    %v4483 = vmul.f32 %v395, %v2630
    %v4484 = vmul.f32 %v396, %v2636
    %v4485 = vmul.f32 %v397, %v2642
    %v4486 = vmul.f32 %v394, %v2649
    %v4487 = vmul.f32 %v395, %v2655
    %v4488 = vmul.f32 %v396, %v2661
    %v4489 = vmul.f32 %v397, %v2667
    %v4490 = vmul.f32 %v394, %v2674
    %v4491 = vmul.f32 %v395, %v2680
    %v4492 = vmul.f32 %v396, %v2686
    %v4493 = vmul.f32 %v397, %v2692
    %v4494 = vmul.f32 %v394, %v2699
    %v4495 = vmul.f32 %v395, %v2705
    %v4496 = vmul.f32 %v396, %v2711
    %v4497 = vmul.f32 %v397, %v2717
    %v4498 = vmul.f32 %v394, %v2724
    %v4499 = vmul.f32 %v395, %v2730
    %v4500 = vmul.f32 %v396, %v2736
    %v4501 = vmul.f32 %v397, %v2742
    %v4502 = vmul.f32 %v394, %v2749
    %v4503 = vmul.f32 %v395, %v2755
    %v4504 = vmul.f32 %v396, %v2761
    %v4505 = vmul.f32 %v397, %v2767
    %v4506 = vmul.f32 %v394, %v2774
    %v4507 = vmul.f32 %v395, %v2780
    %v4508 = vmul.f32 %v396, %v2786
    %v4509 = vmul.f32 %v397, %v2792
    %v4510 = vmul.f32 %v394, %v2799
    %v4511 = vmul.f32 %v395, %v2805
    %v4512 = vmul.f32 %v396, %v2811
    %v4513 = vmul.f32 %v397, %v2817
    %v4514 = vmul.f32 %v398, %v2824
    %v4515 = vmul.f32 %v399, %v2830
    %v4516 = vmul.f32 %v400, %v2836
    %v4517 = vmul.f32 %v401, %v2842
    %v4518 = vmul.f32 %v398, %v2849
    %v4519 = vmul.f32 %v399, %v2855
    %v4520 = vmul.f32 %v400, %v2861
    %v4521 = vmul.f32 %v401, %v2867
    %v4522 = vmul.f32 %v398, %v2874
    %v4523 = vmul.f32 %v399, %v2880
    %v4524 = vmul.f32 %v400, %v2886
    %v4525 = vmul.f32 %v401, %v2892
    %v4526 = vmul.f32 %v398, %v2899
    %v4527 = vmul.f32 %v399, %v2905
    %v4528 = vmul.f32 %v400, %v2911
    %v4529 = vmul.f32 %v401, %v2917
    %v4530 = vmul.f32 %v398, %v2924
    %v4531 = vmul.f32 %v399, %v2930
    %v4532 = vmul.f32 %v400, %v2936
    %v4533 = vmul.f32 %v401, %v2942
    %v4534 = vmul.f32 %v398, %v2949
    %v4535 = vmul.f32 %v399, %v2955
    %v4536 = vmul.f32 %v400, %v2961
    %v4537 = vmul.f32 %v401, %v2967
    %v4538 = vmul.f32 %v398, %v2974
    %v4539 = vmul.f32 %v399, %v2980
    %v4540 = vmul.f32 %v400, %v2986
    %v4541 = vmul.f32 %v401, %v2992
    %v4542 = vmul.f32 %v398, %v2999
    %v4543 = vmul.f32 %v399, %v3005
    %v4544 = vmul.f32 %v400, %v3011
    %v4545 = vmul.f32 %v401, %v3017
    %v4546 = vmul.f32 %v398, %v3024
    %v4547 = vmul.f32 %v399, %v3030
    %v4548 = vmul.f32 %v400, %v3036
    %v4549 = vmul.f32 %v401, %v3042
    %v4550 = vmul.f32 %v398, %v3049
    %v4551 = vmul.f32 %v399, %v3055
    %v4552 = vmul.f32 %v400, %v3061
    %v4553 = vmul.f32 %v401, %v3067
    %v4554 = vmul.f32 %v398, %v3074
    %v4555 = vmul.f32 %v399, %v3080
    %v4556 = vmul.f32 %v400, %v3086
    %v4557 = vmul.f32 %v401, %v3092
    %v4558 = vmul.f32 %v398, %v3099
    %v4559 = vmul.f32 %v399, %v3105
    %v4560 = vmul.f32 %v400, %v3111
    %v4561 = vmul.f32 %v401, %v3117
    %v4562 = vmul.f32 %v398, %v3124
    %v4563 = vmul.f32 %v399, %v3130
    %v4564 = vmul.f32 %v400, %v3136
    %v4565 = vmul.f32 %v401, %v3142
    %v4566 = vmul.f32 %v398, %v3149
    %v4567 = vmul.f32 %v399, %v3155
    %v4568 = vmul.f32 %v400, %v3161
    %v4569 = vmul.f32 %v401, %v3167
    %v4570 = vmul.f32 %v398, %v3174
    %v4571 = vmul.f32 %v399, %v3180
    %v4572 = vmul.f32 %v400, %v3186
    %v4573 = vmul.f32 %v401, %v3192
    %v4574 = vmul.f32 %v398, %v3199
    %v4575 = vmul.f32 %v399, %v3205
    %v4576 = vmul.f32 %v400, %v3211
    %v4577 = vmul.f32 %v401, %v3217
    %v4578 = vmul.f32 %v398, %v3224
    %v4579 = vmul.f32 %v399, %v3230
    %v4580 = vmul.f32 %v400, %v3236
    %v4581 = vmul.f32 %v401, %v3242
    %v4582 = vmul.f32 %v398, %v3249
    %v4583 = vmul.f32 %v399, %v3255
    %v4584 = vmul.f32 %v400, %v3261
    %v4585 = vmul.f32 %v401, %v3267
    %v4586 = vmul.f32 %v398, %v3274
    %v4587 = vmul.f32 %v399, %v3280
    %v4588 = vmul.f32 %v400, %v3286
    %v4589 = vmul.f32 %v401, %v3292
    %v4590 = vmul.f32 %v398, %v3299
    %v4591 = vmul.f32 %v399, %v3305
    %v4592 = vmul.f32 %v400, %v3311
    %v4593 = vmul.f32 %v401, %v3317
    %v4594 = vmul.f32 %v398, %v3324
    %v4595 = vmul.f32 %v399, %v3330
    %v4596 = vmul.f32 %v400, %v3336
    %v4597 = vmul.f32 %v401, %v3342
    %v4598 = vmul.f32 %v398, %v3349
    %v4599 = vmul.f32 %v399, %v3355
    %v4600 = vmul.f32 %v400, %v3361
    %v4601 = vmul.f32 %v401, %v3367
    %v4602 = vmul.f32 %v398, %v3374
    %v4603 = vmul.f32 %v399, %v3380
    %v4604 = vmul.f32 %v400, %v3386
    %v4605 = vmul.f32 %v401, %v3392
    %v4606 = vmul.f32 %v398, %v3399
    %v4607 = vmul.f32 %v399, %v3405
    %v4608 = vmul.f32 %v400, %v3411
    %v4609 = vmul.f32 %v401, %v3417
    %v4610 = vmul.f32 %v398, %v3424
    %v4611 = vmul.f32 %v399, %v3430
    %v4612 = vmul.f32 %v400, %v3436
    %v4613 = vmul.f32 %v401, %v3442
    %v4614 = vmul.f32 %v398, %v3449
    %v4615 = vmul.f32 %v399, %v3455
    %v4616 = vmul.f32 %v400, %v3461
    %v4617 = vmul.f32 %v401, %v3467
    %v4618 = vmul.f32 %v398, %v3474
    %v4619 = vmul.f32 %v399, %v3480
    %v4620 = vmul.f32 %v400, %v3486
    %v4621 = vmul.f32 %v401, %v3492
    %v4622 = vmul.f32 %v398, %v3499
    %v4623 = vmul.f32 %v399, %v3505
    %v4624 = vmul.f32 %v400, %v3511
    %v4625 = vmul.f32 %v401, %v3517
    %v4626 = vmul.f32 %v398, %v3524
    %v4627 = vmul.f32 %v399, %v3530
    %v4628 = vmul.f32 %v400, %v3536
    %v4629 = vmul.f32 %v401, %v3542
    %v4630 = vmul.f32 %v398, %v3549
    %v4631 = vmul.f32 %v399, %v3555
    %v4632 = vmul.f32 %v400, %v3561
    %v4633 = vmul.f32 %v401, %v3567
    %v4634 = vmul.f32 %v398, %v3574
    %v4635 = vmul.f32 %v399, %v3580
    %v4636 = vmul.f32 %v400, %v3586
    %v4637 = vmul.f32 %v401, %v3592
    %v4638 = vmul.f32 %v398, %v3599
    %v4639 = vmul.f32 %v399, %v3605
    %v4640 = vmul.f32 %v400, %v3611
    %v4641 = vmul.f32 %v401, %v3617
    %5154 = vset.pattern.permute.xlu0 0
    %5155 = vperm.xlu0 %5154, %v4130
    %v5156 = vpop.permute.xlu0 %5155
    %5157 = vset.pattern.permute.xlu0 0
    %5158 = vperm.xlu0 %5157, %v4131
    %v5159 = vpop.permute.xlu0 %5158
    %5160 = vset.pattern.permute.xlu0 0
    %5161 = vperm.xlu0 %5160, %v4132
    %v5162 = vpop.permute.xlu0 %5161
    %5163 = vset.pattern.permute.xlu0 0
    %5164 = vperm.xlu0 %5163, %v4133
    %v5165 = vpop.permute.xlu0 %5164
    %5166 = vset.pattern.permute.xlu0 0
    %5167 = vperm.xlu0 %5166, %v4134
    %v5168 = vpop.permute.xlu0 %5167
    %5169 = vset.pattern.permute.xlu0 0
    %5170 = vperm.xlu0 %5169, %v4135
    %v5171 = vpop.permute.xlu0 %5170
    %5172 = vset.pattern.permute.xlu0 0
    %5173 = vperm.xlu0 %5172, %v4136
    %v5174 = vpop.permute.xlu0 %5173
    %5175 = vset.pattern.permute.xlu0 0
    %5176 = vperm.xlu0 %5175, %v4137
    %v5177 = vpop.permute.xlu0 %5176
    %5178 = vset.pattern.permute.xlu0 0
    %5179 = vperm.xlu0 %5178, %v4138
    %v5180 = vpop.permute.xlu0 %5179
    %5181 = vset.pattern.permute.xlu0 0
    %5182 = vperm.xlu0 %5181, %v4139
    %v5183 = vpop.permute.xlu0 %5182
    %5184 = vset.pattern.permute.xlu0 0
    %5185 = vperm.xlu0 %5184, %v4140
    %v5186 = vpop.permute.xlu0 %5185
    %5187 = vset.pattern.permute.xlu0 0
    %5188 = vperm.xlu0 %5187, %v4141
    %v5189 = vpop.permute.xlu0 %5188
    %5190 = vset.pattern.permute.xlu0 0
    %5191 = vperm.xlu0 %5190, %v4142
    %v5192 = vpop.permute.xlu0 %5191
    %5193 = vset.pattern.permute.xlu0 0
    %5194 = vperm.xlu0 %5193, %v4143
    %v5195 = vpop.permute.xlu0 %5194
    %5196 = vset.pattern.permute.xlu0 0
    %5197 = vperm.xlu0 %5196, %v4144
    %v5198 = vpop.permute.xlu0 %5197
    %5199 = vset.pattern.permute.xlu0 0
    %5200 = vperm.xlu0 %5199, %v4145
    %v5201 = vpop.permute.xlu0 %5200
    %5202 = vset.pattern.permute.xlu0 0
    %5203 = vperm.xlu0 %5202, %v4146
    %v5204 = vpop.permute.xlu0 %5203
    %5205 = vset.pattern.permute.xlu0 0
    %5206 = vperm.xlu0 %5205, %v4147
    %v5207 = vpop.permute.xlu0 %5206
    %5208 = vset.pattern.permute.xlu0 0
    %5209 = vperm.xlu0 %5208, %v4148
    %v5210 = vpop.permute.xlu0 %5209
    %5211 = vset.pattern.permute.xlu0 0
    %5212 = vperm.xlu0 %5211, %v4149
    %v5213 = vpop.permute.xlu0 %5212
    %5214 = vset.pattern.permute.xlu0 0
    %5215 = vperm.xlu0 %5214, %v4150
    %v5216 = vpop.permute.xlu0 %5215
    %5217 = vset.pattern.permute.xlu0 0
    %5218 = vperm.xlu0 %5217, %v4151
    %v5219 = vpop.permute.xlu0 %5218
    %5220 = vset.pattern.permute.xlu0 0
    %5221 = vperm.xlu0 %5220, %v4152
    %v5222 = vpop.permute.xlu0 %5221
    %5223 = vset.pattern.permute.xlu0 0
    %5224 = vperm.xlu0 %5223, %v4153
    %v5225 = vpop.permute.xlu0 %5224
    %5226 = vset.pattern.permute.xlu0 0
    %5227 = vperm.xlu0 %5226, %v4154
    %v5228 = vpop.permute.xlu0 %5227
    %5229 = vset.pattern.permute.xlu0 0
    %5230 = vperm.xlu0 %5229, %v4155
    %v5231 = vpop.permute.xlu0 %5230
    %5232 = vset.pattern.permute.xlu0 0
    %5233 = vperm.xlu0 %5232, %v4156
    %v5234 = vpop.permute.xlu0 %5233
    %5235 = vset.pattern.permute.xlu0 0
    %5236 = vperm.xlu0 %5235, %v4157
    %v5237 = vpop.permute.xlu0 %5236
    %5238 = vset.pattern.permute.xlu0 0
    %5239 = vperm.xlu0 %5238, %v4158
    %v5240 = vpop.permute.xlu0 %5239
    %5241 = vset.pattern.permute.xlu0 0
    %5242 = vperm.xlu0 %5241, %v4159
    %v5243 = vpop.permute.xlu0 %5242
    %5244 = vset.pattern.permute.xlu0 0
    %5245 = vperm.xlu0 %5244, %v4160
    %v5246 = vpop.permute.xlu0 %5245
    %5247 = vset.pattern.permute.xlu0 0
    %5248 = vperm.xlu0 %5247, %v4161
    %v5249 = vpop.permute.xlu0 %5248
    %5250 = vset.pattern.permute.xlu0 0
    %5251 = vperm.xlu0 %5250, %v4162
    %v5252 = vpop.permute.xlu0 %5251
    %5253 = vset.pattern.permute.xlu0 0
    %5254 = vperm.xlu0 %5253, %v4163
    %v5255 = vpop.permute.xlu0 %5254
    %5256 = vset.pattern.permute.xlu0 0
    %5257 = vperm.xlu0 %5256, %v4164
    %v5258 = vpop.permute.xlu0 %5257
    %5259 = vset.pattern.permute.xlu0 0
    %5260 = vperm.xlu0 %5259, %v4165
    %v5261 = vpop.permute.xlu0 %5260
    %5262 = vset.pattern.permute.xlu0 0
    %5263 = vperm.xlu0 %5262, %v4166
    %v5264 = vpop.permute.xlu0 %5263
    %5265 = vset.pattern.permute.xlu0 0
    %5266 = vperm.xlu0 %5265, %v4167
    %v5267 = vpop.permute.xlu0 %5266
    %5268 = vset.pattern.permute.xlu0 0
    %5269 = vperm.xlu0 %5268, %v4168
    %v5270 = vpop.permute.xlu0 %5269
    %5271 = vset.pattern.permute.xlu0 0
    %5272 = vperm.xlu0 %5271, %v4169
    %v5273 = vpop.permute.xlu0 %5272
    %5274 = vset.pattern.permute.xlu0 0
    %5275 = vperm.xlu0 %5274, %v4170
    %v5276 = vpop.permute.xlu0 %5275
    %5277 = vset.pattern.permute.xlu0 0
    %5278 = vperm.xlu0 %5277, %v4171
    %v5279 = vpop.permute.xlu0 %5278
    %5280 = vset.pattern.permute.xlu0 0
    %5281 = vperm.xlu0 %5280, %v4172
    %v5282 = vpop.permute.xlu0 %5281
    %5283 = vset.pattern.permute.xlu0 0
    %5284 = vperm.xlu0 %5283, %v4173
    %v5285 = vpop.permute.xlu0 %5284
    %5286 = vset.pattern.permute.xlu0 0
    %5287 = vperm.xlu0 %5286, %v4174
    %v5288 = vpop.permute.xlu0 %5287
    %5289 = vset.pattern.permute.xlu0 0
    %5290 = vperm.xlu0 %5289, %v4175
    %v5291 = vpop.permute.xlu0 %5290
    %5292 = vset.pattern.permute.xlu0 0
    %5293 = vperm.xlu0 %5292, %v4176
    %v5294 = vpop.permute.xlu0 %5293
    %5295 = vset.pattern.permute.xlu0 0
    %5296 = vperm.xlu0 %5295, %v4177
    %v5297 = vpop.permute.xlu0 %5296
    %5298 = vset.pattern.permute.xlu0 0
    %5299 = vperm.xlu0 %5298, %v4178
    %v5300 = vpop.permute.xlu0 %5299
    %5301 = vset.pattern.permute.xlu0 0
    %5302 = vperm.xlu0 %5301, %v4179
    %v5303 = vpop.permute.xlu0 %5302
    %5304 = vset.pattern.permute.xlu0 0
    %5305 = vperm.xlu0 %5304, %v4180
    %v5306 = vpop.permute.xlu0 %5305
    %5307 = vset.pattern.permute.xlu0 0
    %5308 = vperm.xlu0 %5307, %v4181
    %v5309 = vpop.permute.xlu0 %5308
    %5310 = vset.pattern.permute.xlu0 0
    %5311 = vperm.xlu0 %5310, %v4182
    %v5312 = vpop.permute.xlu0 %5311
    %5313 = vset.pattern.permute.xlu0 0
    %5314 = vperm.xlu0 %5313, %v4183
    %v5315 = vpop.permute.xlu0 %5314
    %5316 = vset.pattern.permute.xlu0 0
    %5317 = vperm.xlu0 %5316, %v4184
    %v5318 = vpop.permute.xlu0 %5317
    %5319 = vset.pattern.permute.xlu0 0
    %5320 = vperm.xlu0 %5319, %v4185
    %v5321 = vpop.permute.xlu0 %5320
    %5322 = vset.pattern.permute.xlu0 0
    %5323 = vperm.xlu0 %5322, %v4186
    %v5324 = vpop.permute.xlu0 %5323
    %5325 = vset.pattern.permute.xlu0 0
    %5326 = vperm.xlu0 %5325, %v4187
    %v5327 = vpop.permute.xlu0 %5326
    %5328 = vset.pattern.permute.xlu0 0
    %5329 = vperm.xlu0 %5328, %v4188
    %v5330 = vpop.permute.xlu0 %5329
    %5331 = vset.pattern.permute.xlu0 0
    %5332 = vperm.xlu0 %5331, %v4189
    %v5333 = vpop.permute.xlu0 %5332
    %5334 = vset.pattern.permute.xlu0 0
    %5335 = vperm.xlu0 %5334, %v4190
    %v5336 = vpop.permute.xlu0 %5335
    %5337 = vset.pattern.permute.xlu0 0
    %5338 = vperm.xlu0 %5337, %v4191
    %v5339 = vpop.permute.xlu0 %5338
    %5340 = vset.pattern.permute.xlu0 0
    %5341 = vperm.xlu0 %5340, %v4192
    %v5342 = vpop.permute.xlu0 %5341
    %5343 = vset.pattern.permute.xlu0 0
    %5344 = vperm.xlu0 %5343, %v4193
    %v5345 = vpop.permute.xlu0 %5344
    %5346 = vset.pattern.permute.xlu0 0
    %5347 = vperm.xlu0 %5346, %v4194
    %v5348 = vpop.permute.xlu0 %5347
    %5349 = vset.pattern.permute.xlu0 0
    %5350 = vperm.xlu0 %5349, %v4195
    %v5351 = vpop.permute.xlu0 %5350
    %5352 = vset.pattern.permute.xlu0 0
    %5353 = vperm.xlu0 %5352, %v4196
    %v5354 = vpop.permute.xlu0 %5353
    %5355 = vset.pattern.permute.xlu0 0
    %5356 = vperm.xlu0 %5355, %v4197
    %v5357 = vpop.permute.xlu0 %5356
    %5358 = vset.pattern.permute.xlu0 0
    %5359 = vperm.xlu0 %5358, %v4198
    %v5360 = vpop.permute.xlu0 %5359
    %5361 = vset.pattern.permute.xlu0 0
    %5362 = vperm.xlu0 %5361, %v4199
    %v5363 = vpop.permute.xlu0 %5362
    %5364 = vset.pattern.permute.xlu0 0
    %5365 = vperm.xlu0 %5364, %v4200
    %v5366 = vpop.permute.xlu0 %5365
    %5367 = vset.pattern.permute.xlu0 0
    %5368 = vperm.xlu0 %5367, %v4201
    %v5369 = vpop.permute.xlu0 %5368
    %5370 = vset.pattern.permute.xlu0 0
    %5371 = vperm.xlu0 %5370, %v4202
    %v5372 = vpop.permute.xlu0 %5371
    %5373 = vset.pattern.permute.xlu0 0
    %5374 = vperm.xlu0 %5373, %v4203
    %v5375 = vpop.permute.xlu0 %5374
    %5376 = vset.pattern.permute.xlu0 0
    %5377 = vperm.xlu0 %5376, %v4204
    %v5378 = vpop.permute.xlu0 %5377
    %5379 = vset.pattern.permute.xlu0 0
    %5380 = vperm.xlu0 %5379, %v4205
    %v5381 = vpop.permute.xlu0 %5380
    %5382 = vset.pattern.permute.xlu0 0
    %5383 = vperm.xlu0 %5382, %v4206
    %v5384 = vpop.permute.xlu0 %5383
    %5385 = vset.pattern.permute.xlu0 0
    %5386 = vperm.xlu0 %5385, %v4207
    %v5387 = vpop.permute.xlu0 %5386
    %5388 = vset.pattern.permute.xlu0 0
    %5389 = vperm.xlu0 %5388, %v4208
    %v5390 = vpop.permute.xlu0 %5389
    %5391 = vset.pattern.permute.xlu0 0
    %5392 = vperm.xlu0 %5391, %v4209
    %v5393 = vpop.permute.xlu0 %5392
    %5394 = vset.pattern.permute.xlu0 0
    %5395 = vperm.xlu0 %5394, %v4210
    %v5396 = vpop.permute.xlu0 %5395
    %5397 = vset.pattern.permute.xlu0 0
    %5398 = vperm.xlu0 %5397, %v4211
    %v5399 = vpop.permute.xlu0 %5398
    %5400 = vset.pattern.permute.xlu0 0
    %5401 = vperm.xlu0 %5400, %v4212
    %v5402 = vpop.permute.xlu0 %5401
    %5403 = vset.pattern.permute.xlu0 0
    %5404 = vperm.xlu0 %5403, %v4213
    %v5405 = vpop.permute.xlu0 %5404
    %5406 = vset.pattern.permute.xlu0 0
    %5407 = vperm.xlu0 %5406, %v4214
    %v5408 = vpop.permute.xlu0 %5407
    %5409 = vset.pattern.permute.xlu0 0
    %5410 = vperm.xlu0 %5409, %v4215
    %v5411 = vpop.permute.xlu0 %5410
    %5412 = vset.pattern.permute.xlu0 0
    %5413 = vperm.xlu0 %5412, %v4216
    %v5414 = vpop.permute.xlu0 %5413
    %5415 = vset.pattern.permute.xlu0 0
    %5416 = vperm.xlu0 %5415, %v4217
    %v5417 = vpop.permute.xlu0 %5416
    %5418 = vset.pattern.permute.xlu0 0
    %5419 = vperm.xlu0 %5418, %v4218
    %v5420 = vpop.permute.xlu0 %5419
    %5421 = vset.pattern.permute.xlu0 0
    %5422 = vperm.xlu0 %5421, %v4219
    %v5423 = vpop.permute.xlu0 %5422
    %5424 = vset.pattern.permute.xlu0 0
    %5425 = vperm.xlu0 %5424, %v4220
    %v5426 = vpop.permute.xlu0 %5425
    %5427 = vset.pattern.permute.xlu0 0
    %5428 = vperm.xlu0 %5427, %v4221
    %v5429 = vpop.permute.xlu0 %5428
    %5430 = vset.pattern.permute.xlu0 0
    %5431 = vperm.xlu0 %5430, %v4222
    %v5432 = vpop.permute.xlu0 %5431
    %5433 = vset.pattern.permute.xlu0 0
    %5434 = vperm.xlu0 %5433, %v4223
    %v5435 = vpop.permute.xlu0 %5434
    %5436 = vset.pattern.permute.xlu0 0
    %5437 = vperm.xlu0 %5436, %v4224
    %v5438 = vpop.permute.xlu0 %5437
    %5439 = vset.pattern.permute.xlu0 0
    %5440 = vperm.xlu0 %5439, %v4225
    %v5441 = vpop.permute.xlu0 %5440
    %5442 = vset.pattern.permute.xlu0 0
    %5443 = vperm.xlu0 %5442, %v4226
    %v5444 = vpop.permute.xlu0 %5443
    %5445 = vset.pattern.permute.xlu0 0
    %5446 = vperm.xlu0 %5445, %v4227
    %v5447 = vpop.permute.xlu0 %5446
    %5448 = vset.pattern.permute.xlu0 0
    %5449 = vperm.xlu0 %5448, %v4228
    %v5450 = vpop.permute.xlu0 %5449
    %5451 = vset.pattern.permute.xlu0 0
    %5452 = vperm.xlu0 %5451, %v4229
    %v5453 = vpop.permute.xlu0 %5452
    %5454 = vset.pattern.permute.xlu0 0
    %5455 = vperm.xlu0 %5454, %v4230
    %v5456 = vpop.permute.xlu0 %5455
    %5457 = vset.pattern.permute.xlu0 0
    %5458 = vperm.xlu0 %5457, %v4231
    %v5459 = vpop.permute.xlu0 %5458
    %5460 = vset.pattern.permute.xlu0 0
    %5461 = vperm.xlu0 %5460, %v4232
    %v5462 = vpop.permute.xlu0 %5461
    %5463 = vset.pattern.permute.xlu0 0
    %5464 = vperm.xlu0 %5463, %v4233
    %v5465 = vpop.permute.xlu0 %5464
    %5466 = vset.pattern.permute.xlu0 0
    %5467 = vperm.xlu0 %5466, %v4234
    %v5468 = vpop.permute.xlu0 %5467
    %5469 = vset.pattern.permute.xlu0 0
    %5470 = vperm.xlu0 %5469, %v4235
    %v5471 = vpop.permute.xlu0 %5470
    %5472 = vset.pattern.permute.xlu0 0
    %5473 = vperm.xlu0 %5472, %v4236
    %v5474 = vpop.permute.xlu0 %5473
    %5475 = vset.pattern.permute.xlu0 0
    %5476 = vperm.xlu0 %5475, %v4237
    %v5477 = vpop.permute.xlu0 %5476
    %5478 = vset.pattern.permute.xlu0 0
    %5479 = vperm.xlu0 %5478, %v4238
    %v5480 = vpop.permute.xlu0 %5479
    %5481 = vset.pattern.permute.xlu0 0
    %5482 = vperm.xlu0 %5481, %v4239
    %v5483 = vpop.permute.xlu0 %5482
    %5484 = vset.pattern.permute.xlu0 0
    %5485 = vperm.xlu0 %5484, %v4240
    %v5486 = vpop.permute.xlu0 %5485
    %5487 = vset.pattern.permute.xlu0 0
    %5488 = vperm.xlu0 %5487, %v4241
    %v5489 = vpop.permute.xlu0 %5488
    %5490 = vset.pattern.permute.xlu0 0
    %5491 = vperm.xlu0 %5490, %v4242
    %v5492 = vpop.permute.xlu0 %5491
    %5493 = vset.pattern.permute.xlu0 0
    %5494 = vperm.xlu0 %5493, %v4243
    %v5495 = vpop.permute.xlu0 %5494
    %5496 = vset.pattern.permute.xlu0 0
    %5497 = vperm.xlu0 %5496, %v4244
    %v5498 = vpop.permute.xlu0 %5497
    %5499 = vset.pattern.permute.xlu0 0
    %5500 = vperm.xlu0 %5499, %v4245
    %v5501 = vpop.permute.xlu0 %5500
    %5502 = vset.pattern.permute.xlu0 0
    %5503 = vperm.xlu0 %5502, %v4246
    %v5504 = vpop.permute.xlu0 %5503
    %5505 = vset.pattern.permute.xlu0 0
    %5506 = vperm.xlu0 %5505, %v4247
    %v5507 = vpop.permute.xlu0 %5506
    %5508 = vset.pattern.permute.xlu0 0
    %5509 = vperm.xlu0 %5508, %v4248
    %v5510 = vpop.permute.xlu0 %5509
    %5511 = vset.pattern.permute.xlu0 0
    %5512 = vperm.xlu0 %5511, %v4249
    %v5513 = vpop.permute.xlu0 %5512
    %5514 = vset.pattern.permute.xlu0 0
    %5515 = vperm.xlu0 %5514, %v4250
    %v5516 = vpop.permute.xlu0 %5515
    %5517 = vset.pattern.permute.xlu0 0
    %5518 = vperm.xlu0 %5517, %v4251
    %v5519 = vpop.permute.xlu0 %5518
    %5520 = vset.pattern.permute.xlu0 0
    %5521 = vperm.xlu0 %5520, %v4252
    %v5522 = vpop.permute.xlu0 %5521
    %5523 = vset.pattern.permute.xlu0 0
    %5524 = vperm.xlu0 %5523, %v4253
    %v5525 = vpop.permute.xlu0 %5524
    %5526 = vset.pattern.permute.xlu0 0
    %5527 = vperm.xlu0 %5526, %v4254
    %v5528 = vpop.permute.xlu0 %5527
    %5529 = vset.pattern.permute.xlu0 0
    %5530 = vperm.xlu0 %5529, %v4255
    %v5531 = vpop.permute.xlu0 %5530
    %5532 = vset.pattern.permute.xlu0 0
    %5533 = vperm.xlu0 %5532, %v4256
    %v5534 = vpop.permute.xlu0 %5533
    %5535 = vset.pattern.permute.xlu0 0
    %5536 = vperm.xlu0 %5535, %v4257
    %v5537 = vpop.permute.xlu0 %5536
    %5538 = vset.pattern.permute.xlu0 0
    %5539 = vperm.xlu0 %5538, %v4258
    %v5540 = vpop.permute.xlu0 %5539
    %5541 = vset.pattern.permute.xlu0 0
    %5542 = vperm.xlu0 %5541, %v4259
    %v5543 = vpop.permute.xlu0 %5542
    %5544 = vset.pattern.permute.xlu0 0
    %5545 = vperm.xlu0 %5544, %v4260
    %v5546 = vpop.permute.xlu0 %5545
    %5547 = vset.pattern.permute.xlu0 0
    %5548 = vperm.xlu0 %5547, %v4261
    %v5549 = vpop.permute.xlu0 %5548
    %5550 = vset.pattern.permute.xlu0 0
    %5551 = vperm.xlu0 %5550, %v4262
    %v5552 = vpop.permute.xlu0 %5551
    %5553 = vset.pattern.permute.xlu0 0
    %5554 = vperm.xlu0 %5553, %v4263
    %v5555 = vpop.permute.xlu0 %5554
    %5556 = vset.pattern.permute.xlu0 0
    %5557 = vperm.xlu0 %5556, %v4264
    %v5558 = vpop.permute.xlu0 %5557
    %5559 = vset.pattern.permute.xlu0 0
    %5560 = vperm.xlu0 %5559, %v4265
    %v5561 = vpop.permute.xlu0 %5560
    %5562 = vset.pattern.permute.xlu0 0
    %5563 = vperm.xlu0 %5562, %v4266
    %v5564 = vpop.permute.xlu0 %5563
    %5565 = vset.pattern.permute.xlu0 0
    %5566 = vperm.xlu0 %5565, %v4267
    %v5567 = vpop.permute.xlu0 %5566
    %5568 = vset.pattern.permute.xlu0 0
    %5569 = vperm.xlu0 %5568, %v4268
    %v5570 = vpop.permute.xlu0 %5569
    %5571 = vset.pattern.permute.xlu0 0
    %5572 = vperm.xlu0 %5571, %v4269
    %v5573 = vpop.permute.xlu0 %5572
    %5574 = vset.pattern.permute.xlu0 0
    %5575 = vperm.xlu0 %5574, %v4270
    %v5576 = vpop.permute.xlu0 %5575
    %5577 = vset.pattern.permute.xlu0 0
    %5578 = vperm.xlu0 %5577, %v4271
    %v5579 = vpop.permute.xlu0 %5578
    %5580 = vset.pattern.permute.xlu0 0
    %5581 = vperm.xlu0 %5580, %v4272
    %v5582 = vpop.permute.xlu0 %5581
    %5583 = vset.pattern.permute.xlu0 0
    %5584 = vperm.xlu0 %5583, %v4273
    %v5585 = vpop.permute.xlu0 %5584
    %5586 = vset.pattern.permute.xlu0 0
    %5587 = vperm.xlu0 %5586, %v4274
    %v5588 = vpop.permute.xlu0 %5587
    %5589 = vset.pattern.permute.xlu0 0
    %5590 = vperm.xlu0 %5589, %v4275
    %v5591 = vpop.permute.xlu0 %5590
    %5592 = vset.pattern.permute.xlu0 0
    %5593 = vperm.xlu0 %5592, %v4276
    %v5594 = vpop.permute.xlu0 %5593
    %5595 = vset.pattern.permute.xlu0 0
    %5596 = vperm.xlu0 %5595, %v4277
    %v5597 = vpop.permute.xlu0 %5596
    %5598 = vset.pattern.permute.xlu0 0
    %5599 = vperm.xlu0 %5598, %v4278
    %v5600 = vpop.permute.xlu0 %5599
    %5601 = vset.pattern.permute.xlu0 0
    %5602 = vperm.xlu0 %5601, %v4279
    %v5603 = vpop.permute.xlu0 %5602
    %5604 = vset.pattern.permute.xlu0 0
    %5605 = vperm.xlu0 %5604, %v4280
    %v5606 = vpop.permute.xlu0 %5605
    %5607 = vset.pattern.permute.xlu0 0
    %5608 = vperm.xlu0 %5607, %v4281
    %v5609 = vpop.permute.xlu0 %5608
    %5610 = vset.pattern.permute.xlu0 0
    %5611 = vperm.xlu0 %5610, %v4282
    %v5612 = vpop.permute.xlu0 %5611
    %5613 = vset.pattern.permute.xlu0 0
    %5614 = vperm.xlu0 %5613, %v4283
    %v5615 = vpop.permute.xlu0 %5614
    %5616 = vset.pattern.permute.xlu0 0
    %5617 = vperm.xlu0 %5616, %v4284
    %v5618 = vpop.permute.xlu0 %5617
    %5619 = vset.pattern.permute.xlu0 0
    %5620 = vperm.xlu0 %5619, %v4285
    %v5621 = vpop.permute.xlu0 %5620
    %5622 = vset.pattern.permute.xlu0 0
    %5623 = vperm.xlu0 %5622, %v4286
    %v5624 = vpop.permute.xlu0 %5623
    %5625 = vset.pattern.permute.xlu0 0
    %5626 = vperm.xlu0 %5625, %v4287
    %v5627 = vpop.permute.xlu0 %5626
    %5628 = vset.pattern.permute.xlu0 0
    %5629 = vperm.xlu0 %5628, %v4288
    %v5630 = vpop.permute.xlu0 %5629
    %5631 = vset.pattern.permute.xlu0 0
    %5632 = vperm.xlu0 %5631, %v4289
    %v5633 = vpop.permute.xlu0 %5632
    %5634 = vset.pattern.permute.xlu0 0
    %5635 = vperm.xlu0 %5634, %v4290
    %v5636 = vpop.permute.xlu0 %5635
    %5637 = vset.pattern.permute.xlu0 0
    %5638 = vperm.xlu0 %5637, %v4291
    %v5639 = vpop.permute.xlu0 %5638
    %5640 = vset.pattern.permute.xlu0 0
    %5641 = vperm.xlu0 %5640, %v4292
    %v5642 = vpop.permute.xlu0 %5641
    %5643 = vset.pattern.permute.xlu0 0
    %5644 = vperm.xlu0 %5643, %v4293
    %v5645 = vpop.permute.xlu0 %5644
    %5646 = vset.pattern.permute.xlu0 0
    %5647 = vperm.xlu0 %5646, %v4294
    %v5648 = vpop.permute.xlu0 %5647
    %5649 = vset.pattern.permute.xlu0 0
    %5650 = vperm.xlu0 %5649, %v4295
    %v5651 = vpop.permute.xlu0 %5650
    %5652 = vset.pattern.permute.xlu0 0
    %5653 = vperm.xlu0 %5652, %v4296
    %v5654 = vpop.permute.xlu0 %5653
    %5655 = vset.pattern.permute.xlu0 0
    %5656 = vperm.xlu0 %5655, %v4297
    %v5657 = vpop.permute.xlu0 %5656
    %5658 = vset.pattern.permute.xlu0 0
    %5659 = vperm.xlu0 %5658, %v4298
    %v5660 = vpop.permute.xlu0 %5659
    %5661 = vset.pattern.permute.xlu0 0
    %5662 = vperm.xlu0 %5661, %v4299
    %v5663 = vpop.permute.xlu0 %5662
    %5664 = vset.pattern.permute.xlu0 0
    %5665 = vperm.xlu0 %5664, %v4300
    %v5666 = vpop.permute.xlu0 %5665
    %5667 = vset.pattern.permute.xlu0 0
    %5668 = vperm.xlu0 %5667, %v4301
    %v5669 = vpop.permute.xlu0 %5668
    %5670 = vset.pattern.permute.xlu0 0
    %5671 = vperm.xlu0 %5670, %v4302
    %v5672 = vpop.permute.xlu0 %5671
    %5673 = vset.pattern.permute.xlu0 0
    %5674 = vperm.xlu0 %5673, %v4303
    %v5675 = vpop.permute.xlu0 %5674
    %5676 = vset.pattern.permute.xlu0 0
    %5677 = vperm.xlu0 %5676, %v4304
    %v5678 = vpop.permute.xlu0 %5677
    %5679 = vset.pattern.permute.xlu0 0
    %5680 = vperm.xlu0 %5679, %v4305
    %v5681 = vpop.permute.xlu0 %5680
    %5682 = vset.pattern.permute.xlu0 0
    %5683 = vperm.xlu0 %5682, %v4306
    %v5684 = vpop.permute.xlu0 %5683
    %5685 = vset.pattern.permute.xlu0 0
    %5686 = vperm.xlu0 %5685, %v4307
    %v5687 = vpop.permute.xlu0 %5686
    %5688 = vset.pattern.permute.xlu0 0
    %5689 = vperm.xlu0 %5688, %v4308
    %v5690 = vpop.permute.xlu0 %5689
    %5691 = vset.pattern.permute.xlu0 0
    %5692 = vperm.xlu0 %5691, %v4309
    %v5693 = vpop.permute.xlu0 %5692
    %5694 = vset.pattern.permute.xlu0 0
    %5695 = vperm.xlu0 %5694, %v4310
    %v5696 = vpop.permute.xlu0 %5695
    %5697 = vset.pattern.permute.xlu0 0
    %5698 = vperm.xlu0 %5697, %v4311
    %v5699 = vpop.permute.xlu0 %5698
    %5700 = vset.pattern.permute.xlu0 0
    %5701 = vperm.xlu0 %5700, %v4312
    %v5702 = vpop.permute.xlu0 %5701
    %5703 = vset.pattern.permute.xlu0 0
    %5704 = vperm.xlu0 %5703, %v4313
    %v5705 = vpop.permute.xlu0 %5704
    %5706 = vset.pattern.permute.xlu0 0
    %5707 = vperm.xlu0 %5706, %v4314
    %v5708 = vpop.permute.xlu0 %5707
    %5709 = vset.pattern.permute.xlu0 0
    %5710 = vperm.xlu0 %5709, %v4315
    %v5711 = vpop.permute.xlu0 %5710
    %5712 = vset.pattern.permute.xlu0 0
    %5713 = vperm.xlu0 %5712, %v4316
    %v5714 = vpop.permute.xlu0 %5713
    %5715 = vset.pattern.permute.xlu0 0
    %5716 = vperm.xlu0 %5715, %v4317
    %v5717 = vpop.permute.xlu0 %5716
    %5718 = vset.pattern.permute.xlu0 0
    %5719 = vperm.xlu0 %5718, %v4318
    %v5720 = vpop.permute.xlu0 %5719
    %5721 = vset.pattern.permute.xlu0 0
    %5722 = vperm.xlu0 %5721, %v4319
    %v5723 = vpop.permute.xlu0 %5722
    %5724 = vset.pattern.permute.xlu0 0
    %5725 = vperm.xlu0 %5724, %v4320
    %v5726 = vpop.permute.xlu0 %5725
    %5727 = vset.pattern.permute.xlu0 0
    %5728 = vperm.xlu0 %5727, %v4321
    %v5729 = vpop.permute.xlu0 %5728
    %5730 = vset.pattern.permute.xlu0 0
    %5731 = vperm.xlu0 %5730, %v4322
    %v5732 = vpop.permute.xlu0 %5731
    %5733 = vset.pattern.permute.xlu0 0
    %5734 = vperm.xlu0 %5733, %v4323
    %v5735 = vpop.permute.xlu0 %5734
    %5736 = vset.pattern.permute.xlu0 0
    %5737 = vperm.xlu0 %5736, %v4324
    %v5738 = vpop.permute.xlu0 %5737
    %5739 = vset.pattern.permute.xlu0 0
    %5740 = vperm.xlu0 %5739, %v4325
    %v5741 = vpop.permute.xlu0 %5740
    %5742 = vset.pattern.permute.xlu0 0
    %5743 = vperm.xlu0 %5742, %v4326
    %v5744 = vpop.permute.xlu0 %5743
    %5745 = vset.pattern.permute.xlu0 0
    %5746 = vperm.xlu0 %5745, %v4327
    %v5747 = vpop.permute.xlu0 %5746
    %5748 = vset.pattern.permute.xlu0 0
    %5749 = vperm.xlu0 %5748, %v4328
    %v5750 = vpop.permute.xlu0 %5749
    %5751 = vset.pattern.permute.xlu0 0
    %5752 = vperm.xlu0 %5751, %v4329
    %v5753 = vpop.permute.xlu0 %5752
    %5754 = vset.pattern.permute.xlu0 0
    %5755 = vperm.xlu0 %5754, %v4330
    %v5756 = vpop.permute.xlu0 %5755
    %5757 = vset.pattern.permute.xlu0 0
    %5758 = vperm.xlu0 %5757, %v4331
    %v5759 = vpop.permute.xlu0 %5758
    %5760 = vset.pattern.permute.xlu0 0
    %5761 = vperm.xlu0 %5760, %v4332
    %v5762 = vpop.permute.xlu0 %5761
    %5763 = vset.pattern.permute.xlu0 0
    %5764 = vperm.xlu0 %5763, %v4333
    %v5765 = vpop.permute.xlu0 %5764
    %5766 = vset.pattern.permute.xlu0 0
    %5767 = vperm.xlu0 %5766, %v4334
    %v5768 = vpop.permute.xlu0 %5767
    %5769 = vset.pattern.permute.xlu0 0
    %5770 = vperm.xlu0 %5769, %v4335
    %v5771 = vpop.permute.xlu0 %5770
    %5772 = vset.pattern.permute.xlu0 0
    %5773 = vperm.xlu0 %5772, %v4336
    %v5774 = vpop.permute.xlu0 %5773
    %5775 = vset.pattern.permute.xlu0 0
    %5776 = vperm.xlu0 %5775, %v4337
    %v5777 = vpop.permute.xlu0 %5776
    %5778 = vset.pattern.permute.xlu0 0
    %5779 = vperm.xlu0 %5778, %v4338
    %v5780 = vpop.permute.xlu0 %5779
    %5781 = vset.pattern.permute.xlu0 0
    %5782 = vperm.xlu0 %5781, %v4339
    %v5783 = vpop.permute.xlu0 %5782
    %5784 = vset.pattern.permute.xlu0 0
    %5785 = vperm.xlu0 %5784, %v4340
    %v5786 = vpop.permute.xlu0 %5785
    %5787 = vset.pattern.permute.xlu0 0
    %5788 = vperm.xlu0 %5787, %v4341
    %v5789 = vpop.permute.xlu0 %5788
    %5790 = vset.pattern.permute.xlu0 0
    %5791 = vperm.xlu0 %5790, %v4342
    %v5792 = vpop.permute.xlu0 %5791
    %5793 = vset.pattern.permute.xlu0 0
    %5794 = vperm.xlu0 %5793, %v4343
    %v5795 = vpop.permute.xlu0 %5794
    %5796 = vset.pattern.permute.xlu0 0
    %5797 = vperm.xlu0 %5796, %v4344
    %v5798 = vpop.permute.xlu0 %5797
    %5799 = vset.pattern.permute.xlu0 0
    %5800 = vperm.xlu0 %5799, %v4345
    %v5801 = vpop.permute.xlu0 %5800
    %5802 = vset.pattern.permute.xlu0 0
    %5803 = vperm.xlu0 %5802, %v4346
    %v5804 = vpop.permute.xlu0 %5803
    %5805 = vset.pattern.permute.xlu0 0
    %5806 = vperm.xlu0 %5805, %v4347
    %v5807 = vpop.permute.xlu0 %5806
    %5808 = vset.pattern.permute.xlu0 0
    %5809 = vperm.xlu0 %5808, %v4348
    %v5810 = vpop.permute.xlu0 %5809
    %5811 = vset.pattern.permute.xlu0 0
    %5812 = vperm.xlu0 %5811, %v4349
    %v5813 = vpop.permute.xlu0 %5812
    %5814 = vset.pattern.permute.xlu0 0
    %5815 = vperm.xlu0 %5814, %v4350
    %v5816 = vpop.permute.xlu0 %5815
    %5817 = vset.pattern.permute.xlu0 0
    %5818 = vperm.xlu0 %5817, %v4351
    %v5819 = vpop.permute.xlu0 %5818
    %5820 = vset.pattern.permute.xlu0 0
    %5821 = vperm.xlu0 %5820, %v4352
    %v5822 = vpop.permute.xlu0 %5821
    %5823 = vset.pattern.permute.xlu0 0
    %5824 = vperm.xlu0 %5823, %v4353
    %v5825 = vpop.permute.xlu0 %5824
    %5826 = vset.pattern.permute.xlu0 0
    %5827 = vperm.xlu0 %5826, %v4354
    %v5828 = vpop.permute.xlu0 %5827
    %5829 = vset.pattern.permute.xlu0 0
    %5830 = vperm.xlu0 %5829, %v4355
    %v5831 = vpop.permute.xlu0 %5830
    %5832 = vset.pattern.permute.xlu0 0
    %5833 = vperm.xlu0 %5832, %v4356
    %v5834 = vpop.permute.xlu0 %5833
    %5835 = vset.pattern.permute.xlu0 0
    %5836 = vperm.xlu0 %5835, %v4357
    %v5837 = vpop.permute.xlu0 %5836
    %5838 = vset.pattern.permute.xlu0 0
    %5839 = vperm.xlu0 %5838, %v4358
    %v5840 = vpop.permute.xlu0 %5839
    %5841 = vset.pattern.permute.xlu0 0
    %5842 = vperm.xlu0 %5841, %v4359
    %v5843 = vpop.permute.xlu0 %5842
    %5844 = vset.pattern.permute.xlu0 0
    %5845 = vperm.xlu0 %5844, %v4360
    %v5846 = vpop.permute.xlu0 %5845
    %5847 = vset.pattern.permute.xlu0 0
    %5848 = vperm.xlu0 %5847, %v4361
    %v5849 = vpop.permute.xlu0 %5848
    %5850 = vset.pattern.permute.xlu0 0
    %5851 = vperm.xlu0 %5850, %v4362
    %v5852 = vpop.permute.xlu0 %5851
    %5853 = vset.pattern.permute.xlu0 0
    %5854 = vperm.xlu0 %5853, %v4363
    %v5855 = vpop.permute.xlu0 %5854
    %5856 = vset.pattern.permute.xlu0 0
    %5857 = vperm.xlu0 %5856, %v4364
    %v5858 = vpop.permute.xlu0 %5857
    %5859 = vset.pattern.permute.xlu0 0
    %5860 = vperm.xlu0 %5859, %v4365
    %v5861 = vpop.permute.xlu0 %5860
    %5862 = vset.pattern.permute.xlu0 0
    %5863 = vperm.xlu0 %5862, %v4366
    %v5864 = vpop.permute.xlu0 %5863
    %5865 = vset.pattern.permute.xlu0 0
    %5866 = vperm.xlu0 %5865, %v4367
    %v5867 = vpop.permute.xlu0 %5866
    %5868 = vset.pattern.permute.xlu0 0
    %5869 = vperm.xlu0 %5868, %v4368
    %v5870 = vpop.permute.xlu0 %5869
    %5871 = vset.pattern.permute.xlu0 0
    %5872 = vperm.xlu0 %5871, %v4369
    %v5873 = vpop.permute.xlu0 %5872
    %5874 = vset.pattern.permute.xlu0 0
    %5875 = vperm.xlu0 %5874, %v4370
    %v5876 = vpop.permute.xlu0 %5875
    %5877 = vset.pattern.permute.xlu0 0
    %5878 = vperm.xlu0 %5877, %v4371
    %v5879 = vpop.permute.xlu0 %5878
    %5880 = vset.pattern.permute.xlu0 0
    %5881 = vperm.xlu0 %5880, %v4372
    %v5882 = vpop.permute.xlu0 %5881
    %5883 = vset.pattern.permute.xlu0 0
    %5884 = vperm.xlu0 %5883, %v4373
    %v5885 = vpop.permute.xlu0 %5884
    %5886 = vset.pattern.permute.xlu0 0
    %5887 = vperm.xlu0 %5886, %v4374
    %v5888 = vpop.permute.xlu0 %5887
    %5889 = vset.pattern.permute.xlu0 0
    %5890 = vperm.xlu0 %5889, %v4375
    %v5891 = vpop.permute.xlu0 %5890
    %5892 = vset.pattern.permute.xlu0 0
    %5893 = vperm.xlu0 %5892, %v4376
    %v5894 = vpop.permute.xlu0 %5893
    %5895 = vset.pattern.permute.xlu0 0
    %5896 = vperm.xlu0 %5895, %v4377
    %v5897 = vpop.permute.xlu0 %5896
    %5898 = vset.pattern.permute.xlu0 0
    %5899 = vperm.xlu0 %5898, %v4378
    %v5900 = vpop.permute.xlu0 %5899
    %5901 = vset.pattern.permute.xlu0 0
    %5902 = vperm.xlu0 %5901, %v4379
    %v5903 = vpop.permute.xlu0 %5902
    %5904 = vset.pattern.permute.xlu0 0
    %5905 = vperm.xlu0 %5904, %v4380
    %v5906 = vpop.permute.xlu0 %5905
    %5907 = vset.pattern.permute.xlu0 0
    %5908 = vperm.xlu0 %5907, %v4381
    %v5909 = vpop.permute.xlu0 %5908
    %5910 = vset.pattern.permute.xlu0 0
    %5911 = vperm.xlu0 %5910, %v4382
    %v5912 = vpop.permute.xlu0 %5911
    %5913 = vset.pattern.permute.xlu0 0
    %5914 = vperm.xlu0 %5913, %v4383
    %v5915 = vpop.permute.xlu0 %5914
    %5916 = vset.pattern.permute.xlu0 0
    %5917 = vperm.xlu0 %5916, %v4384
    %v5918 = vpop.permute.xlu0 %5917
    %5919 = vset.pattern.permute.xlu0 0
    %5920 = vperm.xlu0 %5919, %v4385
    %v5921 = vpop.permute.xlu0 %5920
    %5922 = vset.pattern.permute.xlu0 0
    %5923 = vperm.xlu0 %5922, %v4386
    %v5924 = vpop.permute.xlu0 %5923
    %5925 = vset.pattern.permute.xlu0 0
    %5926 = vperm.xlu0 %5925, %v4387
    %v5927 = vpop.permute.xlu0 %5926
    %5928 = vset.pattern.permute.xlu0 0
    %5929 = vperm.xlu0 %5928, %v4388
    %v5930 = vpop.permute.xlu0 %5929
    %5931 = vset.pattern.permute.xlu0 0
    %5932 = vperm.xlu0 %5931, %v4389
    %v5933 = vpop.permute.xlu0 %5932
    %5934 = vset.pattern.permute.xlu0 0
    %5935 = vperm.xlu0 %5934, %v4390
    %v5936 = vpop.permute.xlu0 %5935
    %5937 = vset.pattern.permute.xlu0 0
    %5938 = vperm.xlu0 %5937, %v4391
    %v5939 = vpop.permute.xlu0 %5938
    %5940 = vset.pattern.permute.xlu0 0
    %5941 = vperm.xlu0 %5940, %v4392
    %v5942 = vpop.permute.xlu0 %5941
    %5943 = vset.pattern.permute.xlu0 0
    %5944 = vperm.xlu0 %5943, %v4393
    %v5945 = vpop.permute.xlu0 %5944
    %5946 = vset.pattern.permute.xlu0 0
    %5947 = vperm.xlu0 %5946, %v4394
    %v5948 = vpop.permute.xlu0 %5947
    %5949 = vset.pattern.permute.xlu0 0
    %5950 = vperm.xlu0 %5949, %v4395
    %v5951 = vpop.permute.xlu0 %5950
    %5952 = vset.pattern.permute.xlu0 0
    %5953 = vperm.xlu0 %5952, %v4396
    %v5954 = vpop.permute.xlu0 %5953
    %5955 = vset.pattern.permute.xlu0 0
    %5956 = vperm.xlu0 %5955, %v4397
    %v5957 = vpop.permute.xlu0 %5956
    %5958 = vset.pattern.permute.xlu0 0
    %5959 = vperm.xlu0 %5958, %v4398
    %v5960 = vpop.permute.xlu0 %5959
    %5961 = vset.pattern.permute.xlu0 0
    %5962 = vperm.xlu0 %5961, %v4399
    %v5963 = vpop.permute.xlu0 %5962
    %5964 = vset.pattern.permute.xlu0 0
    %5965 = vperm.xlu0 %5964, %v4400
    %v5966 = vpop.permute.xlu0 %5965
    %5967 = vset.pattern.permute.xlu0 0
    %5968 = vperm.xlu0 %5967, %v4401
    %v5969 = vpop.permute.xlu0 %5968
    %5970 = vset.pattern.permute.xlu0 0
    %5971 = vperm.xlu0 %5970, %v4402
    %v5972 = vpop.permute.xlu0 %5971
    %5973 = vset.pattern.permute.xlu0 0
    %5974 = vperm.xlu0 %5973, %v4403
    %v5975 = vpop.permute.xlu0 %5974
    %5976 = vset.pattern.permute.xlu0 0
    %5977 = vperm.xlu0 %5976, %v4404
    %v5978 = vpop.permute.xlu0 %5977
    %5979 = vset.pattern.permute.xlu0 0
    %5980 = vperm.xlu0 %5979, %v4405
    %v5981 = vpop.permute.xlu0 %5980
    %5982 = vset.pattern.permute.xlu0 0
    %5983 = vperm.xlu0 %5982, %v4406
    %v5984 = vpop.permute.xlu0 %5983
    %5985 = vset.pattern.permute.xlu0 0
    %5986 = vperm.xlu0 %5985, %v4407
    %v5987 = vpop.permute.xlu0 %5986
    %5988 = vset.pattern.permute.xlu0 0
    %5989 = vperm.xlu0 %5988, %v4408
    %v5990 = vpop.permute.xlu0 %5989
    %5991 = vset.pattern.permute.xlu0 0
    %5992 = vperm.xlu0 %5991, %v4409
    %v5993 = vpop.permute.xlu0 %5992
    %5994 = vset.pattern.permute.xlu0 0
    %5995 = vperm.xlu0 %5994, %v4410
    %v5996 = vpop.permute.xlu0 %5995
    %5997 = vset.pattern.permute.xlu0 0
    %5998 = vperm.xlu0 %5997, %v4411
    %v5999 = vpop.permute.xlu0 %5998
    %6000 = vset.pattern.permute.xlu0 0
    %6001 = vperm.xlu0 %6000, %v4412
    %v6002 = vpop.permute.xlu0 %6001
    %6003 = vset.pattern.permute.xlu0 0
    %6004 = vperm.xlu0 %6003, %v4413
    %v6005 = vpop.permute.xlu0 %6004
    %6006 = vset.pattern.permute.xlu0 0
    %6007 = vperm.xlu0 %6006, %v4414
    %v6008 = vpop.permute.xlu0 %6007
    %6009 = vset.pattern.permute.xlu0 0
    %6010 = vperm.xlu0 %6009, %v4415
    %v6011 = vpop.permute.xlu0 %6010
    %6012 = vset.pattern.permute.xlu0 0
    %6013 = vperm.xlu0 %6012, %v4416
    %v6014 = vpop.permute.xlu0 %6013
    %6015 = vset.pattern.permute.xlu0 0
    %6016 = vperm.xlu0 %6015, %v4417
    %v6017 = vpop.permute.xlu0 %6016
    %6018 = vset.pattern.permute.xlu0 0
    %6019 = vperm.xlu0 %6018, %v4418
    %v6020 = vpop.permute.xlu0 %6019
    %6021 = vset.pattern.permute.xlu0 0
    %6022 = vperm.xlu0 %6021, %v4419
    %v6023 = vpop.permute.xlu0 %6022
    %6024 = vset.pattern.permute.xlu0 0
    %6025 = vperm.xlu0 %6024, %v4420
    %v6026 = vpop.permute.xlu0 %6025
    %6027 = vset.pattern.permute.xlu0 0
    %6028 = vperm.xlu0 %6027, %v4421
    %v6029 = vpop.permute.xlu0 %6028
    %6030 = vset.pattern.permute.xlu0 0
    %6031 = vperm.xlu0 %6030, %v4422
    %v6032 = vpop.permute.xlu0 %6031
    %6033 = vset.pattern.permute.xlu0 0
    %6034 = vperm.xlu0 %6033, %v4423
    %v6035 = vpop.permute.xlu0 %6034
    %6036 = vset.pattern.permute.xlu0 0
    %6037 = vperm.xlu0 %6036, %v4424
    %v6038 = vpop.permute.xlu0 %6037
    %6039 = vset.pattern.permute.xlu0 0
    %6040 = vperm.xlu0 %6039, %v4425
    %v6041 = vpop.permute.xlu0 %6040
    %6042 = vset.pattern.permute.xlu0 0
    %6043 = vperm.xlu0 %6042, %v4426
    %v6044 = vpop.permute.xlu0 %6043
    %6045 = vset.pattern.permute.xlu0 0
    %6046 = vperm.xlu0 %6045, %v4427
    %v6047 = vpop.permute.xlu0 %6046
    %6048 = vset.pattern.permute.xlu0 0
    %6049 = vperm.xlu0 %6048, %v4428
    %v6050 = vpop.permute.xlu0 %6049
    %6051 = vset.pattern.permute.xlu0 0
    %6052 = vperm.xlu0 %6051, %v4429
    %v6053 = vpop.permute.xlu0 %6052
    %6054 = vset.pattern.permute.xlu0 0
    %6055 = vperm.xlu0 %6054, %v4430
    %v6056 = vpop.permute.xlu0 %6055
    %6057 = vset.pattern.permute.xlu0 0
    %6058 = vperm.xlu0 %6057, %v4431
    %v6059 = vpop.permute.xlu0 %6058
    %6060 = vset.pattern.permute.xlu0 0
    %6061 = vperm.xlu0 %6060, %v4432
    %v6062 = vpop.permute.xlu0 %6061
    %6063 = vset.pattern.permute.xlu0 0
    %6064 = vperm.xlu0 %6063, %v4433
    %v6065 = vpop.permute.xlu0 %6064
    %6066 = vset.pattern.permute.xlu0 0
    %6067 = vperm.xlu0 %6066, %v4434
    %v6068 = vpop.permute.xlu0 %6067
    %6069 = vset.pattern.permute.xlu0 0
    %6070 = vperm.xlu0 %6069, %v4435
    %v6071 = vpop.permute.xlu0 %6070
    %6072 = vset.pattern.permute.xlu0 0
    %6073 = vperm.xlu0 %6072, %v4436
    %v6074 = vpop.permute.xlu0 %6073
    %6075 = vset.pattern.permute.xlu0 0
    %6076 = vperm.xlu0 %6075, %v4437
    %v6077 = vpop.permute.xlu0 %6076
    %6078 = vset.pattern.permute.xlu0 0
    %6079 = vperm.xlu0 %6078, %v4438
    %v6080 = vpop.permute.xlu0 %6079
    %6081 = vset.pattern.permute.xlu0 0
    %6082 = vperm.xlu0 %6081, %v4439
    %v6083 = vpop.permute.xlu0 %6082
    %6084 = vset.pattern.permute.xlu0 0
    %6085 = vperm.xlu0 %6084, %v4440
    %v6086 = vpop.permute.xlu0 %6085
    %6087 = vset.pattern.permute.xlu0 0
    %6088 = vperm.xlu0 %6087, %v4441
    %v6089 = vpop.permute.xlu0 %6088
    %6090 = vset.pattern.permute.xlu0 0
    %6091 = vperm.xlu0 %6090, %v4442
    %v6092 = vpop.permute.xlu0 %6091
    %6093 = vset.pattern.permute.xlu0 0
    %6094 = vperm.xlu0 %6093, %v4443
    %v6095 = vpop.permute.xlu0 %6094
    %6096 = vset.pattern.permute.xlu0 0
    %6097 = vperm.xlu0 %6096, %v4444
    %v6098 = vpop.permute.xlu0 %6097
    %6099 = vset.pattern.permute.xlu0 0
    %6100 = vperm.xlu0 %6099, %v4445
    %v6101 = vpop.permute.xlu0 %6100
    %6102 = vset.pattern.permute.xlu0 0
    %6103 = vperm.xlu0 %6102, %v4446
    %v6104 = vpop.permute.xlu0 %6103
    %6105 = vset.pattern.permute.xlu0 0
    %6106 = vperm.xlu0 %6105, %v4447
    %v6107 = vpop.permute.xlu0 %6106
    %6108 = vset.pattern.permute.xlu0 0
    %6109 = vperm.xlu0 %6108, %v4448
    %v6110 = vpop.permute.xlu0 %6109
    %6111 = vset.pattern.permute.xlu0 0
    %6112 = vperm.xlu0 %6111, %v4449
    %v6113 = vpop.permute.xlu0 %6112
    %6114 = vset.pattern.permute.xlu0 0
    %6115 = vperm.xlu0 %6114, %v4450
    %v6116 = vpop.permute.xlu0 %6115
    %6117 = vset.pattern.permute.xlu0 0
    %6118 = vperm.xlu0 %6117, %v4451
    %v6119 = vpop.permute.xlu0 %6118
    %6120 = vset.pattern.permute.xlu0 0
    %6121 = vperm.xlu0 %6120, %v4452
    %v6122 = vpop.permute.xlu0 %6121
    %6123 = vset.pattern.permute.xlu0 0
    %6124 = vperm.xlu0 %6123, %v4453
    %v6125 = vpop.permute.xlu0 %6124
    %6126 = vset.pattern.permute.xlu0 0
    %6127 = vperm.xlu0 %6126, %v4454
    %v6128 = vpop.permute.xlu0 %6127
    %6129 = vset.pattern.permute.xlu0 0
    %6130 = vperm.xlu0 %6129, %v4455
    %v6131 = vpop.permute.xlu0 %6130
    %6132 = vset.pattern.permute.xlu0 0
    %6133 = vperm.xlu0 %6132, %v4456
    %v6134 = vpop.permute.xlu0 %6133
    %6135 = vset.pattern.permute.xlu0 0
    %6136 = vperm.xlu0 %6135, %v4457
    %v6137 = vpop.permute.xlu0 %6136
    %6138 = vset.pattern.permute.xlu0 0
    %6139 = vperm.xlu0 %6138, %v4458
    %v6140 = vpop.permute.xlu0 %6139
    %6141 = vset.pattern.permute.xlu0 0
    %6142 = vperm.xlu0 %6141, %v4459
    %v6143 = vpop.permute.xlu0 %6142
    %6144 = vset.pattern.permute.xlu0 0
    %6145 = vperm.xlu0 %6144, %v4460
    %v6146 = vpop.permute.xlu0 %6145
    %6147 = vset.pattern.permute.xlu0 0
    %6148 = vperm.xlu0 %6147, %v4461
    %v6149 = vpop.permute.xlu0 %6148
    %6150 = vset.pattern.permute.xlu0 0
    %6151 = vperm.xlu0 %6150, %v4462
    %v6152 = vpop.permute.xlu0 %6151
    %6153 = vset.pattern.permute.xlu0 0
    %6154 = vperm.xlu0 %6153, %v4463
    %v6155 = vpop.permute.xlu0 %6154
    %6156 = vset.pattern.permute.xlu0 0
    %6157 = vperm.xlu0 %6156, %v4464
    %v6158 = vpop.permute.xlu0 %6157
    %6159 = vset.pattern.permute.xlu0 0
    %6160 = vperm.xlu0 %6159, %v4465
    %v6161 = vpop.permute.xlu0 %6160
    %6162 = vset.pattern.permute.xlu0 0
    %6163 = vperm.xlu0 %6162, %v4466
    %v6164 = vpop.permute.xlu0 %6163
    %6165 = vset.pattern.permute.xlu0 0
    %6166 = vperm.xlu0 %6165, %v4467
    %v6167 = vpop.permute.xlu0 %6166
    %6168 = vset.pattern.permute.xlu0 0
    %6169 = vperm.xlu0 %6168, %v4468
    %v6170 = vpop.permute.xlu0 %6169
    %6171 = vset.pattern.permute.xlu0 0
    %6172 = vperm.xlu0 %6171, %v4469
    %v6173 = vpop.permute.xlu0 %6172
    %6174 = vset.pattern.permute.xlu0 0
    %6175 = vperm.xlu0 %6174, %v4470
    %v6176 = vpop.permute.xlu0 %6175
    %6177 = vset.pattern.permute.xlu0 0
    %6178 = vperm.xlu0 %6177, %v4471
    %v6179 = vpop.permute.xlu0 %6178
    %6180 = vset.pattern.permute.xlu0 0
    %6181 = vperm.xlu0 %6180, %v4472
    %v6182 = vpop.permute.xlu0 %6181
    %6183 = vset.pattern.permute.xlu0 0
    %6184 = vperm.xlu0 %6183, %v4473
    %v6185 = vpop.permute.xlu0 %6184
    %6186 = vset.pattern.permute.xlu0 0
    %6187 = vperm.xlu0 %6186, %v4474
    %v6188 = vpop.permute.xlu0 %6187
    %6189 = vset.pattern.permute.xlu0 0
    %6190 = vperm.xlu0 %6189, %v4475
    %v6191 = vpop.permute.xlu0 %6190
    %6192 = vset.pattern.permute.xlu0 0
    %6193 = vperm.xlu0 %6192, %v4476
    %v6194 = vpop.permute.xlu0 %6193
    %6195 = vset.pattern.permute.xlu0 0
    %6196 = vperm.xlu0 %6195, %v4477
    %v6197 = vpop.permute.xlu0 %6196
    %6198 = vset.pattern.permute.xlu0 0
    %6199 = vperm.xlu0 %6198, %v4478
    %v6200 = vpop.permute.xlu0 %6199
    %6201 = vset.pattern.permute.xlu0 0
    %6202 = vperm.xlu0 %6201, %v4479
    %v6203 = vpop.permute.xlu0 %6202
    %6204 = vset.pattern.permute.xlu0 0
    %6205 = vperm.xlu0 %6204, %v4480
    %v6206 = vpop.permute.xlu0 %6205
    %6207 = vset.pattern.permute.xlu0 0
    %6208 = vperm.xlu0 %6207, %v4481
    %v6209 = vpop.permute.xlu0 %6208
    %6210 = vset.pattern.permute.xlu0 0
    %6211 = vperm.xlu0 %6210, %v4482
    %v6212 = vpop.permute.xlu0 %6211
    %6213 = vset.pattern.permute.xlu0 0
    %6214 = vperm.xlu0 %6213, %v4483
    %v6215 = vpop.permute.xlu0 %6214
    %6216 = vset.pattern.permute.xlu0 0
    %6217 = vperm.xlu0 %6216, %v4484
    %v6218 = vpop.permute.xlu0 %6217
    %6219 = vset.pattern.permute.xlu0 0
    %6220 = vperm.xlu0 %6219, %v4485
    %v6221 = vpop.permute.xlu0 %6220
    %6222 = vset.pattern.permute.xlu0 0
    %6223 = vperm.xlu0 %6222, %v4486
    %v6224 = vpop.permute.xlu0 %6223
    %6225 = vset.pattern.permute.xlu0 0
    %6226 = vperm.xlu0 %6225, %v4487
    %v6227 = vpop.permute.xlu0 %6226
    %6228 = vset.pattern.permute.xlu0 0
    %6229 = vperm.xlu0 %6228, %v4488
    %v6230 = vpop.permute.xlu0 %6229
    %6231 = vset.pattern.permute.xlu0 0
    %6232 = vperm.xlu0 %6231, %v4489
    %v6233 = vpop.permute.xlu0 %6232
    %6234 = vset.pattern.permute.xlu0 0
    %6235 = vperm.xlu0 %6234, %v4490
    %v6236 = vpop.permute.xlu0 %6235
    %6237 = vset.pattern.permute.xlu0 0
    %6238 = vperm.xlu0 %6237, %v4491
    %v6239 = vpop.permute.xlu0 %6238
    %6240 = vset.pattern.permute.xlu0 0
    %6241 = vperm.xlu0 %6240, %v4492
    %v6242 = vpop.permute.xlu0 %6241
    %6243 = vset.pattern.permute.xlu0 0
    %6244 = vperm.xlu0 %6243, %v4493
    %v6245 = vpop.permute.xlu0 %6244
    %6246 = vset.pattern.permute.xlu0 0
    %6247 = vperm.xlu0 %6246, %v4494
    %v6248 = vpop.permute.xlu0 %6247
    %6249 = vset.pattern.permute.xlu0 0
    %6250 = vperm.xlu0 %6249, %v4495
    %v6251 = vpop.permute.xlu0 %6250
    %6252 = vset.pattern.permute.xlu0 0
    %6253 = vperm.xlu0 %6252, %v4496
    %v6254 = vpop.permute.xlu0 %6253
    %6255 = vset.pattern.permute.xlu0 0
    %6256 = vperm.xlu0 %6255, %v4497
    %v6257 = vpop.permute.xlu0 %6256
    %6258 = vset.pattern.permute.xlu0 0
    %6259 = vperm.xlu0 %6258, %v4498
    %v6260 = vpop.permute.xlu0 %6259
    %6261 = vset.pattern.permute.xlu0 0
    %6262 = vperm.xlu0 %6261, %v4499
    %v6263 = vpop.permute.xlu0 %6262
    %6264 = vset.pattern.permute.xlu0 0
    %6265 = vperm.xlu0 %6264, %v4500
    %v6266 = vpop.permute.xlu0 %6265
    %6267 = vset.pattern.permute.xlu0 0
    %6268 = vperm.xlu0 %6267, %v4501
    %v6269 = vpop.permute.xlu0 %6268
    %6270 = vset.pattern.permute.xlu0 0
    %6271 = vperm.xlu0 %6270, %v4502
    %v6272 = vpop.permute.xlu0 %6271
    %6273 = vset.pattern.permute.xlu0 0
    %6274 = vperm.xlu0 %6273, %v4503
    %v6275 = vpop.permute.xlu0 %6274
    %6276 = vset.pattern.permute.xlu0 0
    %6277 = vperm.xlu0 %6276, %v4504
    %v6278 = vpop.permute.xlu0 %6277
    %6279 = vset.pattern.permute.xlu0 0
    %6280 = vperm.xlu0 %6279, %v4505
    %v6281 = vpop.permute.xlu0 %6280
    %6282 = vset.pattern.permute.xlu0 0
    %6283 = vperm.xlu0 %6282, %v4506
    %v6284 = vpop.permute.xlu0 %6283
    %6285 = vset.pattern.permute.xlu0 0
    %6286 = vperm.xlu0 %6285, %v4507
    %v6287 = vpop.permute.xlu0 %6286
    %6288 = vset.pattern.permute.xlu0 0
    %6289 = vperm.xlu0 %6288, %v4508
    %v6290 = vpop.permute.xlu0 %6289
    %6291 = vset.pattern.permute.xlu0 0
    %6292 = vperm.xlu0 %6291, %v4509
    %v6293 = vpop.permute.xlu0 %6292
    %6294 = vset.pattern.permute.xlu0 0
    %6295 = vperm.xlu0 %6294, %v4510
    %v6296 = vpop.permute.xlu0 %6295
    %6297 = vset.pattern.permute.xlu0 0
    %6298 = vperm.xlu0 %6297, %v4511
    %v6299 = vpop.permute.xlu0 %6298
    %6300 = vset.pattern.permute.xlu0 0
    %6301 = vperm.xlu0 %6300, %v4512
    %v6302 = vpop.permute.xlu0 %6301
    %6303 = vset.pattern.permute.xlu0 0
    %6304 = vperm.xlu0 %6303, %v4513
    %v6305 = vpop.permute.xlu0 %6304
    %6306 = vset.pattern.permute.xlu0 0
    %6307 = vperm.xlu0 %6306, %v4514
    %v6308 = vpop.permute.xlu0 %6307
    %6309 = vset.pattern.permute.xlu0 0
    %6310 = vperm.xlu0 %6309, %v4515
    %v6311 = vpop.permute.xlu0 %6310
    %6312 = vset.pattern.permute.xlu0 0
    %6313 = vperm.xlu0 %6312, %v4516
    %v6314 = vpop.permute.xlu0 %6313
    %6315 = vset.pattern.permute.xlu0 0
    %6316 = vperm.xlu0 %6315, %v4517
    %v6317 = vpop.permute.xlu0 %6316
    %6318 = vset.pattern.permute.xlu0 0
    %6319 = vperm.xlu0 %6318, %v4518
    %v6320 = vpop.permute.xlu0 %6319
    %6321 = vset.pattern.permute.xlu0 0
    %6322 = vperm.xlu0 %6321, %v4519
    %v6323 = vpop.permute.xlu0 %6322
    %6324 = vset.pattern.permute.xlu0 0
    %6325 = vperm.xlu0 %6324, %v4520
    %v6326 = vpop.permute.xlu0 %6325
    %6327 = vset.pattern.permute.xlu0 0
    %6328 = vperm.xlu0 %6327, %v4521
    %v6329 = vpop.permute.xlu0 %6328
    %6330 = vset.pattern.permute.xlu0 0
    %6331 = vperm.xlu0 %6330, %v4522
    %v6332 = vpop.permute.xlu0 %6331
    %6333 = vset.pattern.permute.xlu0 0
    %6334 = vperm.xlu0 %6333, %v4523
    %v6335 = vpop.permute.xlu0 %6334
    %6336 = vset.pattern.permute.xlu0 0
    %6337 = vperm.xlu0 %6336, %v4524
    %v6338 = vpop.permute.xlu0 %6337
    %6339 = vset.pattern.permute.xlu0 0
    %6340 = vperm.xlu0 %6339, %v4525
    %v6341 = vpop.permute.xlu0 %6340
    %6342 = vset.pattern.permute.xlu0 0
    %6343 = vperm.xlu0 %6342, %v4526
    %v6344 = vpop.permute.xlu0 %6343
    %6345 = vset.pattern.permute.xlu0 0
    %6346 = vperm.xlu0 %6345, %v4527
    %v6347 = vpop.permute.xlu0 %6346
    %6348 = vset.pattern.permute.xlu0 0
    %6349 = vperm.xlu0 %6348, %v4528
    %v6350 = vpop.permute.xlu0 %6349
    %6351 = vset.pattern.permute.xlu0 0
    %6352 = vperm.xlu0 %6351, %v4529
    %v6353 = vpop.permute.xlu0 %6352
    %6354 = vset.pattern.permute.xlu0 0
    %6355 = vperm.xlu0 %6354, %v4530
    %v6356 = vpop.permute.xlu0 %6355
    %6357 = vset.pattern.permute.xlu0 0
    %6358 = vperm.xlu0 %6357, %v4531
    %v6359 = vpop.permute.xlu0 %6358
    %6360 = vset.pattern.permute.xlu0 0
    %6361 = vperm.xlu0 %6360, %v4532
    %v6362 = vpop.permute.xlu0 %6361
    %6363 = vset.pattern.permute.xlu0 0
    %6364 = vperm.xlu0 %6363, %v4533
    %v6365 = vpop.permute.xlu0 %6364
    %6366 = vset.pattern.permute.xlu0 0
    %6367 = vperm.xlu0 %6366, %v4534
    %v6368 = vpop.permute.xlu0 %6367
    %6369 = vset.pattern.permute.xlu0 0
    %6370 = vperm.xlu0 %6369, %v4535
    %v6371 = vpop.permute.xlu0 %6370
    %6372 = vset.pattern.permute.xlu0 0
    %6373 = vperm.xlu0 %6372, %v4536
    %v6374 = vpop.permute.xlu0 %6373
    %6375 = vset.pattern.permute.xlu0 0
    %6376 = vperm.xlu0 %6375, %v4537
    %v6377 = vpop.permute.xlu0 %6376
    %6378 = vset.pattern.permute.xlu0 0
    %6379 = vperm.xlu0 %6378, %v4538
    %v6380 = vpop.permute.xlu0 %6379
    %6381 = vset.pattern.permute.xlu0 0
    %6382 = vperm.xlu0 %6381, %v4539
    %v6383 = vpop.permute.xlu0 %6382
    %6384 = vset.pattern.permute.xlu0 0
    %6385 = vperm.xlu0 %6384, %v4540
    %v6386 = vpop.permute.xlu0 %6385
    %6387 = vset.pattern.permute.xlu0 0
    %6388 = vperm.xlu0 %6387, %v4541
    %v6389 = vpop.permute.xlu0 %6388
    %6390 = vset.pattern.permute.xlu0 0
    %6391 = vperm.xlu0 %6390, %v4542
    %v6392 = vpop.permute.xlu0 %6391
    %6393 = vset.pattern.permute.xlu0 0
    %6394 = vperm.xlu0 %6393, %v4543
    %v6395 = vpop.permute.xlu0 %6394
    %6396 = vset.pattern.permute.xlu0 0
    %6397 = vperm.xlu0 %6396, %v4544
    %v6398 = vpop.permute.xlu0 %6397
    %6399 = vset.pattern.permute.xlu0 0
    %6400 = vperm.xlu0 %6399, %v4545
    %v6401 = vpop.permute.xlu0 %6400
    %6402 = vset.pattern.permute.xlu0 0
    %6403 = vperm.xlu0 %6402, %v4546
    %v6404 = vpop.permute.xlu0 %6403
    %6405 = vset.pattern.permute.xlu0 0
    %6406 = vperm.xlu0 %6405, %v4547
    %v6407 = vpop.permute.xlu0 %6406
    %6408 = vset.pattern.permute.xlu0 0
    %6409 = vperm.xlu0 %6408, %v4548
    %v6410 = vpop.permute.xlu0 %6409
    %6411 = vset.pattern.permute.xlu0 0
    %6412 = vperm.xlu0 %6411, %v4549
    %v6413 = vpop.permute.xlu0 %6412
    %6414 = vset.pattern.permute.xlu0 0
    %6415 = vperm.xlu0 %6414, %v4550
    %v6416 = vpop.permute.xlu0 %6415
    %6417 = vset.pattern.permute.xlu0 0
    %6418 = vperm.xlu0 %6417, %v4551
    %v6419 = vpop.permute.xlu0 %6418
    %6420 = vset.pattern.permute.xlu0 0
    %6421 = vperm.xlu0 %6420, %v4552
    %v6422 = vpop.permute.xlu0 %6421
    %6423 = vset.pattern.permute.xlu0 0
    %6424 = vperm.xlu0 %6423, %v4553
    %v6425 = vpop.permute.xlu0 %6424
    %6426 = vset.pattern.permute.xlu0 0
    %6427 = vperm.xlu0 %6426, %v4554
    %v6428 = vpop.permute.xlu0 %6427
    %6429 = vset.pattern.permute.xlu0 0
    %6430 = vperm.xlu0 %6429, %v4555
    %v6431 = vpop.permute.xlu0 %6430
    %6432 = vset.pattern.permute.xlu0 0
    %6433 = vperm.xlu0 %6432, %v4556
    %v6434 = vpop.permute.xlu0 %6433
    %6435 = vset.pattern.permute.xlu0 0
    %6436 = vperm.xlu0 %6435, %v4557
    %v6437 = vpop.permute.xlu0 %6436
    %6438 = vset.pattern.permute.xlu0 0
    %6439 = vperm.xlu0 %6438, %v4558
    %v6440 = vpop.permute.xlu0 %6439
    %6441 = vset.pattern.permute.xlu0 0
    %6442 = vperm.xlu0 %6441, %v4559
    %v6443 = vpop.permute.xlu0 %6442
    %6444 = vset.pattern.permute.xlu0 0
    %6445 = vperm.xlu0 %6444, %v4560
    %v6446 = vpop.permute.xlu0 %6445
    %6447 = vset.pattern.permute.xlu0 0
    %6448 = vperm.xlu0 %6447, %v4561
    %v6449 = vpop.permute.xlu0 %6448
    %6450 = vset.pattern.permute.xlu0 0
    %6451 = vperm.xlu0 %6450, %v4562
    %v6452 = vpop.permute.xlu0 %6451
    %6453 = vset.pattern.permute.xlu0 0
    %6454 = vperm.xlu0 %6453, %v4563
    %v6455 = vpop.permute.xlu0 %6454
    %6456 = vset.pattern.permute.xlu0 0
    %6457 = vperm.xlu0 %6456, %v4564
    %v6458 = vpop.permute.xlu0 %6457
    %6459 = vset.pattern.permute.xlu0 0
    %6460 = vperm.xlu0 %6459, %v4565
    %v6461 = vpop.permute.xlu0 %6460
    %6462 = vset.pattern.permute.xlu0 0
    %6463 = vperm.xlu0 %6462, %v4566
    %v6464 = vpop.permute.xlu0 %6463
    %6465 = vset.pattern.permute.xlu0 0
    %6466 = vperm.xlu0 %6465, %v4567
    %v6467 = vpop.permute.xlu0 %6466
    %6468 = vset.pattern.permute.xlu0 0
    %6469 = vperm.xlu0 %6468, %v4568
    %v6470 = vpop.permute.xlu0 %6469
    %6471 = vset.pattern.permute.xlu0 0
    %6472 = vperm.xlu0 %6471, %v4569
    %v6473 = vpop.permute.xlu0 %6472
    %6474 = vset.pattern.permute.xlu0 0
    %6475 = vperm.xlu0 %6474, %v4570
    %v6476 = vpop.permute.xlu0 %6475
    %6477 = vset.pattern.permute.xlu0 0
    %6478 = vperm.xlu0 %6477, %v4571
    %v6479 = vpop.permute.xlu0 %6478
    %6480 = vset.pattern.permute.xlu0 0
    %6481 = vperm.xlu0 %6480, %v4572
    %v6482 = vpop.permute.xlu0 %6481
    %6483 = vset.pattern.permute.xlu0 0
    %6484 = vperm.xlu0 %6483, %v4573
    %v6485 = vpop.permute.xlu0 %6484
    %6486 = vset.pattern.permute.xlu0 0
    %6487 = vperm.xlu0 %6486, %v4574
    %v6488 = vpop.permute.xlu0 %6487
    %6489 = vset.pattern.permute.xlu0 0
    %6490 = vperm.xlu0 %6489, %v4575
    %v6491 = vpop.permute.xlu0 %6490
    %6492 = vset.pattern.permute.xlu0 0
    %6493 = vperm.xlu0 %6492, %v4576
    %v6494 = vpop.permute.xlu0 %6493
    %6495 = vset.pattern.permute.xlu0 0
    %6496 = vperm.xlu0 %6495, %v4577
    %v6497 = vpop.permute.xlu0 %6496
    %6498 = vset.pattern.permute.xlu0 0
    %6499 = vperm.xlu0 %6498, %v4578
    %v6500 = vpop.permute.xlu0 %6499
    %6501 = vset.pattern.permute.xlu0 0
    %6502 = vperm.xlu0 %6501, %v4579
    %v6503 = vpop.permute.xlu0 %6502
    %6504 = vset.pattern.permute.xlu0 0
    %6505 = vperm.xlu0 %6504, %v4580
    %v6506 = vpop.permute.xlu0 %6505
    %6507 = vset.pattern.permute.xlu0 0
    %6508 = vperm.xlu0 %6507, %v4581
    %v6509 = vpop.permute.xlu0 %6508
    %6510 = vset.pattern.permute.xlu0 0
    %6511 = vperm.xlu0 %6510, %v4582
    %v6512 = vpop.permute.xlu0 %6511
    %6513 = vset.pattern.permute.xlu0 0
    %6514 = vperm.xlu0 %6513, %v4583
    %v6515 = vpop.permute.xlu0 %6514
    %6516 = vset.pattern.permute.xlu0 0
    %6517 = vperm.xlu0 %6516, %v4584
    %v6518 = vpop.permute.xlu0 %6517
    %6519 = vset.pattern.permute.xlu0 0
    %6520 = vperm.xlu0 %6519, %v4585
    %v6521 = vpop.permute.xlu0 %6520
    %6522 = vset.pattern.permute.xlu0 0
    %6523 = vperm.xlu0 %6522, %v4586
    %v6524 = vpop.permute.xlu0 %6523
    %6525 = vset.pattern.permute.xlu0 0
    %6526 = vperm.xlu0 %6525, %v4587
    %v6527 = vpop.permute.xlu0 %6526
    %6528 = vset.pattern.permute.xlu0 0
    %6529 = vperm.xlu0 %6528, %v4588
    %v6530 = vpop.permute.xlu0 %6529
    %6531 = vset.pattern.permute.xlu0 0
    %6532 = vperm.xlu0 %6531, %v4589
    %v6533 = vpop.permute.xlu0 %6532
    %6534 = vset.pattern.permute.xlu0 0
    %6535 = vperm.xlu0 %6534, %v4590
    %v6536 = vpop.permute.xlu0 %6535
    %6537 = vset.pattern.permute.xlu0 0
    %6538 = vperm.xlu0 %6537, %v4591
    %v6539 = vpop.permute.xlu0 %6538
    %6540 = vset.pattern.permute.xlu0 0
    %6541 = vperm.xlu0 %6540, %v4592
    %v6542 = vpop.permute.xlu0 %6541
    %6543 = vset.pattern.permute.xlu0 0
    %6544 = vperm.xlu0 %6543, %v4593
    %v6545 = vpop.permute.xlu0 %6544
    %6546 = vset.pattern.permute.xlu0 0
    %6547 = vperm.xlu0 %6546, %v4594
    %v6548 = vpop.permute.xlu0 %6547
    %6549 = vset.pattern.permute.xlu0 0
    %6550 = vperm.xlu0 %6549, %v4595
    %v6551 = vpop.permute.xlu0 %6550
    %6552 = vset.pattern.permute.xlu0 0
    %6553 = vperm.xlu0 %6552, %v4596
    %v6554 = vpop.permute.xlu0 %6553
    %6555 = vset.pattern.permute.xlu0 0
    %6556 = vperm.xlu0 %6555, %v4597
    %v6557 = vpop.permute.xlu0 %6556
    %6558 = vset.pattern.permute.xlu0 0
    %6559 = vperm.xlu0 %6558, %v4598
    %v6560 = vpop.permute.xlu0 %6559
    %6561 = vset.pattern.permute.xlu0 0
    %6562 = vperm.xlu0 %6561, %v4599
    %v6563 = vpop.permute.xlu0 %6562
    %6564 = vset.pattern.permute.xlu0 0
    %6565 = vperm.xlu0 %6564, %v4600
    %v6566 = vpop.permute.xlu0 %6565
    %6567 = vset.pattern.permute.xlu0 0
    %6568 = vperm.xlu0 %6567, %v4601
    %v6569 = vpop.permute.xlu0 %6568
    %6570 = vset.pattern.permute.xlu0 0
    %6571 = vperm.xlu0 %6570, %v4602
    %v6572 = vpop.permute.xlu0 %6571
    %6573 = vset.pattern.permute.xlu0 0
    %6574 = vperm.xlu0 %6573, %v4603
    %v6575 = vpop.permute.xlu0 %6574
    %6576 = vset.pattern.permute.xlu0 0
    %6577 = vperm.xlu0 %6576, %v4604
    %v6578 = vpop.permute.xlu0 %6577
    %6579 = vset.pattern.permute.xlu0 0
    %6580 = vperm.xlu0 %6579, %v4605
    %v6581 = vpop.permute.xlu0 %6580
    %6582 = vset.pattern.permute.xlu0 0
    %6583 = vperm.xlu0 %6582, %v4606
    %v6584 = vpop.permute.xlu0 %6583
    %6585 = vset.pattern.permute.xlu0 0
    %6586 = vperm.xlu0 %6585, %v4607
    %v6587 = vpop.permute.xlu0 %6586
    %6588 = vset.pattern.permute.xlu0 0
    %6589 = vperm.xlu0 %6588, %v4608
    %v6590 = vpop.permute.xlu0 %6589
    %6591 = vset.pattern.permute.xlu0 0
    %6592 = vperm.xlu0 %6591, %v4609
    %v6593 = vpop.permute.xlu0 %6592
    %6594 = vset.pattern.permute.xlu0 0
    %6595 = vperm.xlu0 %6594, %v4610
    %v6596 = vpop.permute.xlu0 %6595
    %6597 = vset.pattern.permute.xlu0 0
    %6598 = vperm.xlu0 %6597, %v4611
    %v6599 = vpop.permute.xlu0 %6598
    %6600 = vset.pattern.permute.xlu0 0
    %6601 = vperm.xlu0 %6600, %v4612
    %v6602 = vpop.permute.xlu0 %6601
    %6603 = vset.pattern.permute.xlu0 0
    %6604 = vperm.xlu0 %6603, %v4613
    %v6605 = vpop.permute.xlu0 %6604
    %6606 = vset.pattern.permute.xlu0 0
    %6607 = vperm.xlu0 %6606, %v4614
    %v6608 = vpop.permute.xlu0 %6607
    %6609 = vset.pattern.permute.xlu0 0
    %6610 = vperm.xlu0 %6609, %v4615
    %v6611 = vpop.permute.xlu0 %6610
    %6612 = vset.pattern.permute.xlu0 0
    %6613 = vperm.xlu0 %6612, %v4616
    %v6614 = vpop.permute.xlu0 %6613
    %6615 = vset.pattern.permute.xlu0 0
    %6616 = vperm.xlu0 %6615, %v4617
    %v6617 = vpop.permute.xlu0 %6616
    %6618 = vset.pattern.permute.xlu0 0
    %6619 = vperm.xlu0 %6618, %v4618
    %v6620 = vpop.permute.xlu0 %6619
    %6621 = vset.pattern.permute.xlu0 0
    %6622 = vperm.xlu0 %6621, %v4619
    %v6623 = vpop.permute.xlu0 %6622
    %6624 = vset.pattern.permute.xlu0 0
    %6625 = vperm.xlu0 %6624, %v4620
    %v6626 = vpop.permute.xlu0 %6625
    %6627 = vset.pattern.permute.xlu0 0
    %6628 = vperm.xlu0 %6627, %v4621
    %v6629 = vpop.permute.xlu0 %6628
    %6630 = vset.pattern.permute.xlu0 0
    %6631 = vperm.xlu0 %6630, %v4622
    %v6632 = vpop.permute.xlu0 %6631
    %6633 = vset.pattern.permute.xlu0 0
    %6634 = vperm.xlu0 %6633, %v4623
    %v6635 = vpop.permute.xlu0 %6634
    %6636 = vset.pattern.permute.xlu0 0
    %6637 = vperm.xlu0 %6636, %v4624
    %v6638 = vpop.permute.xlu0 %6637
    %6639 = vset.pattern.permute.xlu0 0
    %6640 = vperm.xlu0 %6639, %v4625
    %v6641 = vpop.permute.xlu0 %6640
    %6642 = vset.pattern.permute.xlu0 0
    %6643 = vperm.xlu0 %6642, %v4626
    %v6644 = vpop.permute.xlu0 %6643
    %6645 = vset.pattern.permute.xlu0 0
    %6646 = vperm.xlu0 %6645, %v4627
    %v6647 = vpop.permute.xlu0 %6646
    %6648 = vset.pattern.permute.xlu0 0
    %6649 = vperm.xlu0 %6648, %v4628
    %v6650 = vpop.permute.xlu0 %6649
    %6651 = vset.pattern.permute.xlu0 0
    %6652 = vperm.xlu0 %6651, %v4629
    %v6653 = vpop.permute.xlu0 %6652
    %6654 = vset.pattern.permute.xlu0 0
    %6655 = vperm.xlu0 %6654, %v4630
    %v6656 = vpop.permute.xlu0 %6655
    %6657 = vset.pattern.permute.xlu0 0
    %6658 = vperm.xlu0 %6657, %v4631
    %v6659 = vpop.permute.xlu0 %6658
    %6660 = vset.pattern.permute.xlu0 0
    %6661 = vperm.xlu0 %6660, %v4632
    %v6662 = vpop.permute.xlu0 %6661
    %6663 = vset.pattern.permute.xlu0 0
    %6664 = vperm.xlu0 %6663, %v4633
    %v6665 = vpop.permute.xlu0 %6664
    %6666 = vset.pattern.permute.xlu0 0
    %6667 = vperm.xlu0 %6666, %v4634
    %v6668 = vpop.permute.xlu0 %6667
    %6669 = vset.pattern.permute.xlu0 0
    %6670 = vperm.xlu0 %6669, %v4635
    %v6671 = vpop.permute.xlu0 %6670
    %6672 = vset.pattern.permute.xlu0 0
    %6673 = vperm.xlu0 %6672, %v4636
    %v6674 = vpop.permute.xlu0 %6673
    %6675 = vset.pattern.permute.xlu0 0
    %6676 = vperm.xlu0 %6675, %v4637
    %v6677 = vpop.permute.xlu0 %6676
    %6678 = vset.pattern.permute.xlu0 0
    %6679 = vperm.xlu0 %6678, %v4638
    %v6680 = vpop.permute.xlu0 %6679
    %6681 = vset.pattern.permute.xlu0 0
    %6682 = vperm.xlu0 %6681, %v4639
    %v6683 = vpop.permute.xlu0 %6682
    %6684 = vset.pattern.permute.xlu0 0
    %6685 = vperm.xlu0 %6684, %v4640
    %v6686 = vpop.permute.xlu0 %6685
    %6687 = vset.pattern.permute.xlu0 0
    %6688 = vperm.xlu0 %6687, %v4641
    %v6689 = vpop.permute.xlu0 %6688
    %v6690 = vperm.slane %v5156, %v106
    %v6691 = vadd.s32 %v106, 4294967288
    %v6692 = vperm.slane %v5159, %v6691
    %vm6693 = vcmask 130112
    %v6694 = vsel %vm6693, %v6692, %v6690
    %v6695 = vadd.s32 %v106, 4294967280
    %v6696 = vperm.slane %v5162, %v6695
    %vm6697 = vcmask 195712
    %v6698 = vsel %vm6697, %v6696, %v6694
    %v6699 = vadd.s32 %v106, 4294967272
    %v6700 = vperm.slane %v5165, %v6699
    %vm6701 = vcmask 261312
    %v6702 = vsel %vm6701, %v6700, %v6698
    %v6703 = vperm.slane %v5168, %v106
    %v6704 = vperm.slane %v5171, %v6691
    %v6705 = vsel %vm6693, %v6704, %v6703
    %v6706 = vperm.slane %v5174, %v6695
    %v6707 = vsel %vm6697, %v6706, %v6705
    %v6708 = vperm.slane %v5177, %v6699
    %v6709 = vsel %vm6701, %v6708, %v6707
    %v6710 = vperm.slane %v5180, %v106
    %v6711 = vperm.slane %v5183, %v6691
    %v6712 = vsel %vm6693, %v6711, %v6710
    %v6713 = vperm.slane %v5186, %v6695
    %v6714 = vsel %vm6697, %v6713, %v6712
    %v6715 = vperm.slane %v5189, %v6699
    %v6716 = vsel %vm6701, %v6715, %v6714
    %v6717 = vperm.slane %v5192, %v106
    %v6718 = vperm.slane %v5195, %v6691
    %v6719 = vsel %vm6693, %v6718, %v6717
    %v6720 = vperm.slane %v5198, %v6695
    %v6721 = vsel %vm6697, %v6720, %v6719
    %v6722 = vperm.slane %v5201, %v6699
    %v6723 = vsel %vm6701, %v6722, %v6721
    %v6724 = vperm.slane %v5204, %v106
    %v6725 = vperm.slane %v5207, %v6691
    %v6726 = vsel %vm6693, %v6725, %v6724
    %v6727 = vperm.slane %v5210, %v6695
    %v6728 = vsel %vm6697, %v6727, %v6726
    %v6729 = vperm.slane %v5213, %v6699
    %v6730 = vsel %vm6701, %v6729, %v6728
    %v6731 = vperm.slane %v5216, %v106
    %v6732 = vperm.slane %v5219, %v6691
    %v6733 = vsel %vm6693, %v6732, %v6731
    %v6734 = vperm.slane %v5222, %v6695
    %v6735 = vsel %vm6697, %v6734, %v6733
    %v6736 = vperm.slane %v5225, %v6699
    %v6737 = vsel %vm6701, %v6736, %v6735
    %v6738 = vperm.slane %v5228, %v106
    %v6739 = vperm.slane %v5231, %v6691
    %v6740 = vsel %vm6693, %v6739, %v6738
    %v6741 = vperm.slane %v5234, %v6695
    %v6742 = vsel %vm6697, %v6741, %v6740
    %v6743 = vperm.slane %v5237, %v6699
    %v6744 = vsel %vm6701, %v6743, %v6742
    %v6745 = vperm.slane %v5240, %v106
    %v6746 = vperm.slane %v5243, %v6691
    %v6747 = vsel %vm6693, %v6746, %v6745
    %v6748 = vperm.slane %v5246, %v6695
    %v6749 = vsel %vm6697, %v6748, %v6747
    %v6750 = vperm.slane %v5249, %v6699
    %v6751 = vsel %vm6701, %v6750, %v6749
    %v6752 = vperm.slane %v5252, %v106
    %v6753 = vperm.slane %v5255, %v6691
    %v6754 = vsel %vm6693, %v6753, %v6752
    %v6755 = vperm.slane %v5258, %v6695
    %v6756 = vsel %vm6697, %v6755, %v6754
    %v6757 = vperm.slane %v5261, %v6699
    %v6758 = vsel %vm6701, %v6757, %v6756
    %v6759 = vperm.slane %v5264, %v106
    %v6760 = vperm.slane %v5267, %v6691
    %v6761 = vsel %vm6693, %v6760, %v6759
    %v6762 = vperm.slane %v5270, %v6695
    %v6763 = vsel %vm6697, %v6762, %v6761
    %v6764 = vperm.slane %v5273, %v6699
    %v6765 = vsel %vm6701, %v6764, %v6763
    %v6766 = vperm.slane %v5276, %v106
    %v6767 = vperm.slane %v5279, %v6691
    %v6768 = vsel %vm6693, %v6767, %v6766
    %v6769 = vperm.slane %v5282, %v6695
    %v6770 = vsel %vm6697, %v6769, %v6768
    %v6771 = vperm.slane %v5285, %v6699
    %v6772 = vsel %vm6701, %v6771, %v6770
    %v6773 = vperm.slane %v5288, %v106
    %v6774 = vperm.slane %v5291, %v6691
    %v6775 = vsel %vm6693, %v6774, %v6773
    %v6776 = vperm.slane %v5294, %v6695
    %v6777 = vsel %vm6697, %v6776, %v6775
    %v6778 = vperm.slane %v5297, %v6699
    %v6779 = vsel %vm6701, %v6778, %v6777
    %v6780 = vperm.slane %v5300, %v106
    %v6781 = vperm.slane %v5303, %v6691
    %v6782 = vsel %vm6693, %v6781, %v6780
    %v6783 = vperm.slane %v5306, %v6695
    %v6784 = vsel %vm6697, %v6783, %v6782
    %v6785 = vperm.slane %v5309, %v6699
    %v6786 = vsel %vm6701, %v6785, %v6784
    %v6787 = vperm.slane %v5312, %v106
    %v6788 = vperm.slane %v5315, %v6691
    %v6789 = vsel %vm6693, %v6788, %v6787
    %v6790 = vperm.slane %v5318, %v6695
    %v6791 = vsel %vm6697, %v6790, %v6789
    %v6792 = vperm.slane %v5321, %v6699
    %v6793 = vsel %vm6701, %v6792, %v6791
    %v6794 = vperm.slane %v5324, %v106
    %v6795 = vperm.slane %v5327, %v6691
    %v6796 = vsel %vm6693, %v6795, %v6794
    %v6797 = vperm.slane %v5330, %v6695
    %v6798 = vsel %vm6697, %v6797, %v6796
    %v6799 = vperm.slane %v5333, %v6699
    %v6800 = vsel %vm6701, %v6799, %v6798
    %v6801 = vperm.slane %v5336, %v106
    %v6802 = vperm.slane %v5339, %v6691
    %v6803 = vsel %vm6693, %v6802, %v6801
    %v6804 = vperm.slane %v5342, %v6695
    %v6805 = vsel %vm6697, %v6804, %v6803
    %v6806 = vperm.slane %v5345, %v6699
    %v6807 = vsel %vm6701, %v6806, %v6805
    %v6808 = vperm.slane %v5348, %v106
    %v6809 = vperm.slane %v5351, %v6691
    %v6810 = vsel %vm6693, %v6809, %v6808
    %v6811 = vperm.slane %v5354, %v6695
    %v6812 = vsel %vm6697, %v6811, %v6810
    %v6813 = vperm.slane %v5357, %v6699
    %v6814 = vsel %vm6701, %v6813, %v6812
    %v6815 = vperm.slane %v5360, %v106
    %v6816 = vperm.slane %v5363, %v6691
    %v6817 = vsel %vm6693, %v6816, %v6815
    %v6818 = vperm.slane %v5366, %v6695
    %v6819 = vsel %vm6697, %v6818, %v6817
    %v6820 = vperm.slane %v5369, %v6699
    %v6821 = vsel %vm6701, %v6820, %v6819
    %v6822 = vperm.slane %v5372, %v106
    %v6823 = vperm.slane %v5375, %v6691
    %v6824 = vsel %vm6693, %v6823, %v6822
    %v6825 = vperm.slane %v5378, %v6695
    %v6826 = vsel %vm6697, %v6825, %v6824
    %v6827 = vperm.slane %v5381, %v6699
    %v6828 = vsel %vm6701, %v6827, %v6826
    %v6829 = vperm.slane %v5384, %v106
    %v6830 = vperm.slane %v5387, %v6691
    %v6831 = vsel %vm6693, %v6830, %v6829
    %v6832 = vperm.slane %v5390, %v6695
    %v6833 = vsel %vm6697, %v6832, %v6831
    %v6834 = vperm.slane %v5393, %v6699
    %v6835 = vsel %vm6701, %v6834, %v6833
    %v6836 = vperm.slane %v5396, %v106
    %v6837 = vperm.slane %v5399, %v6691
    %v6838 = vsel %vm6693, %v6837, %v6836
    %v6839 = vperm.slane %v5402, %v6695
    %v6840 = vsel %vm6697, %v6839, %v6838
    %v6841 = vperm.slane %v5405, %v6699
    %v6842 = vsel %vm6701, %v6841, %v6840
    %v6843 = vperm.slane %v5408, %v106
    %v6844 = vperm.slane %v5411, %v6691
    %v6845 = vsel %vm6693, %v6844, %v6843
    %v6846 = vperm.slane %v5414, %v6695
    %v6847 = vsel %vm6697, %v6846, %v6845
    %v6848 = vperm.slane %v5417, %v6699
    %v6849 = vsel %vm6701, %v6848, %v6847
    %v6850 = vperm.slane %v5420, %v106
    %v6851 = vperm.slane %v5423, %v6691
    %v6852 = vsel %vm6693, %v6851, %v6850
    %v6853 = vperm.slane %v5426, %v6695
    %v6854 = vsel %vm6697, %v6853, %v6852
    %v6855 = vperm.slane %v5429, %v6699
    %v6856 = vsel %vm6701, %v6855, %v6854
    %v6857 = vperm.slane %v5432, %v106
    %v6858 = vperm.slane %v5435, %v6691
    %v6859 = vsel %vm6693, %v6858, %v6857
    %v6860 = vperm.slane %v5438, %v6695
    %v6861 = vsel %vm6697, %v6860, %v6859
    %v6862 = vperm.slane %v5441, %v6699
    %v6863 = vsel %vm6701, %v6862, %v6861
    %v6864 = vperm.slane %v5444, %v106
    %v6865 = vperm.slane %v5447, %v6691
    %v6866 = vsel %vm6693, %v6865, %v6864
    %v6867 = vperm.slane %v5450, %v6695
    %v6868 = vsel %vm6697, %v6867, %v6866
    %v6869 = vperm.slane %v5453, %v6699
    %v6870 = vsel %vm6701, %v6869, %v6868
    %v6871 = vperm.slane %v5456, %v106
    %v6872 = vperm.slane %v5459, %v6691
    %v6873 = vsel %vm6693, %v6872, %v6871
    %v6874 = vperm.slane %v5462, %v6695
    %v6875 = vsel %vm6697, %v6874, %v6873
    %v6876 = vperm.slane %v5465, %v6699
    %v6877 = vsel %vm6701, %v6876, %v6875
    %v6878 = vperm.slane %v5468, %v106
    %v6879 = vperm.slane %v5471, %v6691
    %v6880 = vsel %vm6693, %v6879, %v6878
    %v6881 = vperm.slane %v5474, %v6695
    %v6882 = vsel %vm6697, %v6881, %v6880
    %v6883 = vperm.slane %v5477, %v6699
    %v6884 = vsel %vm6701, %v6883, %v6882
    %v6885 = vperm.slane %v5480, %v106
    %v6886 = vperm.slane %v5483, %v6691
    %v6887 = vsel %vm6693, %v6886, %v6885
    %v6888 = vperm.slane %v5486, %v6695
    %v6889 = vsel %vm6697, %v6888, %v6887
    %v6890 = vperm.slane %v5489, %v6699
    %v6891 = vsel %vm6701, %v6890, %v6889
    %v6892 = vperm.slane %v5492, %v106
    %v6893 = vperm.slane %v5495, %v6691
    %v6894 = vsel %vm6693, %v6893, %v6892
    %v6895 = vperm.slane %v5498, %v6695
    %v6896 = vsel %vm6697, %v6895, %v6894
    %v6897 = vperm.slane %v5501, %v6699
    %v6898 = vsel %vm6701, %v6897, %v6896
    %v6899 = vperm.slane %v5504, %v106
    %v6900 = vperm.slane %v5507, %v6691
    %v6901 = vsel %vm6693, %v6900, %v6899
    %v6902 = vperm.slane %v5510, %v6695
    %v6903 = vsel %vm6697, %v6902, %v6901
    %v6904 = vperm.slane %v5513, %v6699
    %v6905 = vsel %vm6701, %v6904, %v6903
    %v6906 = vperm.slane %v5516, %v106
    %v6907 = vperm.slane %v5519, %v6691
    %v6908 = vsel %vm6693, %v6907, %v6906
    %v6909 = vperm.slane %v5522, %v6695
    %v6910 = vsel %vm6697, %v6909, %v6908
    %v6911 = vperm.slane %v5525, %v6699
    %v6912 = vsel %vm6701, %v6911, %v6910
    %v6913 = vperm.slane %v5528, %v106
    %v6914 = vperm.slane %v5531, %v6691
    %v6915 = vsel %vm6693, %v6914, %v6913
    %v6916 = vperm.slane %v5534, %v6695
    %v6917 = vsel %vm6697, %v6916, %v6915
    %v6918 = vperm.slane %v5537, %v6699
    %v6919 = vsel %vm6701, %v6918, %v6917
    %v6920 = vperm.slane %v5540, %v106
    %v6921 = vperm.slane %v5543, %v6691
    %v6922 = vsel %vm6693, %v6921, %v6920
    %v6923 = vperm.slane %v5546, %v6695
    %v6924 = vsel %vm6697, %v6923, %v6922
    %v6925 = vperm.slane %v5549, %v6699
    %v6926 = vsel %vm6701, %v6925, %v6924
    %v6927 = vperm.slane %v5552, %v106
    %v6928 = vperm.slane %v5555, %v6691
    %v6929 = vsel %vm6693, %v6928, %v6927
    %v6930 = vperm.slane %v5558, %v6695
    %v6931 = vsel %vm6697, %v6930, %v6929
    %v6932 = vperm.slane %v5561, %v6699
    %v6933 = vsel %vm6701, %v6932, %v6931
    %v6934 = vperm.slane %v5564, %v106
    %v6935 = vperm.slane %v5567, %v6691
    %v6936 = vsel %vm6693, %v6935, %v6934
    %v6937 = vperm.slane %v5570, %v6695
    %v6938 = vsel %vm6697, %v6937, %v6936
    %v6939 = vperm.slane %v5573, %v6699
    %v6940 = vsel %vm6701, %v6939, %v6938
    %v6941 = vperm.slane %v5576, %v106
    %v6942 = vperm.slane %v5579, %v6691
    %v6943 = vsel %vm6693, %v6942, %v6941
    %v6944 = vperm.slane %v5582, %v6695
    %v6945 = vsel %vm6697, %v6944, %v6943
    %v6946 = vperm.slane %v5585, %v6699
    %v6947 = vsel %vm6701, %v6946, %v6945
    %v6948 = vperm.slane %v5588, %v106
    %v6949 = vperm.slane %v5591, %v6691
    %v6950 = vsel %vm6693, %v6949, %v6948
    %v6951 = vperm.slane %v5594, %v6695
    %v6952 = vsel %vm6697, %v6951, %v6950
    %v6953 = vperm.slane %v5597, %v6699
    %v6954 = vsel %vm6701, %v6953, %v6952
    %v6955 = vperm.slane %v5600, %v106
    %v6956 = vperm.slane %v5603, %v6691
    %v6957 = vsel %vm6693, %v6956, %v6955
    %v6958 = vperm.slane %v5606, %v6695
    %v6959 = vsel %vm6697, %v6958, %v6957
    %v6960 = vperm.slane %v5609, %v6699
    %v6961 = vsel %vm6701, %v6960, %v6959
    %v6962 = vperm.slane %v5612, %v106
    %v6963 = vperm.slane %v5615, %v6691
    %v6964 = vsel %vm6693, %v6963, %v6962
    %v6965 = vperm.slane %v5618, %v6695
    %v6966 = vsel %vm6697, %v6965, %v6964
    %v6967 = vperm.slane %v5621, %v6699
    %v6968 = vsel %vm6701, %v6967, %v6966
    %v6969 = vperm.slane %v5624, %v106
    %v6970 = vperm.slane %v5627, %v6691
    %v6971 = vsel %vm6693, %v6970, %v6969
    %v6972 = vperm.slane %v5630, %v6695
    %v6973 = vsel %vm6697, %v6972, %v6971
    %v6974 = vperm.slane %v5633, %v6699
    %v6975 = vsel %vm6701, %v6974, %v6973
    %v6976 = vperm.slane %v5636, %v106
    %v6977 = vperm.slane %v5639, %v6691
    %v6978 = vsel %vm6693, %v6977, %v6976
    %v6979 = vperm.slane %v5642, %v6695
    %v6980 = vsel %vm6697, %v6979, %v6978
    %v6981 = vperm.slane %v5645, %v6699
    %v6982 = vsel %vm6701, %v6981, %v6980
    %v6983 = vperm.slane %v5648, %v106
    %v6984 = vperm.slane %v5651, %v6691
    %v6985 = vsel %vm6693, %v6984, %v6983
    %v6986 = vperm.slane %v5654, %v6695
    %v6987 = vsel %vm6697, %v6986, %v6985
    %v6988 = vperm.slane %v5657, %v6699
    %v6989 = vsel %vm6701, %v6988, %v6987
    %v6990 = vperm.slane %v5660, %v106
    %v6991 = vperm.slane %v5663, %v6691
    %v6992 = vsel %vm6693, %v6991, %v6990
    %v6993 = vperm.slane %v5666, %v6695
    %v6994 = vsel %vm6697, %v6993, %v6992
    %v6995 = vperm.slane %v5669, %v6699
    %v6996 = vsel %vm6701, %v6995, %v6994
    %v6997 = vperm.slane %v5672, %v106
    %v6998 = vperm.slane %v5675, %v6691
    %v6999 = vsel %vm6693, %v6998, %v6997
    %v7000 = vperm.slane %v5678, %v6695
    %v7001 = vsel %vm6697, %v7000, %v6999
    %v7002 = vperm.slane %v5681, %v6699
    %v7003 = vsel %vm6701, %v7002, %v7001
    %v7004 = vperm.slane %v5684, %v106
    %v7005 = vperm.slane %v5687, %v6691
    %v7006 = vsel %vm6693, %v7005, %v7004
    %v7007 = vperm.slane %v5690, %v6695
    %v7008 = vsel %vm6697, %v7007, %v7006
    %v7009 = vperm.slane %v5693, %v6699
    %v7010 = vsel %vm6701, %v7009, %v7008
    %v7011 = vperm.slane %v5696, %v106
    %v7012 = vperm.slane %v5699, %v6691
    %v7013 = vsel %vm6693, %v7012, %v7011
    %v7014 = vperm.slane %v5702, %v6695
    %v7015 = vsel %vm6697, %v7014, %v7013
    %v7016 = vperm.slane %v5705, %v6699
    %v7017 = vsel %vm6701, %v7016, %v7015
    %v7018 = vperm.slane %v5708, %v106
    %v7019 = vperm.slane %v5711, %v6691
    %v7020 = vsel %vm6693, %v7019, %v7018
    %v7021 = vperm.slane %v5714, %v6695
    %v7022 = vsel %vm6697, %v7021, %v7020
    %v7023 = vperm.slane %v5717, %v6699
    %v7024 = vsel %vm6701, %v7023, %v7022
    %v7025 = vperm.slane %v5720, %v106
    %v7026 = vperm.slane %v5723, %v6691
    %v7027 = vsel %vm6693, %v7026, %v7025
    %v7028 = vperm.slane %v5726, %v6695
    %v7029 = vsel %vm6697, %v7028, %v7027
    %v7030 = vperm.slane %v5729, %v6699
    %v7031 = vsel %vm6701, %v7030, %v7029
    %v7032 = vperm.slane %v5732, %v106
    %v7033 = vperm.slane %v5735, %v6691
    %v7034 = vsel %vm6693, %v7033, %v7032
    %v7035 = vperm.slane %v5738, %v6695
    %v7036 = vsel %vm6697, %v7035, %v7034
    %v7037 = vperm.slane %v5741, %v6699
    %v7038 = vsel %vm6701, %v7037, %v7036
    %v7039 = vperm.slane %v5744, %v106
    %v7040 = vperm.slane %v5747, %v6691
    %v7041 = vsel %vm6693, %v7040, %v7039
    %v7042 = vperm.slane %v5750, %v6695
    %v7043 = vsel %vm6697, %v7042, %v7041
    %v7044 = vperm.slane %v5753, %v6699
    %v7045 = vsel %vm6701, %v7044, %v7043
    %v7046 = vperm.slane %v5756, %v106
    %v7047 = vperm.slane %v5759, %v6691
    %v7048 = vsel %vm6693, %v7047, %v7046
    %v7049 = vperm.slane %v5762, %v6695
    %v7050 = vsel %vm6697, %v7049, %v7048
    %v7051 = vperm.slane %v5765, %v6699
    %v7052 = vsel %vm6701, %v7051, %v7050
    %v7053 = vperm.slane %v5768, %v106
    %v7054 = vperm.slane %v5771, %v6691
    %v7055 = vsel %vm6693, %v7054, %v7053
    %v7056 = vperm.slane %v5774, %v6695
    %v7057 = vsel %vm6697, %v7056, %v7055
    %v7058 = vperm.slane %v5777, %v6699
    %v7059 = vsel %vm6701, %v7058, %v7057
    %v7060 = vperm.slane %v5780, %v106
    %v7061 = vperm.slane %v5783, %v6691
    %v7062 = vsel %vm6693, %v7061, %v7060
    %v7063 = vperm.slane %v5786, %v6695
    %v7064 = vsel %vm6697, %v7063, %v7062
    %v7065 = vperm.slane %v5789, %v6699
    %v7066 = vsel %vm6701, %v7065, %v7064
    %v7067 = vperm.slane %v5792, %v106
    %v7068 = vperm.slane %v5795, %v6691
    %v7069 = vsel %vm6693, %v7068, %v7067
    %v7070 = vperm.slane %v5798, %v6695
    %v7071 = vsel %vm6697, %v7070, %v7069
    %v7072 = vperm.slane %v5801, %v6699
    %v7073 = vsel %vm6701, %v7072, %v7071
    %v7074 = vperm.slane %v5804, %v106
    %v7075 = vperm.slane %v5807, %v6691
    %v7076 = vsel %vm6693, %v7075, %v7074
    %v7077 = vperm.slane %v5810, %v6695
    %v7078 = vsel %vm6697, %v7077, %v7076
    %v7079 = vperm.slane %v5813, %v6699
    %v7080 = vsel %vm6701, %v7079, %v7078
    %v7081 = vperm.slane %v5816, %v106
    %v7082 = vperm.slane %v5819, %v6691
    %v7083 = vsel %vm6693, %v7082, %v7081
    %v7084 = vperm.slane %v5822, %v6695
    %v7085 = vsel %vm6697, %v7084, %v7083
    %v7086 = vperm.slane %v5825, %v6699
    %v7087 = vsel %vm6701, %v7086, %v7085
    %v7088 = vperm.slane %v5828, %v106
    %v7089 = vperm.slane %v5831, %v6691
    %v7090 = vsel %vm6693, %v7089, %v7088
    %v7091 = vperm.slane %v5834, %v6695
    %v7092 = vsel %vm6697, %v7091, %v7090
    %v7093 = vperm.slane %v5837, %v6699
    %v7094 = vsel %vm6701, %v7093, %v7092
    %v7095 = vperm.slane %v5840, %v106
    %v7096 = vperm.slane %v5843, %v6691
    %v7097 = vsel %vm6693, %v7096, %v7095
    %v7098 = vperm.slane %v5846, %v6695
    %v7099 = vsel %vm6697, %v7098, %v7097
    %v7100 = vperm.slane %v5849, %v6699
    %v7101 = vsel %vm6701, %v7100, %v7099
    %v7102 = vperm.slane %v5852, %v106
    %v7103 = vperm.slane %v5855, %v6691
    %v7104 = vsel %vm6693, %v7103, %v7102
    %v7105 = vperm.slane %v5858, %v6695
    %v7106 = vsel %vm6697, %v7105, %v7104
    %v7107 = vperm.slane %v5861, %v6699
    %v7108 = vsel %vm6701, %v7107, %v7106
    %v7109 = vperm.slane %v5864, %v106
    %v7110 = vperm.slane %v5867, %v6691
    %v7111 = vsel %vm6693, %v7110, %v7109
    %v7112 = vperm.slane %v5870, %v6695
    %v7113 = vsel %vm6697, %v7112, %v7111
    %v7114 = vperm.slane %v5873, %v6699
    %v7115 = vsel %vm6701, %v7114, %v7113
    %v7116 = vperm.slane %v5876, %v106
    %v7117 = vperm.slane %v5879, %v6691
    %v7118 = vsel %vm6693, %v7117, %v7116
    %v7119 = vperm.slane %v5882, %v6695
    %v7120 = vsel %vm6697, %v7119, %v7118
    %v7121 = vperm.slane %v5885, %v6699
    %v7122 = vsel %vm6701, %v7121, %v7120
    %v7123 = vperm.slane %v5888, %v106
    %v7124 = vperm.slane %v5891, %v6691
    %v7125 = vsel %vm6693, %v7124, %v7123
    %v7126 = vperm.slane %v5894, %v6695
    %v7127 = vsel %vm6697, %v7126, %v7125
    %v7128 = vperm.slane %v5897, %v6699
    %v7129 = vsel %vm6701, %v7128, %v7127
    %v7130 = vperm.slane %v5900, %v106
    %v7131 = vperm.slane %v5903, %v6691
    %v7132 = vsel %vm6693, %v7131, %v7130
    %v7133 = vperm.slane %v5906, %v6695
    %v7134 = vsel %vm6697, %v7133, %v7132
    %v7135 = vperm.slane %v5909, %v6699
    %v7136 = vsel %vm6701, %v7135, %v7134
    %v7137 = vperm.slane %v5912, %v106
    %v7138 = vperm.slane %v5915, %v6691
    %v7139 = vsel %vm6693, %v7138, %v7137
    %v7140 = vperm.slane %v5918, %v6695
    %v7141 = vsel %vm6697, %v7140, %v7139
    %v7142 = vperm.slane %v5921, %v6699
    %v7143 = vsel %vm6701, %v7142, %v7141
    %v7144 = vperm.slane %v5924, %v106
    %v7145 = vperm.slane %v5927, %v6691
    %v7146 = vsel %vm6693, %v7145, %v7144
    %v7147 = vperm.slane %v5930, %v6695
    %v7148 = vsel %vm6697, %v7147, %v7146
    %v7149 = vperm.slane %v5933, %v6699
    %v7150 = vsel %vm6701, %v7149, %v7148
    %v7151 = vperm.slane %v5936, %v106
    %v7152 = vperm.slane %v5939, %v6691
    %v7153 = vsel %vm6693, %v7152, %v7151
    %v7154 = vperm.slane %v5942, %v6695
    %v7155 = vsel %vm6697, %v7154, %v7153
    %v7156 = vperm.slane %v5945, %v6699
    %v7157 = vsel %vm6701, %v7156, %v7155
    %v7158 = vperm.slane %v5948, %v106
    %v7159 = vperm.slane %v5951, %v6691
    %v7160 = vsel %vm6693, %v7159, %v7158
    %v7161 = vperm.slane %v5954, %v6695
    %v7162 = vsel %vm6697, %v7161, %v7160
    %v7163 = vperm.slane %v5957, %v6699
    %v7164 = vsel %vm6701, %v7163, %v7162
    %v7165 = vperm.slane %v5960, %v106
    %v7166 = vperm.slane %v5963, %v6691
    %v7167 = vsel %vm6693, %v7166, %v7165
    %v7168 = vperm.slane %v5966, %v6695
    %v7169 = vsel %vm6697, %v7168, %v7167
    %v7170 = vperm.slane %v5969, %v6699
    %v7171 = vsel %vm6701, %v7170, %v7169
    %v7172 = vperm.slane %v5972, %v106
    %v7173 = vperm.slane %v5975, %v6691
    %v7174 = vsel %vm6693, %v7173, %v7172
    %v7175 = vperm.slane %v5978, %v6695
    %v7176 = vsel %vm6697, %v7175, %v7174
    %v7177 = vperm.slane %v5981, %v6699
    %v7178 = vsel %vm6701, %v7177, %v7176
    %v7179 = vperm.slane %v5984, %v106
    %v7180 = vperm.slane %v5987, %v6691
    %v7181 = vsel %vm6693, %v7180, %v7179
    %v7182 = vperm.slane %v5990, %v6695
    %v7183 = vsel %vm6697, %v7182, %v7181
    %v7184 = vperm.slane %v5993, %v6699
    %v7185 = vsel %vm6701, %v7184, %v7183
    %v7186 = vperm.slane %v5996, %v106
    %v7187 = vperm.slane %v5999, %v6691
    %v7188 = vsel %vm6693, %v7187, %v7186
    %v7189 = vperm.slane %v6002, %v6695
    %v7190 = vsel %vm6697, %v7189, %v7188
    %v7191 = vperm.slane %v6005, %v6699
    %v7192 = vsel %vm6701, %v7191, %v7190
    %v7193 = vperm.slane %v6008, %v106
    %v7194 = vperm.slane %v6011, %v6691
    %v7195 = vsel %vm6693, %v7194, %v7193
    %v7196 = vperm.slane %v6014, %v6695
    %v7197 = vsel %vm6697, %v7196, %v7195
    %v7198 = vperm.slane %v6017, %v6699
    %v7199 = vsel %vm6701, %v7198, %v7197
    %v7200 = vperm.slane %v6020, %v106
    %v7201 = vperm.slane %v6023, %v6691
    %v7202 = vsel %vm6693, %v7201, %v7200
    %v7203 = vperm.slane %v6026, %v6695
    %v7204 = vsel %vm6697, %v7203, %v7202
    %v7205 = vperm.slane %v6029, %v6699
    %v7206 = vsel %vm6701, %v7205, %v7204
    %v7207 = vperm.slane %v6032, %v106
    %v7208 = vperm.slane %v6035, %v6691
    %v7209 = vsel %vm6693, %v7208, %v7207
    %v7210 = vperm.slane %v6038, %v6695
    %v7211 = vsel %vm6697, %v7210, %v7209
    %v7212 = vperm.slane %v6041, %v6699
    %v7213 = vsel %vm6701, %v7212, %v7211
    %v7214 = vperm.slane %v6044, %v106
    %v7215 = vperm.slane %v6047, %v6691
    %v7216 = vsel %vm6693, %v7215, %v7214
    %v7217 = vperm.slane %v6050, %v6695
    %v7218 = vsel %vm6697, %v7217, %v7216
    %v7219 = vperm.slane %v6053, %v6699
    %v7220 = vsel %vm6701, %v7219, %v7218
    %v7221 = vperm.slane %v6056, %v106
    %v7222 = vperm.slane %v6059, %v6691
    %v7223 = vsel %vm6693, %v7222, %v7221
    %v7224 = vperm.slane %v6062, %v6695
    %v7225 = vsel %vm6697, %v7224, %v7223
    %v7226 = vperm.slane %v6065, %v6699
    %v7227 = vsel %vm6701, %v7226, %v7225
    %v7228 = vperm.slane %v6068, %v106
    %v7229 = vperm.slane %v6071, %v6691
    %v7230 = vsel %vm6693, %v7229, %v7228
    %v7231 = vperm.slane %v6074, %v6695
    %v7232 = vsel %vm6697, %v7231, %v7230
    %v7233 = vperm.slane %v6077, %v6699
    %v7234 = vsel %vm6701, %v7233, %v7232
    %v7235 = vperm.slane %v6080, %v106
    %v7236 = vperm.slane %v6083, %v6691
    %v7237 = vsel %vm6693, %v7236, %v7235
    %v7238 = vperm.slane %v6086, %v6695
    %v7239 = vsel %vm6697, %v7238, %v7237
    %v7240 = vperm.slane %v6089, %v6699
    %v7241 = vsel %vm6701, %v7240, %v7239
    %v7242 = vperm.slane %v6092, %v106
    %v7243 = vperm.slane %v6095, %v6691
    %v7244 = vsel %vm6693, %v7243, %v7242
    %v7245 = vperm.slane %v6098, %v6695
    %v7246 = vsel %vm6697, %v7245, %v7244
    %v7247 = vperm.slane %v6101, %v6699
    %v7248 = vsel %vm6701, %v7247, %v7246
    %v7249 = vperm.slane %v6104, %v106
    %v7250 = vperm.slane %v6107, %v6691
    %v7251 = vsel %vm6693, %v7250, %v7249
    %v7252 = vperm.slane %v6110, %v6695
    %v7253 = vsel %vm6697, %v7252, %v7251
    %v7254 = vperm.slane %v6113, %v6699
    %v7255 = vsel %vm6701, %v7254, %v7253
    %v7256 = vperm.slane %v6116, %v106
    %v7257 = vperm.slane %v6119, %v6691
    %v7258 = vsel %vm6693, %v7257, %v7256
    %v7259 = vperm.slane %v6122, %v6695
    %v7260 = vsel %vm6697, %v7259, %v7258
    %v7261 = vperm.slane %v6125, %v6699
    %v7262 = vsel %vm6701, %v7261, %v7260
    %v7263 = vperm.slane %v6128, %v106
    %v7264 = vperm.slane %v6131, %v6691
    %v7265 = vsel %vm6693, %v7264, %v7263
    %v7266 = vperm.slane %v6134, %v6695
    %v7267 = vsel %vm6697, %v7266, %v7265
    %v7268 = vperm.slane %v6137, %v6699
    %v7269 = vsel %vm6701, %v7268, %v7267
    %v7270 = vperm.slane %v6140, %v106
    %v7271 = vperm.slane %v6143, %v6691
    %v7272 = vsel %vm6693, %v7271, %v7270
    %v7273 = vperm.slane %v6146, %v6695
    %v7274 = vsel %vm6697, %v7273, %v7272
    %v7275 = vperm.slane %v6149, %v6699
    %v7276 = vsel %vm6701, %v7275, %v7274
    %v7277 = vperm.slane %v6152, %v106
    %v7278 = vperm.slane %v6155, %v6691
    %v7279 = vsel %vm6693, %v7278, %v7277
    %v7280 = vperm.slane %v6158, %v6695
    %v7281 = vsel %vm6697, %v7280, %v7279
    %v7282 = vperm.slane %v6161, %v6699
    %v7283 = vsel %vm6701, %v7282, %v7281
    %v7284 = vperm.slane %v6164, %v106
    %v7285 = vperm.slane %v6167, %v6691
    %v7286 = vsel %vm6693, %v7285, %v7284
    %v7287 = vperm.slane %v6170, %v6695
    %v7288 = vsel %vm6697, %v7287, %v7286
    %v7289 = vperm.slane %v6173, %v6699
    %v7290 = vsel %vm6701, %v7289, %v7288
    %v7291 = vperm.slane %v6176, %v106
    %v7292 = vperm.slane %v6179, %v6691
    %v7293 = vsel %vm6693, %v7292, %v7291
    %v7294 = vperm.slane %v6182, %v6695
    %v7295 = vsel %vm6697, %v7294, %v7293
    %v7296 = vperm.slane %v6185, %v6699
    %v7297 = vsel %vm6701, %v7296, %v7295
    %v7298 = vperm.slane %v6188, %v106
    %v7299 = vperm.slane %v6191, %v6691
    %v7300 = vsel %vm6693, %v7299, %v7298
    %v7301 = vperm.slane %v6194, %v6695
    %v7302 = vsel %vm6697, %v7301, %v7300
    %v7303 = vperm.slane %v6197, %v6699
    %v7304 = vsel %vm6701, %v7303, %v7302
    %v7305 = vperm.slane %v6200, %v106
    %v7306 = vperm.slane %v6203, %v6691
    %v7307 = vsel %vm6693, %v7306, %v7305
    %v7308 = vperm.slane %v6206, %v6695
    %v7309 = vsel %vm6697, %v7308, %v7307
    %v7310 = vperm.slane %v6209, %v6699
    %v7311 = vsel %vm6701, %v7310, %v7309
    %v7312 = vperm.slane %v6212, %v106
    %v7313 = vperm.slane %v6215, %v6691
    %v7314 = vsel %vm6693, %v7313, %v7312
    %v7315 = vperm.slane %v6218, %v6695
    %v7316 = vsel %vm6697, %v7315, %v7314
    %v7317 = vperm.slane %v6221, %v6699
    %v7318 = vsel %vm6701, %v7317, %v7316
    %v7319 = vperm.slane %v6224, %v106
    %v7320 = vperm.slane %v6227, %v6691
    %v7321 = vsel %vm6693, %v7320, %v7319
    %v7322 = vperm.slane %v6230, %v6695
    %v7323 = vsel %vm6697, %v7322, %v7321
    %v7324 = vperm.slane %v6233, %v6699
    %v7325 = vsel %vm6701, %v7324, %v7323
    %v7326 = vperm.slane %v6236, %v106
    %v7327 = vperm.slane %v6239, %v6691
    %v7328 = vsel %vm6693, %v7327, %v7326
    %v7329 = vperm.slane %v6242, %v6695
    %v7330 = vsel %vm6697, %v7329, %v7328
    %v7331 = vperm.slane %v6245, %v6699
    %v7332 = vsel %vm6701, %v7331, %v7330
    %v7333 = vperm.slane %v6248, %v106
    %v7334 = vperm.slane %v6251, %v6691
    %v7335 = vsel %vm6693, %v7334, %v7333
    %v7336 = vperm.slane %v6254, %v6695
    %v7337 = vsel %vm6697, %v7336, %v7335
    %v7338 = vperm.slane %v6257, %v6699
    %v7339 = vsel %vm6701, %v7338, %v7337
    %v7340 = vperm.slane %v6260, %v106
    %v7341 = vperm.slane %v6263, %v6691
    %v7342 = vsel %vm6693, %v7341, %v7340
    %v7343 = vperm.slane %v6266, %v6695
    %v7344 = vsel %vm6697, %v7343, %v7342
    %v7345 = vperm.slane %v6269, %v6699
    %v7346 = vsel %vm6701, %v7345, %v7344
    %v7347 = vperm.slane %v6272, %v106
    %v7348 = vperm.slane %v6275, %v6691
    %v7349 = vsel %vm6693, %v7348, %v7347
    %v7350 = vperm.slane %v6278, %v6695
    %v7351 = vsel %vm6697, %v7350, %v7349
    %v7352 = vperm.slane %v6281, %v6699
    %v7353 = vsel %vm6701, %v7352, %v7351
    %v7354 = vperm.slane %v6284, %v106
    %v7355 = vperm.slane %v6287, %v6691
    %v7356 = vsel %vm6693, %v7355, %v7354
    %v7357 = vperm.slane %v6290, %v6695
    %v7358 = vsel %vm6697, %v7357, %v7356
    %v7359 = vperm.slane %v6293, %v6699
    %v7360 = vsel %vm6701, %v7359, %v7358
    %v7361 = vperm.slane %v6296, %v106
    %v7362 = vperm.slane %v6299, %v6691
    %v7363 = vsel %vm6693, %v7362, %v7361
    %v7364 = vperm.slane %v6302, %v6695
    %v7365 = vsel %vm6697, %v7364, %v7363
    %v7366 = vperm.slane %v6305, %v6699
    %v7367 = vsel %vm6701, %v7366, %v7365
    %v7368 = vperm.slane %v6308, %v106
    %v7369 = vperm.slane %v6311, %v6691
    %v7370 = vsel %vm6693, %v7369, %v7368
    %v7371 = vperm.slane %v6314, %v6695
    %v7372 = vsel %vm6697, %v7371, %v7370
    %v7373 = vperm.slane %v6317, %v6699
    %v7374 = vsel %vm6701, %v7373, %v7372
    %v7375 = vperm.slane %v6320, %v106
    %v7376 = vperm.slane %v6323, %v6691
    %v7377 = vsel %vm6693, %v7376, %v7375
    %v7378 = vperm.slane %v6326, %v6695
    %v7379 = vsel %vm6697, %v7378, %v7377
    %v7380 = vperm.slane %v6329, %v6699
    %v7381 = vsel %vm6701, %v7380, %v7379
    %v7382 = vperm.slane %v6332, %v106
    %v7383 = vperm.slane %v6335, %v6691
    %v7384 = vsel %vm6693, %v7383, %v7382
    %v7385 = vperm.slane %v6338, %v6695
    %v7386 = vsel %vm6697, %v7385, %v7384
    %v7387 = vperm.slane %v6341, %v6699
    %v7388 = vsel %vm6701, %v7387, %v7386
    %v7389 = vperm.slane %v6344, %v106
    %v7390 = vperm.slane %v6347, %v6691
    %v7391 = vsel %vm6693, %v7390, %v7389
    %v7392 = vperm.slane %v6350, %v6695
    %v7393 = vsel %vm6697, %v7392, %v7391
    %v7394 = vperm.slane %v6353, %v6699
    %v7395 = vsel %vm6701, %v7394, %v7393
    %v7396 = vperm.slane %v6356, %v106
    %v7397 = vperm.slane %v6359, %v6691
    %v7398 = vsel %vm6693, %v7397, %v7396
    %v7399 = vperm.slane %v6362, %v6695
    %v7400 = vsel %vm6697, %v7399, %v7398
    %v7401 = vperm.slane %v6365, %v6699
    %v7402 = vsel %vm6701, %v7401, %v7400
    %v7403 = vperm.slane %v6368, %v106
    %v7404 = vperm.slane %v6371, %v6691
    %v7405 = vsel %vm6693, %v7404, %v7403
    %v7406 = vperm.slane %v6374, %v6695
    %v7407 = vsel %vm6697, %v7406, %v7405
    %v7408 = vperm.slane %v6377, %v6699
    %v7409 = vsel %vm6701, %v7408, %v7407
    %v7410 = vperm.slane %v6380, %v106
    %v7411 = vperm.slane %v6383, %v6691
    %v7412 = vsel %vm6693, %v7411, %v7410
    %v7413 = vperm.slane %v6386, %v6695
    %v7414 = vsel %vm6697, %v7413, %v7412
    %v7415 = vperm.slane %v6389, %v6699
    %v7416 = vsel %vm6701, %v7415, %v7414
    %v7417 = vperm.slane %v6392, %v106
    %v7418 = vperm.slane %v6395, %v6691
    %v7419 = vsel %vm6693, %v7418, %v7417
    %v7420 = vperm.slane %v6398, %v6695
    %v7421 = vsel %vm6697, %v7420, %v7419
    %v7422 = vperm.slane %v6401, %v6699
    %v7423 = vsel %vm6701, %v7422, %v7421
    %v7424 = vperm.slane %v6404, %v106
    %v7425 = vperm.slane %v6407, %v6691
    %v7426 = vsel %vm6693, %v7425, %v7424
    %v7427 = vperm.slane %v6410, %v6695
    %v7428 = vsel %vm6697, %v7427, %v7426
    %v7429 = vperm.slane %v6413, %v6699
    %v7430 = vsel %vm6701, %v7429, %v7428
    %v7431 = vperm.slane %v6416, %v106
    %v7432 = vperm.slane %v6419, %v6691
    %v7433 = vsel %vm6693, %v7432, %v7431
    %v7434 = vperm.slane %v6422, %v6695
    %v7435 = vsel %vm6697, %v7434, %v7433
    %v7436 = vperm.slane %v6425, %v6699
    %v7437 = vsel %vm6701, %v7436, %v7435
    %v7438 = vperm.slane %v6428, %v106
    %v7439 = vperm.slane %v6431, %v6691
    %v7440 = vsel %vm6693, %v7439, %v7438
    %v7441 = vperm.slane %v6434, %v6695
    %v7442 = vsel %vm6697, %v7441, %v7440
    %v7443 = vperm.slane %v6437, %v6699
    %v7444 = vsel %vm6701, %v7443, %v7442
    %v7445 = vperm.slane %v6440, %v106
    %v7446 = vperm.slane %v6443, %v6691
    %v7447 = vsel %vm6693, %v7446, %v7445
    %v7448 = vperm.slane %v6446, %v6695
    %v7449 = vsel %vm6697, %v7448, %v7447
    %v7450 = vperm.slane %v6449, %v6699
    %v7451 = vsel %vm6701, %v7450, %v7449
    %v7452 = vperm.slane %v6452, %v106
    %v7453 = vperm.slane %v6455, %v6691
    %v7454 = vsel %vm6693, %v7453, %v7452
    %v7455 = vperm.slane %v6458, %v6695
    %v7456 = vsel %vm6697, %v7455, %v7454
    %v7457 = vperm.slane %v6461, %v6699
    %v7458 = vsel %vm6701, %v7457, %v7456
    %v7459 = vperm.slane %v6464, %v106
    %v7460 = vperm.slane %v6467, %v6691
    %v7461 = vsel %vm6693, %v7460, %v7459
    %v7462 = vperm.slane %v6470, %v6695
    %v7463 = vsel %vm6697, %v7462, %v7461
    %v7464 = vperm.slane %v6473, %v6699
    %v7465 = vsel %vm6701, %v7464, %v7463
    %v7466 = vperm.slane %v6476, %v106
    %v7467 = vperm.slane %v6479, %v6691
    %v7468 = vsel %vm6693, %v7467, %v7466
    %v7469 = vperm.slane %v6482, %v6695
    %v7470 = vsel %vm6697, %v7469, %v7468
    %v7471 = vperm.slane %v6485, %v6699
    %v7472 = vsel %vm6701, %v7471, %v7470
    %v7473 = vperm.slane %v6488, %v106
    %v7474 = vperm.slane %v6491, %v6691
    %v7475 = vsel %vm6693, %v7474, %v7473
    %v7476 = vperm.slane %v6494, %v6695
    %v7477 = vsel %vm6697, %v7476, %v7475
    %v7478 = vperm.slane %v6497, %v6699
    %v7479 = vsel %vm6701, %v7478, %v7477
    %v7480 = vperm.slane %v6500, %v106
    %v7481 = vperm.slane %v6503, %v6691
    %v7482 = vsel %vm6693, %v7481, %v7480
    %v7483 = vperm.slane %v6506, %v6695
    %v7484 = vsel %vm6697, %v7483, %v7482
    %v7485 = vperm.slane %v6509, %v6699
    %v7486 = vsel %vm6701, %v7485, %v7484
    %v7487 = vperm.slane %v6512, %v106
    %v7488 = vperm.slane %v6515, %v6691
    %v7489 = vsel %vm6693, %v7488, %v7487
    %v7490 = vperm.slane %v6518, %v6695
    %v7491 = vsel %vm6697, %v7490, %v7489
    %v7492 = vperm.slane %v6521, %v6699
    %v7493 = vsel %vm6701, %v7492, %v7491
    %v7494 = vperm.slane %v6524, %v106
    %v7495 = vperm.slane %v6527, %v6691
    %v7496 = vsel %vm6693, %v7495, %v7494
    %v7497 = vperm.slane %v6530, %v6695
    %v7498 = vsel %vm6697, %v7497, %v7496
    %v7499 = vperm.slane %v6533, %v6699
    %v7500 = vsel %vm6701, %v7499, %v7498
    %v7501 = vperm.slane %v6536, %v106
    %v7502 = vperm.slane %v6539, %v6691
    %v7503 = vsel %vm6693, %v7502, %v7501
    %v7504 = vperm.slane %v6542, %v6695
    %v7505 = vsel %vm6697, %v7504, %v7503
    %v7506 = vperm.slane %v6545, %v6699
    %v7507 = vsel %vm6701, %v7506, %v7505
    %v7508 = vperm.slane %v6548, %v106
    %v7509 = vperm.slane %v6551, %v6691
    %v7510 = vsel %vm6693, %v7509, %v7508
    %v7511 = vperm.slane %v6554, %v6695
    %v7512 = vsel %vm6697, %v7511, %v7510
    %v7513 = vperm.slane %v6557, %v6699
    %v7514 = vsel %vm6701, %v7513, %v7512
    %v7515 = vperm.slane %v6560, %v106
    %v7516 = vperm.slane %v6563, %v6691
    %v7517 = vsel %vm6693, %v7516, %v7515
    %v7518 = vperm.slane %v6566, %v6695
    %v7519 = vsel %vm6697, %v7518, %v7517
    %v7520 = vperm.slane %v6569, %v6699
    %v7521 = vsel %vm6701, %v7520, %v7519
    %v7522 = vperm.slane %v6572, %v106
    %v7523 = vperm.slane %v6575, %v6691
    %v7524 = vsel %vm6693, %v7523, %v7522
    %v7525 = vperm.slane %v6578, %v6695
    %v7526 = vsel %vm6697, %v7525, %v7524
    %v7527 = vperm.slane %v6581, %v6699
    %v7528 = vsel %vm6701, %v7527, %v7526
    %v7529 = vperm.slane %v6584, %v106
    %v7530 = vperm.slane %v6587, %v6691
    %v7531 = vsel %vm6693, %v7530, %v7529
    %v7532 = vperm.slane %v6590, %v6695
    %v7533 = vsel %vm6697, %v7532, %v7531
    %v7534 = vperm.slane %v6593, %v6699
    %v7535 = vsel %vm6701, %v7534, %v7533
    %v7536 = vperm.slane %v6596, %v106
    %v7537 = vperm.slane %v6599, %v6691
    %v7538 = vsel %vm6693, %v7537, %v7536
    %v7539 = vperm.slane %v6602, %v6695
    %v7540 = vsel %vm6697, %v7539, %v7538
    %v7541 = vperm.slane %v6605, %v6699
    %v7542 = vsel %vm6701, %v7541, %v7540
    %v7543 = vperm.slane %v6608, %v106
    %v7544 = vperm.slane %v6611, %v6691
    %v7545 = vsel %vm6693, %v7544, %v7543
    %v7546 = vperm.slane %v6614, %v6695
    %v7547 = vsel %vm6697, %v7546, %v7545
    %v7548 = vperm.slane %v6617, %v6699
    %v7549 = vsel %vm6701, %v7548, %v7547
    %v7550 = vperm.slane %v6620, %v106
    %v7551 = vperm.slane %v6623, %v6691
    %v7552 = vsel %vm6693, %v7551, %v7550
    %v7553 = vperm.slane %v6626, %v6695
    %v7554 = vsel %vm6697, %v7553, %v7552
    %v7555 = vperm.slane %v6629, %v6699
    %v7556 = vsel %vm6701, %v7555, %v7554
    %v7557 = vperm.slane %v6632, %v106
    %v7558 = vperm.slane %v6635, %v6691
    %v7559 = vsel %vm6693, %v7558, %v7557
    %v7560 = vperm.slane %v6638, %v6695
    %v7561 = vsel %vm6697, %v7560, %v7559
    %v7562 = vperm.slane %v6641, %v6699
    %v7563 = vsel %vm6701, %v7562, %v7561
    %v7564 = vperm.slane %v6644, %v106
    %v7565 = vperm.slane %v6647, %v6691
    %v7566 = vsel %vm6693, %v7565, %v7564
    %v7567 = vperm.slane %v6650, %v6695
    %v7568 = vsel %vm6697, %v7567, %v7566
    %v7569 = vperm.slane %v6653, %v6699
    %v7570 = vsel %vm6701, %v7569, %v7568
    %v7571 = vperm.slane %v6656, %v106
    %v7572 = vperm.slane %v6659, %v6691
    %v7573 = vsel %vm6693, %v7572, %v7571
    %v7574 = vperm.slane %v6662, %v6695
    %v7575 = vsel %vm6697, %v7574, %v7573
    %v7576 = vperm.slane %v6665, %v6699
    %v7577 = vsel %vm6701, %v7576, %v7575
    %v7578 = vperm.slane %v6668, %v106
    %v7579 = vperm.slane %v6671, %v6691
    %v7580 = vsel %vm6693, %v7579, %v7578
    %v7581 = vperm.slane %v6674, %v6695
    %v7582 = vsel %vm6697, %v7581, %v7580
    %v7583 = vperm.slane %v6677, %v6699
    %v7584 = vsel %vm6701, %v7583, %v7582
    %v7585 = vperm.slane %v6680, %v106
    %v7586 = vperm.slane %v6683, %v6691
    %v7587 = vsel %vm6693, %v7586, %v7585
    %v7588 = vperm.slane %v6686, %v6695
    %v7589 = vsel %vm6697, %v7588, %v7587
    %v7590 = vperm.slane %v6689, %v6699
    %v7591 = vsel %vm6701, %v7590, %v7589
    %vm7592 = vcmask 1041409
    %v7593 = vsel %vm7592, %v6709, %v6702
    %vm7594 = vcmask 1042434
    %v7595 = vsel %vm7594, %v6716, %v7593
    %vm7596 = vcmask 1043459
    %v7597 = vsel %vm7596, %v6723, %v7595
    %vm7598 = vcmask 1044484
    %v7599 = vsel %vm7598, %v6730, %v7597
    %vm7600 = vcmask 1045509
    %v7601 = vsel %vm7600, %v6737, %v7599
    %vm7602 = vcmask 1046534
    %v7603 = vsel %vm7602, %v6744, %v7601
    %vm7604 = vcmask 1047559
    %v7605 = vsel %vm7604, %v6751, %v7603
    %v7606 = vsel %vm7592, %v6765, %v6758
    %v7607 = vsel %vm7594, %v6772, %v7606
    %v7608 = vsel %vm7596, %v6779, %v7607
    %v7609 = vsel %vm7598, %v6786, %v7608
    %v7610 = vsel %vm7600, %v6793, %v7609
    %v7611 = vsel %vm7602, %v6800, %v7610
    %v7612 = vsel %vm7604, %v6807, %v7611
    %v7613 = vsel %vm7592, %v6821, %v6814
    %v7614 = vsel %vm7594, %v6828, %v7613
    %v7615 = vsel %vm7596, %v6835, %v7614
    %v7616 = vsel %vm7598, %v6842, %v7615
    %v7617 = vsel %vm7600, %v6849, %v7616
    %v7618 = vsel %vm7602, %v6856, %v7617
    %v7619 = vsel %vm7604, %v6863, %v7618
    %v7620 = vsel %vm7592, %v6877, %v6870
    %v7621 = vsel %vm7594, %v6884, %v7620
    %v7622 = vsel %vm7596, %v6891, %v7621
    %v7623 = vsel %vm7598, %v6898, %v7622
    %v7624 = vsel %vm7600, %v6905, %v7623
    %v7625 = vsel %vm7602, %v6912, %v7624
    %v7626 = vsel %vm7604, %v6919, %v7625
    %v7627 = vsel %vm7592, %v6933, %v6926
    %v7628 = vsel %vm7594, %v6940, %v7627
    %v7629 = vsel %vm7596, %v6947, %v7628
    %v7630 = vsel %vm7598, %v6954, %v7629
    %v7631 = vsel %vm7600, %v6961, %v7630
    %v7632 = vsel %vm7602, %v6968, %v7631
    %v7633 = vsel %vm7604, %v6975, %v7632
    %v7634 = vsel %vm7592, %v6989, %v6982
    %v7635 = vsel %vm7594, %v6996, %v7634
    %v7636 = vsel %vm7596, %v7003, %v7635
    %v7637 = vsel %vm7598, %v7010, %v7636
    %v7638 = vsel %vm7600, %v7017, %v7637
    %v7639 = vsel %vm7602, %v7024, %v7638
    %v7640 = vsel %vm7604, %v7031, %v7639
    %v7641 = vsel %vm7592, %v7045, %v7038
    %v7642 = vsel %vm7594, %v7052, %v7641
    %v7643 = vsel %vm7596, %v7059, %v7642
    %v7644 = vsel %vm7598, %v7066, %v7643
    %v7645 = vsel %vm7600, %v7073, %v7644
    %v7646 = vsel %vm7602, %v7080, %v7645
    %v7647 = vsel %vm7604, %v7087, %v7646
    %v7648 = vsel %vm7592, %v7101, %v7094
    %v7649 = vsel %vm7594, %v7108, %v7648
    %v7650 = vsel %vm7596, %v7115, %v7649
    %v7651 = vsel %vm7598, %v7122, %v7650
    %v7652 = vsel %vm7600, %v7129, %v7651
    %v7653 = vsel %vm7602, %v7136, %v7652
    %v7654 = vsel %vm7604, %v7143, %v7653
    %v7655 = vsel %vm7592, %v7157, %v7150
    %v7656 = vsel %vm7594, %v7164, %v7655
    %v7657 = vsel %vm7596, %v7171, %v7656
    %v7658 = vsel %vm7598, %v7178, %v7657
    %v7659 = vsel %vm7600, %v7185, %v7658
    %v7660 = vsel %vm7602, %v7192, %v7659
    %v7661 = vsel %vm7604, %v7199, %v7660
    %v7662 = vsel %vm7592, %v7213, %v7206
    %v7663 = vsel %vm7594, %v7220, %v7662
    %v7664 = vsel %vm7596, %v7227, %v7663
    %v7665 = vsel %vm7598, %v7234, %v7664
    %v7666 = vsel %vm7600, %v7241, %v7665
    %v7667 = vsel %vm7602, %v7248, %v7666
    %v7668 = vsel %vm7604, %v7255, %v7667
    %v7669 = vsel %vm7592, %v7269, %v7262
    %v7670 = vsel %vm7594, %v7276, %v7669
    %v7671 = vsel %vm7596, %v7283, %v7670
    %v7672 = vsel %vm7598, %v7290, %v7671
    %v7673 = vsel %vm7600, %v7297, %v7672
    %v7674 = vsel %vm7602, %v7304, %v7673
    %v7675 = vsel %vm7604, %v7311, %v7674
    %v7676 = vsel %vm7592, %v7325, %v7318
    %v7677 = vsel %vm7594, %v7332, %v7676
    %v7678 = vsel %vm7596, %v7339, %v7677
    %v7679 = vsel %vm7598, %v7346, %v7678
    %v7680 = vsel %vm7600, %v7353, %v7679
    %v7681 = vsel %vm7602, %v7360, %v7680
    %v7682 = vsel %vm7604, %v7367, %v7681
    %v7683 = vsel %vm7592, %v7381, %v7374
    %v7684 = vsel %vm7594, %v7388, %v7683
    %v7685 = vsel %vm7596, %v7395, %v7684
    %v7686 = vsel %vm7598, %v7402, %v7685
    %v7687 = vsel %vm7600, %v7409, %v7686
    %v7688 = vsel %vm7602, %v7416, %v7687
    %v7689 = vsel %vm7604, %v7423, %v7688
    %v7690 = vsel %vm7592, %v7437, %v7430
    %v7691 = vsel %vm7594, %v7444, %v7690
    %v7692 = vsel %vm7596, %v7451, %v7691
    %v7693 = vsel %vm7598, %v7458, %v7692
    %v7694 = vsel %vm7600, %v7465, %v7693
    %v7695 = vsel %vm7602, %v7472, %v7694
    %v7696 = vsel %vm7604, %v7479, %v7695
    %v7697 = vsel %vm7592, %v7493, %v7486
    %v7698 = vsel %vm7594, %v7500, %v7697
    %v7699 = vsel %vm7596, %v7507, %v7698
    %v7700 = vsel %vm7598, %v7514, %v7699
    %v7701 = vsel %vm7600, %v7521, %v7700
    %v7702 = vsel %vm7602, %v7528, %v7701
    %v7703 = vsel %vm7604, %v7535, %v7702
    %v7704 = vsel %vm7592, %v7549, %v7542
    %v7705 = vsel %vm7594, %v7556, %v7704
    %v7706 = vsel %vm7596, %v7563, %v7705
    %v7707 = vsel %vm7598, %v7570, %v7706
    %v7708 = vsel %vm7600, %v7577, %v7707
    %v7709 = vsel %vm7602, %v7584, %v7708
    %v7710 = vsel %vm7604, %v7591, %v7709
    %v7727 = vsel %vm135, %v7605, 0.0
    %7728 = vadd.xlane.f32.xlu0 %v7727
    %v7729 = vpop.xlane.xlu0 %7728
    %v7730 = vsel %vm135, %v7612, 0.0
    %7731 = vadd.xlane.f32.xlu0 %v7730
    %v7732 = vpop.xlane.xlu0 %7731
    %v7733 = vsel %vm135, %v7619, 0.0
    %7734 = vadd.xlane.f32.xlu0 %v7733
    %v7735 = vpop.xlane.xlu0 %7734
    %v7736 = vsel %vm135, %v7626, 0.0
    %7737 = vadd.xlane.f32.xlu0 %v7736
    %v7738 = vpop.xlane.xlu0 %7737
    %v7739 = vsel %vm135, %v7633, 0.0
    %7740 = vadd.xlane.f32.xlu0 %v7739
    %v7741 = vpop.xlane.xlu0 %7740
    %v7742 = vsel %vm135, %v7640, 0.0
    %7743 = vadd.xlane.f32.xlu0 %v7742
    %v7744 = vpop.xlane.xlu0 %7743
    %v7745 = vsel %vm135, %v7647, 0.0
    %7746 = vadd.xlane.f32.xlu0 %v7745
    %v7747 = vpop.xlane.xlu0 %7746
    %v7748 = vsel %vm135, %v7654, 0.0
    %7749 = vadd.xlane.f32.xlu0 %v7748
    %v7750 = vpop.xlane.xlu0 %7749
    %v7751 = vsel %vm135, %v7661, 0.0
    %7752 = vadd.xlane.f32.xlu0 %v7751
    %v7753 = vpop.xlane.xlu0 %7752
    %v7754 = vsel %vm135, %v7668, 0.0
    %7755 = vadd.xlane.f32.xlu0 %v7754
    %v7756 = vpop.xlane.xlu0 %7755
    %v7757 = vsel %vm135, %v7675, 0.0
    %7758 = vadd.xlane.f32.xlu0 %v7757
    %v7759 = vpop.xlane.xlu0 %7758
    %v7760 = vsel %vm135, %v7682, 0.0
    %7761 = vadd.xlane.f32.xlu0 %v7760
    %v7762 = vpop.xlane.xlu0 %7761
    %v7763 = vsel %vm135, %v7689, 0.0
    %7764 = vadd.xlane.f32.xlu0 %v7763
    %v7765 = vpop.xlane.xlu0 %7764
    %v7766 = vsel %vm135, %v7696, 0.0
    %7767 = vadd.xlane.f32.xlu0 %v7766
    %v7768 = vpop.xlane.xlu0 %7767
    %v7769 = vsel %vm135, %v7703, 0.0
    %7770 = vadd.xlane.f32.xlu0 %v7769
    %v7771 = vpop.xlane.xlu0 %7770
    %v7772 = vsel %vm135, %v7710, 0.0
    %7773 = vadd.xlane.f32.xlu0 %v7772
    %v7774 = vpop.xlane.xlu0 %7773
    %v7775 = vmul.f32 %v386, %v386
    %v7776 = vmul.f32 %v387, %v387
    %v7777 = vmul.f32 %v388, %v388
    %v7778 = vmul.f32 %v389, %v389
    %v7779 = vmul.f32 %v390, %v390
    %v7780 = vmul.f32 %v391, %v391
    %v7781 = vmul.f32 %v392, %v392
    %v7782 = vmul.f32 %v393, %v393
    %v7783 = vmul.f32 %v394, %v394
    %v7784 = vmul.f32 %v395, %v395
    %v7785 = vmul.f32 %v396, %v396
    %v7786 = vmul.f32 %v397, %v397
    %v7787 = vmul.f32 %v398, %v398
    %v7788 = vmul.f32 %v399, %v399
    %v7789 = vmul.f32 %v400, %v400
    %v7790 = vmul.f32 %v401, %v401
    %v7791 = vsub.f32 1.0, %v7775
    %v7792 = vsub.f32 1.0, %v7776
    %v7793 = vsub.f32 1.0, %v7777
    %v7794 = vsub.f32 1.0, %v7778
    %v7795 = vsub.f32 1.0, %v7779
    %v7796 = vsub.f32 1.0, %v7780
    %v7797 = vsub.f32 1.0, %v7781
    %v7798 = vsub.f32 1.0, %v7782
    %v7799 = vsub.f32 1.0, %v7783
    %v7800 = vsub.f32 1.0, %v7784
    %v7801 = vsub.f32 1.0, %v7785
    %v7802 = vsub.f32 1.0, %v7786
    %v7803 = vsub.f32 1.0, %v7787
    %v7804 = vsub.f32 1.0, %v7788
    %v7805 = vsub.f32 1.0, %v7789
    %v7806 = vsub.f32 1.0, %v7790
    %v7807 = vmul.f32 %v7791, %v248
    %v7808 = vmul.f32 %v7792, %v249
    %v7809 = vmul.f32 %v7793, %v250
    %v7810 = vmul.f32 %v7794, %v251
    %v7811 = vmul.f32 %v7795, %v252
    %v7812 = vmul.f32 %v7796, %v253
    %v7813 = vmul.f32 %v7797, %v254
    %v7814 = vmul.f32 %v7798, %v255
    %v7815 = vmul.f32 %v7799, %v256
    %v7816 = vmul.f32 %v7800, %v257
    %v7817 = vmul.f32 %v7801, %v258
    %v7818 = vmul.f32 %v7802, %v259
    %v7819 = vmul.f32 %v7803, %v260
    %v7820 = vmul.f32 %v7804, %v261
    %v7821 = vmul.f32 %v7805, %v262
    %v7822 = vmul.f32 %v7806, %v263
    %v7823 = vadd.f32 %v7807, 1.0
    %v7824 = vadd.f32 %v7808, 1.0
    %v7825 = vadd.f32 %v7809, 1.0
    %v7826 = vadd.f32 %v7810, 1.0
    %v7827 = vadd.f32 %v7811, 1.0
    %v7828 = vadd.f32 %v7812, 1.0
    %v7829 = vadd.f32 %v7813, 1.0
    %v7830 = vadd.f32 %v7814, 1.0
    %v7831 = vadd.f32 %v7815, 1.0
    %v7832 = vadd.f32 %v7816, 1.0
    %v7833 = vadd.f32 %v7817, 1.0
    %v7834 = vadd.f32 %v7818, 1.0
    %v7835 = vadd.f32 %v7819, 1.0
    %v7836 = vadd.f32 %v7820, 1.0
    %v7837 = vadd.f32 %v7821, 1.0
    %v7838 = vadd.f32 %v7822, 1.0
    %v7839 = vand.u32 2147483647, %v7823
    %v7840 = vand.u32 2147483647, %v7824
    %v7841 = vand.u32 2147483647, %v7825
    %v7842 = vand.u32 2147483647, %v7826
    %v7843 = vand.u32 2147483647, %v7827
    %v7844 = vand.u32 2147483647, %v7828
    %v7845 = vand.u32 2147483647, %v7829
    %v7846 = vand.u32 2147483647, %v7830
    %v7847 = vand.u32 2147483647, %v7831
    %v7848 = vand.u32 2147483647, %v7832
    %v7849 = vand.u32 2147483647, %v7833
    %v7850 = vand.u32 2147483647, %v7834
    %v7851 = vand.u32 2147483647, %v7835
    %v7852 = vand.u32 2147483647, %v7836
    %v7853 = vand.u32 2147483647, %v7837
    %v7854 = vand.u32 2147483647, %v7838
    %v7855 = vlog2.pop %v7839
    %v7856 = vmul.f32 %v7855, 0.6931472
    %v7857 = vlog2.pop %v7840
    %v7858 = vmul.f32 %v7857, 0.6931472
    %v7859 = vlog2.pop %v7841
    %v7860 = vmul.f32 %v7859, 0.6931472
    %v7861 = vlog2.pop %v7842
    %v7862 = vmul.f32 %v7861, 0.6931472
    %v7863 = vlog2.pop %v7843
    %v7864 = vmul.f32 %v7863, 0.6931472
    %v7865 = vlog2.pop %v7844
    %v7866 = vmul.f32 %v7865, 0.6931472
    %v7867 = vlog2.pop %v7845
    %v7868 = vmul.f32 %v7867, 0.6931472
    %v7869 = vlog2.pop %v7846
    %v7870 = vmul.f32 %v7869, 0.6931472
    %v7871 = vlog2.pop %v7847
    %v7872 = vmul.f32 %v7871, 0.6931472
    %v7873 = vlog2.pop %v7848
    %v7874 = vmul.f32 %v7873, 0.6931472
    %v7875 = vlog2.pop %v7849
    %v7876 = vmul.f32 %v7875, 0.6931472
    %v7877 = vlog2.pop %v7850
    %v7878 = vmul.f32 %v7877, 0.6931472
    %v7879 = vlog2.pop %v7851
    %v7880 = vmul.f32 %v7879, 0.6931472
    %v7881 = vlog2.pop %v7852
    %v7882 = vmul.f32 %v7881, 0.6931472
    %v7883 = vlog2.pop %v7853
    %v7884 = vmul.f32 %v7883, 0.6931472
    %v7885 = vlog2.pop %v7854
    %v7886 = vmul.f32 %v7885, 0.6931472
    %7903 = vset.pattern.permute.xlu0 0
    %7904 = vperm.xlu0 %7903, %v7856
    %v7905 = vpop.permute.xlu0 %7904
    %7906 = vset.pattern.permute.xlu0 0
    %7907 = vperm.xlu0 %7906, %v7858
    %v7908 = vpop.permute.xlu0 %7907
    %7909 = vset.pattern.permute.xlu0 0
    %7910 = vperm.xlu0 %7909, %v7860
    %v7911 = vpop.permute.xlu0 %7910
    %7912 = vset.pattern.permute.xlu0 0
    %7913 = vperm.xlu0 %7912, %v7862
    %v7914 = vpop.permute.xlu0 %7913
    %7915 = vset.pattern.permute.xlu0 0
    %7916 = vperm.xlu0 %7915, %v7864
    %v7917 = vpop.permute.xlu0 %7916
    %7918 = vset.pattern.permute.xlu0 0
    %7919 = vperm.xlu0 %7918, %v7866
    %v7920 = vpop.permute.xlu0 %7919
    %7921 = vset.pattern.permute.xlu0 0
    %7922 = vperm.xlu0 %7921, %v7868
    %v7923 = vpop.permute.xlu0 %7922
    %7924 = vset.pattern.permute.xlu0 0
    %7925 = vperm.xlu0 %7924, %v7870
    %v7926 = vpop.permute.xlu0 %7925
    %7927 = vset.pattern.permute.xlu0 0
    %7928 = vperm.xlu0 %7927, %v7872
    %v7929 = vpop.permute.xlu0 %7928
    %7930 = vset.pattern.permute.xlu0 0
    %7931 = vperm.xlu0 %7930, %v7874
    %v7932 = vpop.permute.xlu0 %7931
    %7933 = vset.pattern.permute.xlu0 0
    %7934 = vperm.xlu0 %7933, %v7876
    %v7935 = vpop.permute.xlu0 %7934
    %7936 = vset.pattern.permute.xlu0 0
    %7937 = vperm.xlu0 %7936, %v7878
    %v7938 = vpop.permute.xlu0 %7937
    %7939 = vset.pattern.permute.xlu0 0
    %7940 = vperm.xlu0 %7939, %v7880
    %v7941 = vpop.permute.xlu0 %7940
    %7942 = vset.pattern.permute.xlu0 0
    %7943 = vperm.xlu0 %7942, %v7882
    %v7944 = vpop.permute.xlu0 %7943
    %7945 = vset.pattern.permute.xlu0 0
    %7946 = vperm.xlu0 %7945, %v7884
    %v7947 = vpop.permute.xlu0 %7946
    %7948 = vset.pattern.permute.xlu0 0
    %7949 = vperm.xlu0 %7948, %v7886
    %v7950 = vpop.permute.xlu0 %7949
    %v7951 = vperm.slane %v7905, %v106
    %v7952 = vperm.slane %v7908, %v6691
    %v7953 = vsel %vm6693, %v7952, %v7951
    %v7954 = vperm.slane %v7911, %v6695
    %v7955 = vsel %vm6697, %v7954, %v7953
    %v7956 = vperm.slane %v7914, %v6699
    %v7957 = vsel %vm6701, %v7956, %v7955
    %v7958 = vperm.slane %v7917, %v106
    %v7959 = vperm.slane %v7920, %v6691
    %v7960 = vsel %vm6693, %v7959, %v7958
    %v7961 = vperm.slane %v7923, %v6695
    %v7962 = vsel %vm6697, %v7961, %v7960
    %v7963 = vperm.slane %v7926, %v6699
    %v7964 = vsel %vm6701, %v7963, %v7962
    %v7965 = vperm.slane %v7929, %v106
    %v7966 = vperm.slane %v7932, %v6691
    %v7967 = vsel %vm6693, %v7966, %v7965
    %v7968 = vperm.slane %v7935, %v6695
    %v7969 = vsel %vm6697, %v7968, %v7967
    %v7970 = vperm.slane %v7938, %v6699
    %v7971 = vsel %vm6701, %v7970, %v7969
    %v7972 = vperm.slane %v7941, %v106
    %v7973 = vperm.slane %v7944, %v6691
    %v7974 = vsel %vm6693, %v7973, %v7972
    %v7975 = vperm.slane %v7947, %v6695
    %v7976 = vsel %vm6697, %v7975, %v7974
    %v7977 = vperm.slane %v7950, %v6699
    %v7978 = vsel %vm6701, %v7977, %v7976
    %v7979 = vsel %vm7592, %v7964, %v7957
    %v7980 = vsel %vm7594, %v7971, %v7979
    %v7981 = vsel %vm7596, %v7978, %v7980
    %vm7983 = vcmask 257024
    %7984 = vst.msk [vmem:[#allocation9] sm:$0xf] %vm7983, %v7981
    %v8001 = vperm.slane %v7729, %v106
    %v8002 = vperm.slane %v7732, %v6691
    %v8003 = vsel %vm6693, %v8002, %v8001
    %v8004 = vperm.slane %v7735, %v6695
    %v8005 = vsel %vm6697, %v8004, %v8003
    %v8006 = vperm.slane %v7738, %v6699
    %v8007 = vsel %vm6701, %v8006, %v8005
    %v8008 = vperm.slane %v7741, %v106
    %v8009 = vperm.slane %v7744, %v6691
    %v8010 = vsel %vm6693, %v8009, %v8008
    %v8011 = vperm.slane %v7747, %v6695
    %v8012 = vsel %vm6697, %v8011, %v8010
    %v8013 = vperm.slane %v7750, %v6699
    %v8014 = vsel %vm6701, %v8013, %v8012
    %v8015 = vperm.slane %v7753, %v106
    %v8016 = vperm.slane %v7756, %v6691
    %v8017 = vsel %vm6693, %v8016, %v8015
    %v8018 = vperm.slane %v7759, %v6695
    %v8019 = vsel %vm6697, %v8018, %v8017
    %v8020 = vperm.slane %v7762, %v6699
    %v8021 = vsel %vm6701, %v8020, %v8019
    %v8022 = vperm.slane %v7765, %v106
    %v8023 = vperm.slane %v7768, %v6691
    %v8024 = vsel %vm6693, %v8023, %v8022
    %v8025 = vperm.slane %v7771, %v6695
    %v8026 = vsel %vm6697, %v8025, %v8024
    %v8027 = vperm.slane %v7774, %v6699
    %v8028 = vsel %vm6701, %v8027, %v8026
    %v8029 = vsel %vm7592, %v8014, %v8007
    %v8030 = vsel %vm7594, %v8021, %v8029
    %v8031 = vsel %vm7596, %v8028, %v8030
    %8033 = vst.msk [vmem:[#allocation8] sm:$0xf] %vm7983, %v8031
    // Predicated region
    $region30: #{tpu_custom_call.1} parent=1 // pred_check
      _
    $region31: #{tpu_custom_call.1} parent=1 // pred_check_branch
      %8035 = sbr.rel (0) target = $region33
    $region32: #{tpu_custom_call.1} parent=1 // pred_region
      %8037 = vsyncadd [#allocation4], 0
      %s8039 = sshll.u32 [#allocation8], 4
      %s8040 = int_to_ptr.vmem [resolvable:$true] %s8039
      %s8041 = sshll.u32 %s4, 4
      %s8042 = int_to_ptr.hbm [resolvable:$true] %s8041
      %8044 = dma.vmem_to_hbm [thread:$0]  %s8040, 64, %s8042, [#allocation4]
    $region33: #{tpu_custom_call.1} parent=1 // pred_fallthru
      _
    // Predicated region
    $region34: #{tpu_custom_call.1} parent=1 // pred_check
      _
    $region35: #{tpu_custom_call.1} parent=1 // pred_check_branch
      %8046 = sbr.rel (0) target = $region37
    $region36: #{tpu_custom_call.1} parent=1 // pred_region
      %8048 = vsyncadd [#allocation10], 0
      %s8050 = sshll.u32 [#allocation9], 4
      %s8051 = int_to_ptr.vmem [resolvable:$true] %s8050
      %s8052 = sshll.u32 %s5, 4
      %s8053 = int_to_ptr.hbm [resolvable:$true] %s8052
      %8055 = dma.vmem_to_hbm [thread:$0]  %s8051, 64, %s8053, [#allocation10]
    $region37: #{tpu_custom_call.1} parent=1 // pred_fallthru
      _
    // Predicated region
    $region38: #{tpu_custom_call.1} parent=1 // pred_check
      _
    $region39: #{tpu_custom_call.1} parent=1 // pred_check_branch
      %8057 = sbr.rel (0) target = $region41
    $region40: #{tpu_custom_call.1} parent=1 // pred_region
      %8059 = dma.done [#allocation4], 64
    $region41: #{tpu_custom_call.1} parent=1 // pred_fallthru
      _
    // Predicated region
    $region42: #{tpu_custom_call.1} parent=1 // pred_check
      _
    $region43: #{tpu_custom_call.1} parent=1 // pred_check_branch
      %8061 = sbr.rel (0) target = $region45
    $region44: #{tpu_custom_call.1} parent=1 // pred_region
      %8063 = dma.done [#allocation10], 64
    $region45: #{tpu_custom_call.1} parent=1 // pred_fallthru
      _
    %8064 = vsyncpa [#allocation3], 1
    %8065 = vsyncpa [#allocation6], 1
    %8066 = vsyncpa [#allocation4], 1
    %8067 = vsyncpa [#allocation10], 1

</llo_original>
